<compile_context>
chip_gen: v7x
topology: tpu7x:2x2x1
jax: 0.10.0
libtpu: 0.0.40
codegen_flags: <defaults>
</compile_context>

<pallas_src>
import functools

import jax
import jax.numpy as jnp
from jax.experimental import pallas as pl
from jax.experimental.pallas import tpu as pltpu

EPS = 1e-5
LANES = 128


def _cdiv(a, b):
    return (a + b - 1) // b


def _round_up(a, b):
    return _cdiv(a, b) * b


def _pad_last(a, c):
    return jnp.pad(a, [(0, 0)] * (a.ndim - 1) + [(0, c - a.shape[-1])])


def _vmem_limit_bytes():
    """~Half of physical VMEM: 64 MiB on v5e/v6e (128 MiB parts), 32 MiB on
    v7x (64 MiB part).  Falls back to the always-safe 32 MiB."""
    try:
        cap = int(pltpu.get_tpu_info().vmem_capacity_bytes)
    except Exception:
        cap = 64 * 1024 * 1024
    return max(32 * 1024 * 1024, min(96 * 1024 * 1024, cap // 2))


def _pick_row_tile(m, target):
    """Largest multiple-of-8 row tile <= target that divides m exactly (no row
    padding, no stats correction needed).  Falls back to padding m up to a
    multiple of the tile; padded rows are all-zero and their BN-stat
    contribution is subtracted on the host."""
    top = min(target, m)
    top -= top % 8
    for t in range(top, 7, -8):
        if m % t == 0:
            return t, m
    t = max(8, top)
    return t, _round_up(m, t)


def _pick_band_rows(ho, w, cp, budget=8 << 20):
    """Output-row band height for the pool kernel: bounds per-step resident
    bytes (band + scratch + out) and gives >= 2 bands per image when possible
    so the parallel grid axis can shard across both v7x TensorCores."""
    per_row = 2 * w * cp * 2 + w * cp * 4 + (w // 2) * cp * 4
    cap = max(1, int(budget) // per_row)
    cap = min(cap, max(1, ho // 2))
    for bh in range(cap, 0, -1):
        if ho % bh == 0:
            return bh
    return 1


# ---------------------------------------------------------------------------
# kernels
# ---------------------------------------------------------------------------
def mm_stats_kernel(u_ref, w_ref, b_ref, st_ref):
    """Per-tile BN statistics of v = u @ w + b.  Stats only: v is NOT written
    back to HBM (the consumer kernel recomputes it — the K dim is tiny)."""
    v = jnp.dot(u_ref[...], w_ref[...],
                preferred_element_type=jnp.float32) + b_ref[...]
    st_ref[0] = jnp.concatenate(
        [jnp.sum(v, axis=0, keepdims=True),
         jnp.sum(v * v, axis=0, keepdims=True)], axis=0)            # (2, Cp)


def conv_bn_relu_conv_kernel(x_ref, w1_ref, b1_ref, s1_ref, t1_ref,
                             w2_ref, b2_ref, y_ref, st_ref):
    """Recompute conv1 (x@w1+b1), apply folded BN1 + ReLU, conv2 (@w2+b2);
    emit y in bf16 plus this tile's per-channel BN2 (sum, sumsq) in f32."""
    h = jnp.dot(x_ref[...], w1_ref[...],
                preferred_element_type=jnp.float32) + b1_ref[...]
    u = jnp.maximum(h * s1_ref[...] + t1_ref[...], 0.0)
    v = jnp.dot(u.astype(jnp.bfloat16), w2_ref[...],
                preferred_element_type=jnp.float32) + b2_ref[...]
    y_ref[...] = v.astype(jnp.bfloat16)
    st_ref[0] = jnp.concatenate(
        [jnp.sum(v, axis=0, keepdims=True),
         jnp.sum(v * v, axis=0, keepdims=True)], axis=0)            # (2, Cp)


def pool_bn_add_kernel(y_ref, yh_ref, s2_ref, t2_ref, xr_ref, wr_ref,
                       sr_ref, tr_ref, out_ref, rmax_ref, *, bh):
    """Per (image, output-row band): BN2-apply, 3x3/stride-2/pad-1 max-pool,
    residual conv recompute + BN_res-apply + add.

    y_ref:    (1, 2*bh, W, Cp) bf16 — this band's un-normalized main activations
    yh_ref:   (1, 1, W, Cp)    bf16 — halo row 2*r0-1 (clamped; -inf for band 0)
    xr_ref:   (1, bh, Wo, Cin) bf16 — strided input pixels of this band
    out_ref:  (1, bh, Wo, Cp)  f32
    rmax_ref: VMEM scratch (bh, W, Cp): row-pooled slab so the stride-2 column
              selection uses strided ref reads (no per-column Python loop).
    """
    _, _, W, Cp = y_ref.shape
    _, _, Wo, Cin = xr_ref.shape
    band = pl.program_id(1)

    s2 = s2_ref[...]
    t2 = t2_ref[...]
    y = y_ref[0].astype(jnp.float32) * s2 + t2                      # (2bh, W, Cp)

    # Row pooling: output row i = max over input rows {2i-1, 2i, 2i+1}.
    yr = y.reshape(bh, 2, W, Cp)
    even = yr[:, 0]                                                 # rows 2i
    odd = yr[:, 1]                                                  # rows 2i+1
    halo = yh_ref[0].astype(jnp.float32) * s2 + t2                  # row 2*r0-1
    halo = jnp.where(band == 0, -jnp.inf, halo)                     # pad row -1
    if bh > 1:
        prev_odd = jnp.concatenate([halo, odd[:bh - 1]], axis=0)    # rows 2i-1
    else:
        prev_odd = halo
    rmax_ref[...] = jnp.maximum(jnp.maximum(even, odd), prev_odd)   # (bh, W, Cp)

    # Column pooling: output col j = max over cols {2j-1, 2j, 2j+1}, built
    # from strided ref views + two maxes.
    c0 = rmax_ref[:, pl.ds(0, Wo, stride=2), :]                     # cols 2j
    c1 = rmax_ref[:, pl.ds(1, Wo, stride=2), :]                     # cols 2j+1
    cm1 = jnp.concatenate(                                          # cols 2j-1
        [jnp.full((bh, 1, Cp), -jnp.inf, jnp.float32), c1[:, :Wo - 1, :]],
        axis=1)
    pooled = jnp.maximum(jnp.maximum(c0, c1), cm1)                  # (bh, Wo, Cp)

    # Residual branch recomputed here (xr @ w_res), then BN_res affine.
    r = jnp.dot(xr_ref[0].reshape(bh * Wo, Cin), wr_ref[...],
                preferred_element_type=jnp.float32)
    r = r.reshape(bh, Wo, Cp) * sr_ref[...] + tr_ref[...]

    out_ref[0] = pooled + r


# ---------------------------------------------------------------------------
# pallas_call wrappers
# ---------------------------------------------------------------------------
def _mm_stats_call(u, w_bf16, b, tm, vmem_limit):
    mp, k = u.shape
    cp = w_bf16.shape[1]
    nt = mp // tm
    return pl.pallas_call(
        mm_stats_kernel,
        grid=(nt,),
        in_specs=[pl.BlockSpec((tm, k), lambda i: (i, 0)),      # bf16 row tile
                  pl.BlockSpec((k, cp), lambda i: (0, 0)),      # full weight
                  pl.BlockSpec((1, cp), lambda i: (0, 0))],     # bias
        out_specs=pl.BlockSpec((1, 2, cp), lambda i: (i, 0, 0)),
        out_shape=jax.ShapeDtypeStruct((nt, 2, cp), jnp.float32),
        compiler_params=pltpu.CompilerParams(
            dimension_semantics=("parallel",), vmem_limit_bytes=vmem_limit),
        cost_estimate=pl.CostEstimate(
            flops=2 * mp * k * cp, transcendentals=0,
            bytes_accessed=2 * mp * k + 2 * k * cp + 4 * (2 * nt + 1) * cp),
    )(u, w_bf16, b)


def _conv_bn_relu_conv_call(x, w1, b1, s1, t1, w2, b2, tm, vmem_limit):
    mp, cin = x.shape
    cp = w1.shape[1]
    nt = mp // tm
    return pl.pallas_call(
        conv_bn_relu_conv_kernel,
        grid=(nt,),
        in_specs=[pl.BlockSpec((tm, cin), lambda i: (i, 0)),    # bf16 x tile
                  pl.BlockSpec((cin, cp), lambda i: (0, 0)),    # w1
                  pl.BlockSpec((1, cp), lambda i: (0, 0)),      # b1
                  pl.BlockSpec((1, cp), lambda i: (0, 0)),      # BN1 scale
                  pl.BlockSpec((1, cp), lambda i: (0, 0)),      # BN1 shift
                  pl.BlockSpec((cp, cp), lambda i: (0, 0)),     # w2
                  pl.BlockSpec((1, cp), lambda i: (0, 0))],     # b2
        out_specs=(pl.BlockSpec((tm, cp), lambda i: (i, 0)),
                   pl.BlockSpec((1, 2, cp), lambda i: (i, 0, 0))),
        out_shape=(jax.ShapeDtypeStruct((mp, cp), jnp.bfloat16),
                   jax.ShapeDtypeStruct((nt, 2, cp), jnp.float32)),
        compiler_params=pltpu.CompilerParams(
            dimension_semantics=("parallel",), vmem_limit_bytes=vmem_limit),
        cost_estimate=pl.CostEstimate(
            flops=2 * mp * cp * (cin + cp), transcendentals=0,
            bytes_accessed=2 * mp * cin + 2 * cp * cp + 2 * mp * cp),
    )(x, w1, b1, s1, t1, w2, b2)


def _pool_bn_add_call(y4, s2, t2, xr4, w_res, sr, tr, bh, vmem_limit):
    N, H, W, Cp = y4.shape
    _, Ho, Wo, Cin = xr4.shape
    nb = Ho // bh
    halo_map = lambda n, b: (n, jnp.maximum(2 * bh * b - 1, 0), 0, 0)
    return pl.pallas_call(
        functools.partial(pool_bn_add_kernel, bh=bh),
        grid=(N, nb),
        in_specs=[
            pl.BlockSpec((1, 2 * bh, W, Cp), lambda n, b: (n, b, 0, 0)),
            pl.BlockSpec((1, 1, W, Cp), halo_map),
            pl.BlockSpec((1, Cp), lambda n, b: (0, 0)),
            pl.BlockSpec((1, Cp), lambda n, b: (0, 0)),
            pl.BlockSpec((1, bh, Wo, Cin), lambda n, b: (n, b, 0, 0)),
            pl.BlockSpec((Cin, Cp), lambda n, b: (0, 0)),
            pl.BlockSpec((1, Cp), lambda n, b: (0, 0)),
            pl.BlockSpec((1, Cp), lambda n, b: (0, 0)),
        ],
        out_specs=pl.BlockSpec((1, bh, Wo, Cp), lambda n, b: (n, b, 0, 0)),
        out_shape=jax.ShapeDtypeStruct((N, Ho, Wo, Cp), jnp.float32),
        scratch_shapes=[pltpu.VMEM((bh, W, Cp), jnp.float32)],
        compiler_params=pltpu.CompilerParams(
            dimension_semantics=("parallel", "parallel"),
            vmem_limit_bytes=vmem_limit),
        cost_estimate=pl.CostEstimate(
            flops=N * (8 * H * W * Cp + 2 * Ho * Wo * Cin * Cp),
            transcendentals=0,
            bytes_accessed=(2 * N * H * W * Cp + 2 * N * Ho * Wo * Cin
                            + 4 * N * Ho * Wo * Cp)),
    )(y4, y4, s2, t2, xr4, w_res, sr, tr)


# ---------------------------------------------------------------------------
# forward
# ---------------------------------------------------------------------------
def _finalize_bn(part_stats, m, gamma, beta, pad_rows=0, pad_row_value=None):
    """Fold accumulated per-channel (sum, sumsq) into one scale/shift pair so
    training-mode BN(v) == v * scale + shift.  If the row dimension was padded,
    subtract the (known, constant) contribution of the all-zero padded rows."""
    s = jnp.sum(part_stats, axis=0)                   # (2, Cp)
    ssum, ssq = s[0], s[1]
    if pad_rows and pad_row_value is not None:
        pv = pad_row_value.reshape(-1)
        ssum = ssum - pad_rows * pv
        ssq = ssq - pad_rows * pv * pv
    mean = ssum / m
    # NOTE: E[x^2]-E[x]^2 in f32; switch to a two-pass centered sum if, at
    # production scale, |mean| >> std per channel.
    var = jnp.maximum(ssq / m - mean * mean, 0.0)     # biased batch variance
    scale = gamma[0] * jax.lax.rsqrt(var + EPS)
    shift = beta[0] - mean * scale
    return scale[None, :], shift[None, :]


def block_forward(x_nchw, params, *, tm_target=1024):
    vmem_limit = _vmem_limit_bytes()

    # NCHW -> NHWC, pre-cast to bf16 (MXU operand dtype); f32 accumulation.
    x = jnp.transpose(x_nchw, (0, 2, 3, 1)).astype(jnp.bfloat16)
    N, H, W, Cin = x.shape
    Cout = params["w1"].shape[1]
    assert H % 2 == 0 and W % 2 == 0, "kernel assumes even spatial dims"
    Ho, Wo = H // 2, W // 2

    # Lane-dense output channels: pad Cout -> multiple of 128.  Cin (matmul K
    # of the Cin-wide convs) stays natural; padding it would only add bytes.
    Cp = _round_up(Cout, LANES)
    w1 = _pad_last(params["w1"], Cp).astype(jnp.bfloat16)                # (Cin, Cp)
    wr = _pad_last(params["w_res"], Cp).astype(jnp.bfloat16)             # (Cin, Cp)
    w2 = jnp.pad(params["w2"],
                 ((0, Cp - Cout), (0, Cp - Cout))).astype(jnp.bfloat16)  # (Cp, Cp)
    b1 = _pad_last(params["b1"], Cp)
    b2 = _pad_last(params["b2"], Cp)
    b0 = jnp.zeros((1, Cp), jnp.float32)           # residual conv has no bias
    g1, be1 = _pad_last(params["g1"], Cp), _pad_last(params["be1"], Cp)
    g2, be2 = _pad_last(params["g2"], Cp), _pad_last(params["be2"], Cp)
    gr, ber = _pad_last(params["g_res"], Cp), _pad_last(params["b_res"], Cp)

    # Row tiles: pick divisors of M / Mr (no padding, no per-tile masking).
    M, Mr = N * H * W, N * Ho * Wo
    tmt = max(256, min(tm_target, (8 << 20) // (4 * Cp)))
    tm1, Mp = _pick_row_tile(M, tmt)
    tmr, Mrp = _pick_row_tile(Mr, tmt)
    pad1, padr = Mp - M, Mrp - Mr

    x_flat = x.reshape(M, Cin)
    if pad1:
        x_flat = jnp.pad(x_flat, ((0, pad1), (0, 0)))
    xr = x[:, ::2, ::2, :]                              # (N, Ho, Wo, Cin) bf16
    xr_flat = xr.reshape(Mr, Cin)
    if padr:
        xr_flat = jnp.pad(xr_flat, ((0, padr), (0, 0)))

    # 1) BN1 batch statistics (stats only; conv1 is recomputed in step 3).
    st1 = _mm_stats_call(x_flat, w1, b1, tm1, vmem_limit)
    s1, t1 = _finalize_bn(st1, M, g1, be1, pad1, b1[0])

    # 2) BN_res batch statistics (stats only; residual conv recomputed in the
    #    pool kernel).  Zero-bias, zero-padded rows contribute nothing.
    str_ = _mm_stats_call(xr_flat, wr, b0, tmr, vmem_limit)
    sr, tr = _finalize_bn(str_, Mr, gr, ber)

    # 3) conv1 + BN1-apply + ReLU + conv2; y stored bf16 (+ BN2 batch stats).
    y_raw, st2 = _conv_bn_relu_conv_call(x_flat, w1, b1, s1, t1, w2, b2,
                                         tm1, vmem_limit)
    if pad1:
        u_pad = jnp.maximum(b1 * s1 + t1, 0.0).astype(jnp.bfloat16)
        v_pad = jnp.dot(u_pad, w2, preferred_element_type=jnp.float32) + b2
        s2, t2 = _finalize_bn(st2, M, g2, be2, pad1, v_pad[0])
    else:
        s2, t2 = _finalize_bn(st2, M, g2, be2)

    # 4) BN2-apply + MaxPool(3,2,1) + residual recompute + BN_res-apply + add,
    #    tiled over (image, output-row band).
    y4 = (y_raw[:M] if pad1 else y_raw).reshape(N, H, W, Cp)
    bh = _pick_band_rows(Ho, W, Cp)
    out = _pool_bn_add_call(y4, s2, t2, xr, wr, sr, tr, bh, vmem_limit)

    return jnp.transpose(out[..., :Cout], (0, 3, 1, 2))   # NHWC -> NCHW


# ---------------------------------------------------------------------------
# parameters + pure-JAX reference
# ---------------------------------------------------------------------------
def init_params(key, cin, cout):
    # Conv weights stored as (Cin, Cout) matrices (PyTorch (Cout, Cin, 1, 1)
    # squeezed + transposed).  The 3x3 depthwise weights of DSC_1/DSC_2 are not
    # materialized because the reference forward discards the depthwise output.
    ks = jax.random.split(key, 11)

    def nrm(k, shape, scale):
        return scale * jax.random.normal(k, shape, jnp.float32)

    return dict(
        w_res=nrm(ks[0], (cin, cout), 0.3),
        g_res=1.0 + nrm(ks[1], (1, cout), 0.1),
        b_res=nrm(ks[2], (1, cout), 0.1),
        w1=nrm(ks[3], (cin, cout), 0.3),
        b1=nrm(ks[4], (1, cout), 0.1),
        g1=1.0 + nrm(ks[5], (1, cout), 0.1),
        be1=nrm(ks[6], (1, cout), 0.1),
        w2=nrm(ks[7], (cout, cout), 0.3),
        b2=nrm(ks[8], (1, cout), 0.1),
        g2=1.0 + nrm(ks[9], (1, cout), 0.1),
        be2=nrm(ks[10], (1, cout), 0.1),
    )


def reference(x_nchw, p):
    """Pure-JAX reference of the PyTorch forward (training-mode BN, batch
    stats).  Matmul operands are cast to bf16 to mirror the kernel's MXU input
    precision; all other math is f32."""
    x = jnp.transpose(x_nchw, (0, 2, 3, 1))

    def mm(u, w):
        return jnp.einsum("nhwc,co->nhwo", u.astype(jnp.bfloat16),
                          w.astype(jnp.bfloat16),
                          preferred_element_type=jnp.float32)

    def bn(v, g, b):
        m = jnp.mean(v, axis=(0, 1, 2), keepdims=True)
        var = jnp.mean((v - m) ** 2, axis=(0, 1, 2), keepdims=True)
        return (v - m) * jax.lax.rsqrt(var + EPS) * g + b

    res = bn(mm(x[:, ::2, ::2, :], p["w_res"]), p["g_res"], p["b_res"])
    h = jax.nn.relu(bn(mm(x, p["w1"]) + p["b1"], p["g1"], p["be1"]))
    y = bn(mm(h, p["w2"]) + p["b2"], p["g2"], p["be2"])
    pooled = jax.lax.reduce_window(
        y, -jnp.inf, jax.lax.max,
        window_dimensions=(1, 3, 3, 1), window_strides=(1, 2, 2, 1),
        padding=((0, 0), (1, 1), (1, 1), (0, 0)))
    return jnp.transpose(res + pooled, (0, 3, 1, 2))


if __name__ == "__main__":
    N, Cin, H, W = 2, 4, 16, 16
    Cout = 2 * Cin                  # Block default: out_channels = 2 * in_channels
    Ho, Wo = H // 2, W // 2

    key = jax.random.PRNGKey(0)
    kx, kp = jax.random.split(key)
    x = jax.random.normal(kx, (N, Cin, H, W), jnp.float32)   # NCHW, like PyTorch
    params = init_params(kp, Cin, Cout)

    fwd = jax.jit(block_forward)
    out = jax.block_until_ready(fwd(x, params))
    ref = jax.block_until_ready(reference(x, params))

    assert out.shape == (N, Cout, Ho, Wo), out.shape
    err = float(jnp.max(jnp.abs(out - ref)))
    # bf16 MXU operands everywhere + bf16 storage of the conv2 output leave
    # ~1e-3-level noise on the normalized activations.
    assert err < 2e-2, f"max abs error {err}"
    print("KERNEL_OK")
</pallas_src>

<mosaic_0001>
module attributes {stable_mosaic.version = 11 : i64} {
  func.func @mm_stats_kernel(%arg0: i32, %arg1: memref<512x4xbf16, #tpu.memory_space<vmem>>, %arg2: memref<4x128xbf16, #tpu.memory_space<vmem>>, %arg3: memref<1x128xf32, #tpu.memory_space<vmem>>, %arg4: memref<1x2x128xf32, #tpu.memory_space<vmem>>) attributes {dimension_semantics = [#tpu.dimension_semantics<parallel>], iteration_bounds = array<i64: 1>, scalar_prefetch = 0 : i64, scratch_operands = 0 : i64, tpu.core_type = #tpu.core_type<tc>, window_params = [{transform_indices = @transform_0, window_bounds = array<i64: 512, 4>}, {pipeline_mode = #tpu.pipeline_mode<synchronous>, transform_indices = @transform_1, window_bounds = array<i64: 4, 128>}, {pipeline_mode = #tpu.pipeline_mode<synchronous>, transform_indices = @transform_2, window_bounds = array<i64: 1, 128>}, {transform_indices = @transform_3, window_bounds = array<i64: 1, 2, 128>}]} {
    %c0 = arith.constant 0 : index
    %c0_0 = arith.constant 0 : index
    %0 = vector.load %arg1[%c0, %c0_0] : memref<512x4xbf16, #tpu.memory_space<vmem>>, vector<512x4xbf16>
    %c0_1 = arith.constant 0 : index
    %c0_2 = arith.constant 0 : index
    %1 = vector.load %arg2[%c0_1, %c0_2] : memref<4x128xbf16, #tpu.memory_space<vmem>>, vector<4x128xbf16>
    %cst = arith.constant dense<0.000000e+00> : vector<512x128xf32>
    %2 = tpu.matmul %0, %1, %cst {dimension_numbers = #tpu.dot_dimension_numbers<[1], [0], [0], [1], [0, 0, 1, 1], [], []>} : vector<512x4xbf16>, vector<4x128xbf16>, vector<512x128xf32> -> vector<512x128xf32>
    %c0_3 = arith.constant 0 : index
    %c0_4 = arith.constant 0 : index
    %3 = vector.load %arg3[%c0_3, %c0_4] : memref<1x128xf32, #tpu.memory_space<vmem>>, vector<1x128xf32>
    %4 = vector.broadcast %3 : vector<1x128xf32> to vector<512x128xf32>
    %5 = arith.addf %2, %4 : vector<512x128xf32>
    %cst_5 = arith.constant dense<0.000000e+00> : vector<128xf32>
    %6 = vector.multi_reduction <add>, %5, %cst_5 [0] : vector<512x128xf32> to vector<128xf32>
    %7 = vector.shape_cast %6 : vector<128xf32> to vector<1x128xf32>
    %8 = arith.mulf %5, %5 : vector<512x128xf32>
    %cst_6 = arith.constant dense<0.000000e+00> : vector<128xf32>
    %9 = vector.multi_reduction <add>, %8, %cst_6 [0] : vector<512x128xf32> to vector<128xf32>
    %10 = vector.shape_cast %9 : vector<128xf32> to vector<1x128xf32>
    %11 = tpu.concatenate %7, %10 in 0 : vector<1x128xf32>, vector<1x128xf32> -> vector<2x128xf32>
    %c0_7 = arith.constant 0 : index
    %c0_8 = arith.constant 0 : index
    %c0_9 = arith.constant 0 : index
    %12 = vector.load %arg4[%c0_7, %c0_8, %c0_9] : memref<1x2x128xf32, #tpu.memory_space<vmem>>, vector<1x2x128xf32>
    %13 = vector.shape_cast %12 : vector<1x2x128xf32> to vector<2x128xf32>
    %14 = vector.shape_cast %11 : vector<2x128xf32> to vector<1x2x128xf32>
    tpu.vector_store %arg4[%c0_7, %c0_8, %c0_9], %14 {strides = array<i32>} : memref<1x2x128xf32, #tpu.memory_space<vmem>>, vector<1x2x128xf32>,
    return
  }
  func.func @transform_0(%arg0: i32) -> (i32, i32) {
    %c0_i32 = arith.constant 0 : i32
    %c0_i32_0 = arith.constant 0 : i32
    return %arg0, %c0_i32 : i32, i32
  }
  func.func @transform_1(%arg0: i32) -> (i32, i32) {
    %c0_i32 = arith.constant 0 : i32
    %c0_i32_0 = arith.constant 0 : i32
    %c0_i32_1 = arith.constant 0 : i32
    return %c0_i32, %c0_i32_0 : i32, i32
  }
  func.func @transform_2(%arg0: i32) -> (i32, i32) {
    %c0_i32 = arith.constant 0 : i32
    %c0_i32_0 = arith.constant 0 : i32
    %c0_i32_1 = arith.constant 0 : i32
    return %c0_i32, %c0_i32_0 : i32, i32
  }
  func.func @transform_3(%arg0: i32) -> (i32, i32, i32) {
    %c0_i32 = arith.constant 0 : i32
    %c0_i32_0 = arith.constant 0 : i32
    %c0_i32_1 = arith.constant 0 : i32
    return %arg0, %c0_i32, %c0_i32_0 : i32, i32, i32
  }
}

module attributes {stable_mosaic.version = 11 : i64} {
  func.func @conv_bn_relu_conv_kernel(%arg0: i32, %arg1: memref<512x4xbf16, #tpu.memory_space<vmem>>, %arg2: memref<4x128xbf16, #tpu.memory_space<vmem>>, %arg3: memref<1x128xf32, #tpu.memory_space<vmem>>, %arg4: memref<1x128xf32, #tpu.memory_space<vmem>>, %arg5: memref<1x128xf32, #tpu.memory_space<vmem>>, %arg6: memref<128x128xbf16, #tpu.memory_space<vmem>>, %arg7: memref<1x128xf32, #tpu.memory_space<vmem>>, %arg8: memref<512x128xbf16, #tpu.memory_space<vmem>>, %arg9: memref<1x2x128xf32, #tpu.memory_space<vmem>>) attributes {dimension_semantics = [#tpu.dimension_semantics<parallel>], iteration_bounds = array<i64: 1>, scalar_prefetch = 0 : i64, scratch_operands = 0 : i64, tpu.core_type = #tpu.core_type<tc>, window_params = [{transform_indices = @transform_0, window_bounds = array<i64: 512, 4>}, {pipeline_mode = #tpu.pipeline_mode<synchronous>, transform_indices = @transform_1, window_bounds = array<i64: 4, 128>}, {pipeline_mode = #tpu.pipeline_mode<synchronous>, transform_indices = @transform_2, window_bounds = array<i64: 1, 128>}, {pipeline_mode = #tpu.pipeline_mode<synchronous>, transform_indices = @transform_3, window_bounds = array<i64: 1, 128>}, {pipeline_mode = #tpu.pipeline_mode<synchronous>, transform_indices = @transform_4, window_bounds = array<i64: 1, 128>}, {pipeline_mode = #tpu.pipeline_mode<synchronous>, transform_indices = @transform_5, window_bounds = array<i64: 128, 128>}, {pipeline_mode = #tpu.pipeline_mode<synchronous>, transform_indices = @transform_6, window_bounds = array<i64: 1, 128>}, {transform_indices = @transform_7, window_bounds = array<i64: 512, 128>}, {transform_indices = @transform_8, window_bounds = array<i64: 1, 2, 128>}]} {
    %c0 = arith.constant 0 : index
    %c0_0 = arith.constant 0 : index
    %0 = vector.load %arg1[%c0, %c0_0] : memref<512x4xbf16, #tpu.memory_space<vmem>>, vector<512x4xbf16>
    %c0_1 = arith.constant 0 : index
    %c0_2 = arith.constant 0 : index
    %1 = vector.load %arg2[%c0_1, %c0_2] : memref<4x128xbf16, #tpu.memory_space<vmem>>, vector<4x128xbf16>
    %cst = arith.constant dense<0.000000e+00> : vector<512x128xf32>
    %2 = tpu.matmul %0, %1, %cst {dimension_numbers = #tpu.dot_dimension_numbers<[1], [0], [0], [1], [0, 0, 1, 1], [], []>} : vector<512x4xbf16>, vector<4x128xbf16>, vector<512x128xf32> -> vector<512x128xf32>
    %c0_3 = arith.constant 0 : index
    %c0_4 = arith.constant 0 : index
    %3 = vector.load %arg3[%c0_3, %c0_4] : memref<1x128xf32, #tpu.memory_space<vmem>>, vector<1x128xf32>
    %4 = vector.broadcast %3 : vector<1x128xf32> to vector<512x128xf32>
    %5 = arith.addf %2, %4 : vector<512x128xf32>
    %c0_5 = arith.constant 0 : index
    %c0_6 = arith.constant 0 : index
    %6 = vector.load %arg4[%c0_5, %c0_6] : memref<1x128xf32, #tpu.memory_space<vmem>>, vector<1x128xf32>
    %7 = vector.broadcast %6 : vector<1x128xf32> to vector<512x128xf32>
    %8 = arith.mulf %5, %7 : vector<512x128xf32>
    %c0_7 = arith.constant 0 : index
    %c0_8 = arith.constant 0 : index
    %9 = vector.load %arg5[%c0_7, %c0_8] : memref<1x128xf32, #tpu.memory_space<vmem>>, vector<1x128xf32>
    %10 = vector.broadcast %9 : vector<1x128xf32> to vector<512x128xf32>
    %11 = arith.addf %8, %10 : vector<512x128xf32>
    %cst_9 = arith.constant 0.000000e+00 : f32
    %12 = vector.broadcast %cst_9 : f32 to vector<512x128xf32>
    %13 = arith.maximumf %11, %12 : vector<512x128xf32>
    %14 = arith.truncf %13 : vector<512x128xf32> to vector<512x128xbf16>
    %c0_10 = arith.constant 0 : index
    %c0_11 = arith.constant 0 : index
    %15 = vector.load %arg6[%c0_10, %c0_11] : memref<128x128xbf16, #tpu.memory_space<vmem>>, vector<128x128xbf16>
    %cst_12 = arith.constant dense<0.000000e+00> : vector<512x128xf32>
    %16 = tpu.matmul %14, %15, %cst_12 {dimension_numbers = #tpu.dot_dimension_numbers<[1], [0], [0], [1], [0, 0, 1, 1], [], []>} : vector<512x128xbf16>, vector<128x128xbf16>, vector<512x128xf32> -> vector<512x128xf32>
    %c0_13 = arith.constant 0 : index
    %c0_14 = arith.constant 0 : index
    %17 = vector.load %arg7[%c0_13, %c0_14] : memref<1x128xf32, #tpu.memory_space<vmem>>, vector<1x128xf32>
    %18 = vector.broadcast %17 : vector<1x128xf32> to vector<512x128xf32>
    %19 = arith.addf %16, %18 : vector<512x128xf32>
    %20 = arith.truncf %19 : vector<512x128xf32> to vector<512x128xbf16>
    %c0_15 = arith.constant 0 : index
    %c0_16 = arith.constant 0 : index
    %21 = vector.load %arg8[%c0_15, %c0_16] : memref<512x128xbf16, #tpu.memory_space<vmem>>, vector<512x128xbf16>
    tpu.vector_store %arg8[%c0_15, %c0_16], %20 {strides = array<i32>} : memref<512x128xbf16, #tpu.memory_space<vmem>>, vector<512x128xbf16>,
    %cst_17 = arith.constant dense<0.000000e+00> : vector<128xf32>
    %22 = vector.multi_reduction <add>, %19, %cst_17 [0] : vector<512x128xf32> to vector<128xf32>
    %23 = vector.shape_cast %22 : vector<128xf32> to vector<1x128xf32>
    %24 = arith.mulf %19, %19 : vector<512x128xf32>
    %cst_18 = arith.constant dense<0.000000e+00> : vector<128xf32>
    %25 = vector.multi_reduction <add>, %24, %cst_18 [0] : vector<512x128xf32> to vector<128xf32>
    %26 = vector.shape_cast %25 : vector<128xf32> to vector<1x128xf32>
    %27 = tpu.concatenate %23, %26 in 0 : vector<1x128xf32>, vector<1x128xf32> -> vector<2x128xf32>
    %c0_19 = arith.constant 0 : index
    %c0_20 = arith.constant 0 : index
    %c0_21 = arith.constant 0 : index
    %28 = vector.load %arg9[%c0_19, %c0_20, %c0_21] : memref<1x2x128xf32, #tpu.memory_space<vmem>>, vector<1x2x128xf32>
    %29 = vector.shape_cast %28 : vector<1x2x128xf32> to vector<2x128xf32>
    %30 = vector.shape_cast %27 : vector<2x128xf32> to vector<1x2x128xf32>
    tpu.vector_store %arg9[%c0_19, %c0_20, %c0_21], %30 {strides = array<i32>} : memref<1x2x128xf32, #tpu.memory_space<vmem>>, vector<1x2x128xf32>,
    return
  }
  func.func @transform_0(%arg0: i32) -> (i32, i32) {
    %c0_i32 = arith.constant 0 : i32
    %c0_i32_0 = arith.constant 0 : i32
    return %arg0, %c0_i32 : i32, i32
  }
  func.func @transform_1(%arg0: i32) -> (i32, i32) {
    %c0_i32 = arith.constant 0 : i32
    %c0_i32_0 = arith.constant 0 : i32
    %c0_i32_1 = arith.constant 0 : i32
    return %c0_i32, %c0_i32_0 : i32, i32
  }
  func.func @transform_2(%arg0: i32) -> (i32, i32) {
    %c0_i32 = arith.constant 0 : i32
    %c0_i32_0 = arith.constant 0 : i32
    %c0_i32_1 = arith.constant 0 : i32
    return %c0_i32, %c0_i32_0 : i32, i32
  }
  func.func @transform_3(%arg0: i32) -> (i32, i32) {
    %c0_i32 = arith.constant 0 : i32
    %c0_i32_0 = arith.constant 0 : i32
    %c0_i32_1 = arith.constant 0 : i32
    return %c0_i32, %c0_i32_0 : i32, i32
  }
  func.func @transform_4(%arg0: i32) -> (i32, i32) {
    %c0_i32 = arith.constant 0 : i32
    %c0_i32_0 = arith.constant 0 : i32
    %c0_i32_1 = arith.constant 0 : i32
    return %c0_i32, %c0_i32_0 : i32, i32
  }
  func.func @transform_5(%arg0: i32) -> (i32, i32) {
    %c0_i32 = arith.constant 0 : i32
    %c0_i32_0 = arith.constant 0 : i32
    %c0_i32_1 = arith.constant 0 : i32
    return %c0_i32, %c0_i32_0 : i32, i32
  }
  func.func @transform_6(%arg0: i32) -> (i32, i32) {
    %c0_i32 = arith.constant 0 : i32
    %c0_i32_0 = arith.constant 0 : i32
    %c0_i32_1 = arith.constant 0 : i32
    return %c0_i32, %c0_i32_0 : i32, i32
  }
  func.func @transform_7(%arg0: i32) -> (i32, i32) {
    %c0_i32 = arith.constant 0 : i32
    %c0_i32_0 = arith.constant 0 : i32
    return %arg0, %c0_i32 : i32, i32
  }
  func.func @transform_8(%arg0: i32) -> (i32, i32, i32) {
    %c0_i32 = arith.constant 0 : i32
    %c0_i32_0 = arith.constant 0 : i32
    %c0_i32_1 = arith.constant 0 : i32
    return %arg0, %c0_i32, %c0_i32_0 : i32, i32, i32
  }
}

module attributes {stable_mosaic.version = 11 : i64} {
  func.func @mm_stats_kernel(%arg0: i32, %arg1: memref<128x4xbf16, #tpu.memory_space<vmem>>, %arg2: memref<4x128xbf16, #tpu.memory_space<vmem>>, %arg3: memref<1x128xf32, #tpu.memory_space<vmem>>, %arg4: memref<1x2x128xf32, #tpu.memory_space<vmem>>) attributes {dimension_semantics = [#tpu.dimension_semantics<parallel>], iteration_bounds = array<i64: 1>, scalar_prefetch = 0 : i64, scratch_operands = 0 : i64, tpu.core_type = #tpu.core_type<tc>, window_params = [{transform_indices = @transform_0, window_bounds = array<i64: 128, 4>}, {pipeline_mode = #tpu.pipeline_mode<synchronous>, transform_indices = @transform_1, window_bounds = array<i64: 4, 128>}, {pipeline_mode = #tpu.pipeline_mode<synchronous>, transform_indices = @transform_2, window_bounds = array<i64: 1, 128>}, {transform_indices = @transform_3, window_bounds = array<i64: 1, 2, 128>}]} {
    %c0 = arith.constant 0 : index
    %c0_0 = arith.constant 0 : index
    %0 = vector.load %arg1[%c0, %c0_0] : memref<128x4xbf16, #tpu.memory_space<vmem>>, vector<128x4xbf16>
    %c0_1 = arith.constant 0 : index
    %c0_2 = arith.constant 0 : index
    %1 = vector.load %arg2[%c0_1, %c0_2] : memref<4x128xbf16, #tpu.memory_space<vmem>>, vector<4x128xbf16>
    %cst = arith.constant dense<0.000000e+00> : vector<128x128xf32>
    %2 = tpu.matmul %0, %1, %cst {dimension_numbers = #tpu.dot_dimension_numbers<[1], [0], [0], [1], [0, 0, 1, 1], [], []>} : vector<128x4xbf16>, vector<4x128xbf16>, vector<128x128xf32> -> vector<128x128xf32>
    %c0_3 = arith.constant 0 : index
    %c0_4 = arith.constant 0 : index
    %3 = vector.load %arg3[%c0_3, %c0_4] : memref<1x128xf32, #tpu.memory_space<vmem>>, vector<1x128xf32>
    %4 = vector.broadcast %3 : vector<1x128xf32> to vector<128x128xf32>
    %5 = arith.addf %2, %4 : vector<128x128xf32>
    %cst_5 = arith.constant dense<0.000000e+00> : vector<128xf32>
    %6 = vector.multi_reduction <add>, %5, %cst_5 [0] : vector<128x128xf32> to vector<128xf32>
    %7 = vector.shape_cast %6 : vector<128xf32> to vector<1x128xf32>
    %8 = arith.mulf %5, %5 : vector<128x128xf32>
    %cst_6 = arith.constant dense<0.000000e+00> : vector<128xf32>
    %9 = vector.multi_reduction <add>, %8, %cst_6 [0] : vector<128x128xf32> to vector<128xf32>
    %10 = vector.shape_cast %9 : vector<128xf32> to vector<1x128xf32>
    %11 = tpu.concatenate %7, %10 in 0 : vector<1x128xf32>, vector<1x128xf32> -> vector<2x128xf32>
    %c0_7 = arith.constant 0 : index
    %c0_8 = arith.constant 0 : index
    %c0_9 = arith.constant 0 : index
    %12 = vector.load %arg4[%c0_7, %c0_8, %c0_9] : memref<1x2x128xf32, #tpu.memory_space<vmem>>, vector<1x2x128xf32>
    %13 = vector.shape_cast %12 : vector<1x2x128xf32> to vector<2x128xf32>
    %14 = vector.shape_cast %11 : vector<2x128xf32> to vector<1x2x128xf32>
    tpu.vector_store %arg4[%c0_7, %c0_8, %c0_9], %14 {strides = array<i32>} : memref<1x2x128xf32, #tpu.memory_space<vmem>>, vector<1x2x128xf32>,
    return
  }
  func.func @transform_0(%arg0: i32) -> (i32, i32) {
    %c0_i32 = arith.constant 0 : i32
    %c0_i32_0 = arith.constant 0 : i32
    return %arg0, %c0_i32 : i32, i32
  }
  func.func @transform_1(%arg0: i32) -> (i32, i32) {
    %c0_i32 = arith.constant 0 : i32
    %c0_i32_0 = arith.constant 0 : i32
    %c0_i32_1 = arith.constant 0 : i32
    return %c0_i32, %c0_i32_0 : i32, i32
  }
  func.func @transform_2(%arg0: i32) -> (i32, i32) {
    %c0_i32 = arith.constant 0 : i32
    %c0_i32_0 = arith.constant 0 : i32
    %c0_i32_1 = arith.constant 0 : i32
    return %c0_i32, %c0_i32_0 : i32, i32
  }
  func.func @transform_3(%arg0: i32) -> (i32, i32, i32) {
    %c0_i32 = arith.constant 0 : i32
    %c0_i32_0 = arith.constant 0 : i32
    %c0_i32_1 = arith.constant 0 : i32
    return %arg0, %c0_i32, %c0_i32_0 : i32, i32, i32
  }
}

module attributes {stable_mosaic.version = 11 : i64} {
  func.func @pool_bn_add_kernel(%arg0: i32, %arg1: i32, %arg2: memref<1x8x16x128xbf16, #tpu.memory_space<vmem>>, %arg3: memref<1x1x16x128xbf16, #tpu.memory_space<vmem>>, %arg4: memref<1x128xf32, #tpu.memory_space<vmem>>, %arg5: memref<1x128xf32, #tpu.memory_space<vmem>>, %arg6: memref<1x4x8x4xbf16, #tpu.memory_space<vmem>>, %arg7: memref<4x128xbf16, #tpu.memory_space<vmem>>, %arg8: memref<1x128xf32, #tpu.memory_space<vmem>>, %arg9: memref<1x128xf32, #tpu.memory_space<vmem>>, %arg10: memref<1x4x8x128xf32, #tpu.memory_space<vmem>>, %arg11: memref<4x16x128xf32, #tpu.memory_space<vmem>>) attributes {dimension_semantics = [#tpu.dimension_semantics<parallel>, #tpu.dimension_semantics<parallel>], iteration_bounds = array<i64: 2, 2>, scalar_prefetch = 0 : i64, scratch_operands = 1 : i64, tpu.core_type = #tpu.core_type<tc>, window_params = [{transform_indices = @transform_0, window_bounds = array<i64: 1, 8, 16, 128>}, {transform_indices = @transform_1, window_bounds = array<i64: 1, 1, 16, 128>}, {pipeline_mode = #tpu.pipeline_mode<synchronous>, transform_indices = @transform_2, window_bounds = array<i64: 1, 128>}, {pipeline_mode = #tpu.pipeline_mode<synchronous>, transform_indices = @transform_3, window_bounds = array<i64: 1, 128>}, {transform_indices = @transform_4, window_bounds = array<i64: 1, 4, 8, 4>}, {pipeline_mode = #tpu.pipeline_mode<synchronous>, transform_indices = @transform_5, window_bounds = array<i64: 4, 128>}, {pipeline_mode = #tpu.pipeline_mode<synchronous>, transform_indices = @transform_6, window_bounds = array<i64: 1, 128>}, {pipeline_mode = #tpu.pipeline_mode<synchronous>, transform_indices = @transform_7, window_bounds = array<i64: 1, 128>}, {transform_indices = @transform_8, window_bounds = array<i64: 1, 4, 8, 128>}]} {
    %c0 = arith.constant 0 : index
    %c0_0 = arith.constant 0 : index
    %0 = vector.load %arg4[%c0, %c0_0] : memref<1x128xf32, #tpu.memory_space<vmem>>, vector<1x128xf32>
    %c0_1 = arith.constant 0 : index
    %c0_2 = arith.constant 0 : index
    %1 = vector.load %arg5[%c0_1, %c0_2] : memref<1x128xf32, #tpu.memory_space<vmem>>, vector<1x128xf32>
    %c0_3 = arith.constant 0 : index
    %c0_4 = arith.constant 0 : index
    %c0_5 = arith.constant 0 : index
    %c0_6 = arith.constant 0 : index
    %2 = vector.load %arg2[%c0_3, %c0_4, %c0_5, %c0_6] : memref<1x8x16x128xbf16, #tpu.memory_space<vmem>>, vector<1x8x16x128xbf16>
    %3 = vector.shape_cast %2 : vector<1x8x16x128xbf16> to vector<8x16x128xbf16>
    %4 = arith.extf %3 : vector<8x16x128xbf16> to vector<8x16x128xf32>
    %5 = vector.shape_cast %0 : vector<1x128xf32> to vector<1x1x128xf32>
    %6 = vector.broadcast %5 : vector<1x1x128xf32> to vector<8x16x128xf32>
    %7 = arith.mulf %4, %6 : vector<8x16x128xf32>
    %8 = vector.shape_cast %1 : vector<1x128xf32> to vector<1x1x128xf32>
    %9 = vector.broadcast %8 : vector<1x1x128xf32> to vector<8x16x128xf32>
    %10 = arith.addf %7, %9 : vector<8x16x128xf32>
    %11 = vector.shape_cast %10 : vector<8x16x128xf32> to vector<4x2x16x128xf32>
    %12 = vector.extract_strided_slice %11 {offsets = [0, 0, 0, 0], sizes = [4, 1, 16, 128], strides = [1, 1, 1, 1]} : vector<4x2x16x128xf32> to vector<4x1x16x128xf32>
    %13 = vector.shape_cast %12 : vector<4x1x16x128xf32> to vector<4x16x128xf32>
    %14 = vector.extract_strided_slice %11 {offsets = [0, 1, 0, 0], sizes = [4, 1, 16, 128], strides = [1, 1, 1, 1]} : vector<4x2x16x128xf32> to vector<4x1x16x128xf32>
    %15 = vector.shape_cast %14 : vector<4x1x16x128xf32> to vector<4x16x128xf32>
    %c0_7 = arith.constant 0 : index
    %c0_8 = arith.constant 0 : index
    %c0_9 = arith.constant 0 : index
    %c0_10 = arith.constant 0 : index
    %16 = vector.load %arg3[%c0_7, %c0_8, %c0_9, %c0_10] : memref<1x1x16x128xbf16, #tpu.memory_space<vmem>>, vector<1x1x16x128xbf16>
    %17 = vector.shape_cast %16 : vector<1x1x16x128xbf16> to vector<1x16x128xbf16>
    %18 = arith.extf %17 : vector<1x16x128xbf16> to vector<1x16x128xf32>
    %19 = vector.shape_cast %0 : vector<1x128xf32> to vector<1x1x128xf32>
    %20 = vector.broadcast %19 : vector<1x1x128xf32> to vector<1x16x128xf32>
    %21 = arith.mulf %18, %20 : vector<1x16x128xf32>
    %22 = vector.shape_cast %1 : vector<1x128xf32> to vector<1x1x128xf32>
    %23 = vector.broadcast %22 : vector<1x1x128xf32> to vector<1x16x128xf32>
    %24 = arith.addf %21, %23 : vector<1x16x128xf32>
    %c0_i32 = arith.constant 0 : i32
    %25 = arith.cmpi eq, %arg1, %c0_i32 : i32
    %cst = arith.constant 0xFF800000 : f32
    %26 = vector.broadcast %cst : f32 to vector<1x16x128xf32>
    %27 = arith.select %25, %26, %24 : vector<1x16x128xf32>
    %28 = vector.extract_strided_slice %15 {offsets = [0, 0, 0], sizes = [3, 16, 128], strides = [1, 1, 1]} : vector<4x16x128xf32> to vector<3x16x128xf32>
    %29 = tpu.concatenate %27, %28 in 0 : vector<1x16x128xf32>, vector<3x16x128xf32> -> vector<4x16x128xf32>
    %30 = arith.maximumf %13, %15 : vector<4x16x128xf32>
    %31 = arith.maximumf %30, %29 : vector<4x16x128xf32>
    %c0_11 = arith.constant 0 : index
    %c0_12 = arith.constant 0 : index
    %c0_13 = arith.constant 0 : index
    %32 = vector.load %arg11[%c0_11, %c0_12, %c0_13] : memref<4x16x128xf32, #tpu.memory_space<vmem>>, vector<4x16x128xf32>
    tpu.vector_store %arg11[%c0_11, %c0_12, %c0_13], %31 {strides = array<i32>} : memref<4x16x128xf32, #tpu.memory_space<vmem>>, vector<4x16x128xf32>,
    %c0_14 = arith.constant 0 : index
    %c0_15 = arith.constant 0 : index
    %c0_16 = arith.constant 0 : index
    %33 = tpu.strided_load %arg11[%c0_14, %c0_15, %c0_16] {strides = array<i32: 1, 2, 1>} : memref<4x16x128xf32, #tpu.memory_space<vmem>>, vector<4x8x128xf32>
    %c0_17 = arith.constant 0 : index
    %c1 = arith.constant 1 : index
    %c0_18 = arith.constant 0 : index
    %34 = tpu.strided_load %arg11[%c0_17, %c1, %c0_18] {strides = array<i32: 1, 2, 1>} : memref<4x16x128xf32, #tpu.memory_space<vmem>>, vector<4x8x128xf32>
    %cst_19 = arith.constant 0xFF800000 : f32
    %35 = vector.broadcast %cst_19 : f32 to vector<4x1x128xf32>
    %36 = vector.extract_strided_slice %34 {offsets = [0, 0, 0], sizes = [4, 7, 128], strides = [1, 1, 1]} : vector<4x8x128xf32> to vector<4x7x128xf32>
    %37 = tpu.concatenate %35, %36 in 1 : vector<4x1x128xf32>, vector<4x7x128xf32> -> vector<4x8x128xf32>
    %38 = arith.maximumf %33, %34 : vector<4x8x128xf32>
    %39 = arith.maximumf %38, %37 : vector<4x8x128xf32>
    %c0_20 = arith.constant 0 : index
    %c0_21 = arith.constant 0 : index
    %c0_22 = arith.constant 0 : index
    %c0_23 = arith.constant 0 : index
    %40 = vector.load %arg6[%c0_20, %c0_21, %c0_22, %c0_23] : memref<1x4x8x4xbf16, #tpu.memory_space<vmem>>, vector<1x4x8x4xbf16>
    %41 = vector.shape_cast %40 : vector<1x4x8x4xbf16> to vector<4x8x4xbf16>
    %42 = vector.shape_cast %41 : vector<4x8x4xbf16> to vector<32x4xbf16>
    %c0_24 = arith.constant 0 : index
    %c0_25 = arith.constant 0 : index
    %43 = vector.load %arg7[%c0_24, %c0_25] : memref<4x128xbf16, #tpu.memory_space<vmem>>, vector<4x128xbf16>
    %cst_26 = arith.constant dense<0.000000e+00> : vector<32x128xf32>
    %44 = tpu.matmul %42, %43, %cst_26 {dimension_numbers = #tpu.dot_dimension_numbers<[1], [0], [0], [1], [0, 0, 1, 1], [], []>} : vector<32x4xbf16>, vector<4x128xbf16>, vector<32x128xf32> -> vector<32x128xf32>
    %45 = vector.shape_cast %44 : vector<32x128xf32> to vector<4x8x128xf32>
    %c0_27 = arith.constant 0 : index
    %c0_28 = arith.constant 0 : index
    %46 = vector.load %arg8[%c0_27, %c0_28] : memref<1x128xf32, #tpu.memory_space<vmem>>, vector<1x128xf32>
    %47 = vector.shape_cast %46 : vector<1x128xf32> to vector<1x1x128xf32>
    %48 = vector.broadcast %47 : vector<1x1x128xf32> to vector<4x8x128xf32>
    %49 = arith.mulf %45, %48 : vector<4x8x128xf32>
    %c0_29 = arith.constant 0 : index
    %c0_30 = arith.constant 0 : index
    %50 = vector.load %arg9[%c0_29, %c0_30] : memref<1x128xf32, #tpu.memory_space<vmem>>, vector<1x128xf32>
    %51 = vector.shape_cast %50 : vector<1x128xf32> to vector<1x1x128xf32>
    %52 = vector.broadcast %51 : vector<1x1x128xf32> to vector<4x8x128xf32>
    %53 = arith.addf %49, %52 : vector<4x8x128xf32>
    %54 = arith.addf %39, %53 : vector<4x8x128xf32>
    %c0_31 = arith.constant 0 : index
    %c0_32 = arith.constant 0 : index
    %c0_33 = arith.constant 0 : index
    %c0_34 = arith.constant 0 : index
    %55 = vector.load %arg10[%c0_31, %c0_32, %c0_33, %c0_34] : memref<1x4x8x128xf32, #tpu.memory_space<vmem>>, vector<1x4x8x128xf32>
    %56 = vector.shape_cast %55 : vector<1x4x8x128xf32> to vector<4x8x128xf32>
    %57 = vector.shape_cast %54 : vector<4x8x128xf32> to vector<1x4x8x128xf32>
    tpu.vector_store %arg10[%c0_31, %c0_32, %c0_33, %c0_34], %57 {strides = array<i32>} : memref<1x4x8x128xf32, #tpu.memory_space<vmem>>, vector<1x4x8x128xf32>,
    return
  }
  func.func @transform_0(%arg0: i32, %arg1: i32) -> (i32, i32, i32, i32) {
    %c0_i32 = arith.constant 0 : i32
    %c0_i32_0 = arith.constant 0 : i32
    %c0_i32_1 = arith.constant 0 : i32
    return %arg0, %arg1, %c0_i32, %c0_i32_0 : i32, i32, i32, i32
  }
  func.func @transform_1(%arg0: i32, %arg1: i32) -> (i32, i32, i32, i32) {
    %c8_i32 = arith.constant 8 : i32
    %0 = arith.muli %c8_i32, %arg1 : i32
    %c1_i32 = arith.constant 1 : i32
    %1 = arith.subi %0, %c1_i32 : i32
    %c0_i32 = arith.constant 0 : i32
    %2 = arith.maxsi %1, %c0_i32 : i32
    %c0_i32_0 = arith.constant 0 : i32
    %c0_i32_1 = arith.constant 0 : i32
    %c0_i32_2 = arith.constant 0 : i32
    return %arg0, %2, %c0_i32_0, %c0_i32_1 : i32, i32, i32, i32
  }
  func.func @transform_2(%arg0: i32, %arg1: i32) -> (i32, i32) {
    %c0_i32 = arith.constant 0 : i32
    %c0_i32_0 = arith.constant 0 : i32
    %c0_i32_1 = arith.constant 0 : i32
    return %c0_i32, %c0_i32_0 : i32, i32
  }
  func.func @transform_3(%arg0: i32, %arg1: i32) -> (i32, i32) {
    %c0_i32 = arith.constant 0 : i32
    %c0_i32_0 = arith.constant 0 : i32
    %c0_i32_1 = arith.constant 0 : i32
    return %c0_i32, %c0_i32_0 : i32, i32
  }
  func.func @transform_4(%arg0: i32, %arg1: i32) -> (i32, i32, i32, i32) {
    %c0_i32 = arith.constant 0 : i32
    %c0_i32_0 = arith.constant 0 : i32
    %c0_i32_1 = arith.constant 0 : i32
    return %arg0, %arg1, %c0_i32, %c0_i32_0 : i32, i32, i32, i32
  }
  func.func @transform_5(%arg0: i32, %arg1: i32) -> (i32, i32) {
    %c0_i32 = arith.constant 0 : i32
    %c0_i32_0 = arith.constant 0 : i32
    %c0_i32_1 = arith.constant 0 : i32
    return %c0_i32, %c0_i32_0 : i32, i32
  }
  func.func @transform_6(%arg0: i32, %arg1: i32) -> (i32, i32) {
    %c0_i32 = arith.constant 0 : i32
    %c0_i32_0 = arith.constant 0 : i32
    %c0_i32_1 = arith.constant 0 : i32
    return %c0_i32, %c0_i32_0 : i32, i32
  }
  func.func @transform_7(%arg0: i32, %arg1: i32) -> (i32, i32) {
    %c0_i32 = arith.constant 0 : i32
    %c0_i32_0 = arith.constant 0 : i32
    %c0_i32_1 = arith.constant 0 : i32
    return %c0_i32, %c0_i32_0 : i32, i32
  }
  func.func @transform_8(%arg0: i32, %arg1: i32) -> (i32, i32, i32, i32) {
    %c0_i32 = arith.constant 0 : i32
    %c0_i32_0 = arith.constant 0 : i32
    %c0_i32_1 = arith.constant 0 : i32
    return %arg0, %arg1, %c0_i32, %c0_i32_0 : i32, i32, i32, i32
  }
}

</mosaic_0001>

<llo_original>
// kernel: block_forward.5
$region0: #{block_forward.5}
  #allocation0 [shape = 'u32[]', space=smem, size = 0x4, offset = 0x4, fixed_abs, tag = 'smem constant byte address 0x4 - core index']
  #allocation1 [shape = 'u32[144,128]{1,0:T(1,128)}', space=vmem, size = 0x12000, scoped, tag = 'internal scratch']
  %s0 = inlined_call_operand.vmem [shape: bf16[128,4], index: 0, kind: input, shape index: {}]
  %s1 = inlined_call_operand.vmem [shape: bf16[4,128], index: 1, kind: input, shape index: {}]
  %s2 = inlined_call_operand.vmem [shape: f32[1,128], index: 2, kind: input, shape index: {}]
  %s3 = inlined_call_operand.vmem [shape: f32[1,2,128], index: 3, kind: output, shape index: {}]
  %s4 = sld [smem:[#allocation0]]
  $region22: #{block_forward.5} parent=0
    _
  %s6 = ssub.s32 1, %s4
  %s7 = scalar_select 0, %s6, %s4
  // Predicated region
  $region2: #{block_forward.5} parent=0 // pred_check
    _
  $region3: #{block_forward.5} parent=0 // pred_check_branch
    %9 = sbr.rel (0) target = $region5
  $region4: #{block_forward.5} parent=0 // pred_region
    _
  $region5: #{block_forward.5} parent=0 // pred_fallthru
    _
  // Predicated region
  $region6: #{block_forward.5} parent=0 // pred_check
    _
  $region7: #{block_forward.5} parent=0 // pred_check_branch
    %11 = sbr.rel (0) target = $region9
  $region8: #{block_forward.5} parent=0 // pred_region
    _
  $region9: #{block_forward.5} parent=0 // pred_fallthru
    _
  // Predicated region
  $region10: #{block_forward.5} parent=0 // pred_check
    _
  $region11: #{block_forward.5} parent=0 // pred_check_branch
    %13 = sbr.rel (0) target = $region13
  $region12: #{block_forward.5} parent=0 // pred_region
    _
  $region13: #{block_forward.5} parent=0 // pred_fallthru
    _
  %v15 = vld [vmem:[%s0] sm:$0xf]
  %v16 = vld [vmem:[%s0 + $0x4] sm:$0xf]
  %v17 = vld [vmem:[%s0 + $0x8] sm:$0xf]
  %v18 = vld [vmem:[%s0 + $0xc] sm:$0xf]
  %v19 = vld [vmem:[%s0 + $0x10] sm:$0xf]
  %v20 = vld [vmem:[%s0 + $0x14] sm:$0xf]
  %v21 = vld [vmem:[%s0 + $0x18] sm:$0xf]
  %v22 = vld [vmem:[%s0 + $0x1c] sm:$0xf]
  %v23 = vld [vmem:[%s0 + $0x20] sm:$0xf]
  %v24 = vld [vmem:[%s0 + $0x24] sm:$0xf]
  %v25 = vld [vmem:[%s0 + $0x28] sm:$0xf]
  %v26 = vld [vmem:[%s0 + $0x2c] sm:$0xf]
  %v27 = vld [vmem:[%s0 + $0x30] sm:$0xf]
  %v28 = vld [vmem:[%s0 + $0x34] sm:$0xf]
  %v29 = vld [vmem:[%s0 + $0x38] sm:$0xf]
  %v30 = vld [vmem:[%s0 + $0x3c] sm:$0xf]
  %v31 = vld [vmem:[%s1] sm:$0x3]
  %v32 = vld [vmem:[%s2] sm:$0x1]
  %v34 = vlaneseq
  %v35 = vshrl.u32 %v34, 7
  %v36 = vsub.s32 0, %v35
  %v37 = vrot.slane %v32, %v36
  %v55 = vunpack.c.l.b16 %v15
  %v56 = vunpack.c.l.b16 %v16
  %v57 = vunpack.c.l.b16 %v17
  %v58 = vunpack.c.l.b16 %v18
  %v59 = vunpack.c.l.b16 %v19
  %v60 = vunpack.c.l.b16 %v20
  %v61 = vunpack.c.l.b16 %v21
  %v62 = vunpack.c.l.b16 %v22
  %v63 = vunpack.c.l.b16 %v23
  %v64 = vunpack.c.l.b16 %v24
  %v65 = vunpack.c.l.b16 %v25
  %v66 = vunpack.c.l.b16 %v26
  %v67 = vunpack.c.l.b16 %v27
  %v68 = vunpack.c.l.b16 %v28
  %v69 = vunpack.c.l.b16 %v29
  %v70 = vunpack.c.l.b16 %v30
  %v71 = vpack.c.b16 %v56, %v55
  %v72 = vpack.c.b16 %v58, %v57
  %v73 = vpack.c.b16 %v60, %v59
  %v74 = vpack.c.b16 %v62, %v61
  %v75 = vpack.c.b16 %v64, %v63
  %v76 = vpack.c.b16 %v66, %v65
  %v77 = vpack.c.b16 %v68, %v67
  %v78 = vpack.c.b16 %v70, %v69
  %vm79 = vcmask 31744
  %v81 = vsel %vm79, %v71, 0
  %v84 = vsel %vm79, %v72, 0
  %v87 = vsel %vm79, %v73, 0
  %v90 = vsel %vm79, %v74, 0
  %v93 = vsel %vm79, %v75, 0
  %v96 = vsel %vm79, %v76, 0
  %v99 = vsel %vm79, %v77, 0
  %v102 = vsel %vm79, %v78, 0
  %vm104 = vcmask 1041408
  %v106 = vsel %vm104, %v31, 0
  %108 = vmatprep.subr.bf16.mxu0 0
  %109 = vmatpush1.bf16.msra.mxu0 %v106
  %110 = vmatprep.subr.bf16.mxu0 0
  %111 = vmatpush1.bf16.msra.mxu0 0
  %112 = vmatprep.subr.bf16.mxu0 0
  %113 = vmatpush1.bf16.msra.mxu0 0
  %114 = vmatprep.subr.bf16.mxu0 0
  %115 = vmatpush1.bf16.msra.mxu0 0
  %116 = vmatprep.subr.bf16.mxu0 0
  %117 = vmatpush1.bf16.msra.mxu0 0
  %118 = vmatprep.subr.bf16.mxu0 0
  %119 = vmatpush1.bf16.msra.mxu0 0
  %120 = vmatprep.subr.bf16.mxu0 0
  %121 = vmatpush1.bf16.msra.mxu0 0
  %122 = vmatprep.subr.bf16.mxu0 0
  %123 = vmatpush1.bf16.msra.mxu0 0
  %124 = vmatprep.subr.bf16.mxu0 0
  %125 = vmatpush1.bf16.msra.mxu0 0
  %126 = vmatprep.subr.bf16.mxu0 0
  %127 = vmatpush1.bf16.msra.mxu0 0
  %128 = vmatprep.subr.bf16.mxu0 0
  %129 = vmatpush1.bf16.msra.mxu0 0
  %130 = vmatprep.subr.bf16.mxu0 0
  %131 = vmatpush1.bf16.msra.mxu0 0
  %132 = vmatprep.subr.bf16.mxu0 0
  %133 = vmatpush1.bf16.msra.mxu0 0
  %134 = vmatprep.subr.bf16.mxu0 0
  %135 = vmatpush1.bf16.msra.mxu0 0
  %136 = vmatprep.subr.bf16.mxu0 0
  %137 = vmatpush1.bf16.msra.mxu0 0
  %138 = vmatprep.subr.bf16.mxu0 0
  %139 = vmatpush1.bf16.msra.mxu0 0
  %140 = vmatprep.mubr.bf16.mxu0 0
  %141 = vmatmul.mubr.bf16.gmra.mrb[0].mxu0 %v81
  %v142 = vpop.f32.mrb[0].mxu0
  %v143 = vadd.f32 %v37, %v142
  %v144 = vpop.f32.mrb[0].mxu0
  %v145 = vpop.f32.mrb[0].mxu0
  %v146 = vadd.f32 %v37, %v145
  %v147 = vpop.f32.mrb[0].mxu0
  %148 = vmatprep.mubr.bf16.mxu0 0
  %149 = vmatmul.mubr.bf16.gmra.mrb[0].mxu0 %v84
  %v150 = vpop.f32.mrb[0].mxu0
  %v151 = vadd.f32 %v37, %v150
  %v152 = vpop.f32.mrb[0].mxu0
  %v153 = vpop.f32.mrb[0].mxu0
  %v154 = vadd.f32 %v37, %v153
  %v155 = vpop.f32.mrb[0].mxu0
  %156 = vmatprep.mubr.bf16.mxu0 0
  %157 = vmatmul.mubr.bf16.gmra.mrb[0].mxu0 %v87
  %v158 = vpop.f32.mrb[0].mxu0
  %v159 = vadd.f32 %v37, %v158
  %v160 = vpop.f32.mrb[0].mxu0
  %v161 = vpop.f32.mrb[0].mxu0
  %v162 = vadd.f32 %v37, %v161
  %v163 = vpop.f32.mrb[0].mxu0
  %164 = vmatprep.mubr.bf16.mxu0 0
  %165 = vmatmul.mubr.bf16.gmra.mrb[0].mxu0 %v90
  %v166 = vpop.f32.mrb[0].mxu0
  %v167 = vadd.f32 %v37, %v166
  %v168 = vpop.f32.mrb[0].mxu0
  %v169 = vpop.f32.mrb[0].mxu0
  %v170 = vadd.f32 %v37, %v169
  %v171 = vpop.f32.mrb[0].mxu0
  %172 = vmatprep.mubr.bf16.mxu0 0
  %173 = vmatmul.mubr.bf16.gmra.mrb[0].mxu0 %v93
  %v174 = vpop.f32.mrb[0].mxu0
  %v175 = vadd.f32 %v37, %v174
  %v176 = vpop.f32.mrb[0].mxu0
  %v177 = vpop.f32.mrb[0].mxu0
  %v178 = vadd.f32 %v37, %v177
  %v179 = vpop.f32.mrb[0].mxu0
  %180 = vmatprep.mubr.bf16.mxu0 0
  %181 = vmatmul.mubr.bf16.gmra.mrb[0].mxu0 %v96
  %v182 = vpop.f32.mrb[0].mxu0
  %v183 = vadd.f32 %v37, %v182
  %v184 = vpop.f32.mrb[0].mxu0
  %v185 = vpop.f32.mrb[0].mxu0
  %v186 = vadd.f32 %v37, %v185
  %v187 = vpop.f32.mrb[0].mxu0
  %188 = vmatprep.mubr.bf16.mxu0 0
  %189 = vmatmul.mubr.bf16.gmra.mrb[0].mxu0 %v99
  %v190 = vpop.f32.mrb[0].mxu0
  %v191 = vadd.f32 %v37, %v190
  %v192 = vpop.f32.mrb[0].mxu0
  %v193 = vpop.f32.mrb[0].mxu0
  %v194 = vadd.f32 %v37, %v193
  %v195 = vpop.f32.mrb[0].mxu0
  %196 = vmatprep.mubr.bf16.mxu0 0
  %197 = vmatmul.mubr.bf16.gmra.mrb[0].mxu0 %v102
  %v198 = vpop.f32.mrb[0].mxu0
  %v199 = vadd.f32 %v37, %v198
  %v200 = vpop.f32.mrb[0].mxu0
  %v201 = vpop.f32.mrb[0].mxu0
  %v202 = vadd.f32 %v37, %v201
  %v203 = vpop.f32.mrb[0].mxu0
  %204 = vdwg.mxu0
  %v205 = vadd.f32 %v143, %v146
  %v206 = vadd.f32 %v205, %v151
  %v207 = vadd.f32 %v206, %v154
  %v208 = vadd.f32 %v207, %v159
  %v209 = vadd.f32 %v208, %v162
  %v210 = vadd.f32 %v209, %v167
  %v211 = vadd.f32 %v210, %v170
  %v212 = vadd.f32 %v211, %v175
  %v213 = vadd.f32 %v212, %v178
  %v214 = vadd.f32 %v213, %v183
  %v215 = vadd.f32 %v214, %v186
  %v216 = vadd.f32 %v215, %v191
  %v217 = vadd.f32 %v216, %v194
  %v218 = vadd.f32 %v217, %v199
  %v219 = vadd.f32 %v218, %v202
  %v220 = vrot.slane %v219, 4
  %v221 = vadd.f32 %v219, %v220
  %v222 = vrot.slane %v221, 2
  %v223 = vadd.f32 %v221, %v222
  %v224 = vrot.slane %v223, 1
  %v225 = vadd.f32 %v223, %v224
  %v226 = vmul.f32 %v143, %v143
  %v227 = vmul.f32 %v146, %v146
  %v228 = vmul.f32 %v151, %v151
  %v229 = vmul.f32 %v154, %v154
  %v230 = vmul.f32 %v159, %v159
  %v231 = vmul.f32 %v162, %v162
  %v232 = vmul.f32 %v167, %v167
  %v233 = vmul.f32 %v170, %v170
  %v234 = vmul.f32 %v175, %v175
  %v235 = vmul.f32 %v178, %v178
  %v236 = vmul.f32 %v183, %v183
  %v237 = vmul.f32 %v186, %v186
  %v238 = vmul.f32 %v191, %v191
  %v239 = vmul.f32 %v194, %v194
  %v240 = vmul.f32 %v199, %v199
  %v241 = vmul.f32 %v202, %v202
  %v242 = vadd.f32 %v226, %v227
  %v243 = vadd.f32 %v242, %v228
  %v244 = vadd.f32 %v243, %v229
  %v245 = vadd.f32 %v244, %v230
  %v246 = vadd.f32 %v245, %v231
  %v247 = vadd.f32 %v246, %v232
  %v248 = vadd.f32 %v247, %v233
  %v249 = vadd.f32 %v248, %v234
  %v250 = vadd.f32 %v249, %v235
  %v251 = vadd.f32 %v250, %v236
  %v252 = vadd.f32 %v251, %v237
  %v253 = vadd.f32 %v252, %v238
  %v254 = vadd.f32 %v253, %v239
  %v255 = vadd.f32 %v254, %v240
  %v256 = vadd.f32 %v255, %v241
  %v257 = vrot.slane %v256, 4
  %v258 = vadd.f32 %v256, %v257
  %v259 = vrot.slane %v258, 2
  %v260 = vadd.f32 %v258, %v259
  %v261 = vrot.slane %v260, 1
  %v262 = vadd.f32 %v260, %v261
  %vm263 = vcmask 1040384
  %v264 = vsel %vm263, %v225, %v262
  %265 = vst [vmem:[%s3] sm:$0x3] %v264
  // Predicated region
  $region14: #{block_forward.5} parent=0 // pred_check
    _
  $region15: #{block_forward.5} parent=0 // pred_check_branch
    %267 = sbr.rel (0) target = $region17
  $region16: #{block_forward.5} parent=0 // pred_region
    _
  $region17: #{block_forward.5} parent=0 // pred_fallthru
    _
  // Predicated region
  $region18: #{block_forward.5} parent=0 // pred_check
    _
  $region19: #{block_forward.5} parent=0 // pred_check_branch
    %269 = sbr.rel (0) target = $region21
  $region20: #{block_forward.5} parent=0 // pred_region
    _
  $region21: #{block_forward.5} parent=0 // pred_fallthru
    _

// kernel: block_forward.7
$region0: #{block_forward.7}
  #allocation0 [shape = 'u32[]', space=smem, size = 0x4, offset = 0x4, fixed_abs, tag = 'smem constant byte address 0x4 - core index']
  #allocation1 [shape = 'u32[144,128]{1,0:T(1,128)}', space=vmem, size = 0x12000, scoped, tag = 'internal scratch']
  #allocation2 [shape = 'f32[4,16,128]{2,1,0:T(8,128)}', space=vmem, size = 0x8000, scoped, tag = 'scratch operand']
  %s0 = inlined_call_operand.vmem [shape: bf16[2,16,16,128], index: 0, kind: input, shape index: {}, may-alias: {0,1}]
  %s1 = inlined_call_operand.vmem [shape: bf16[2,16,16,128], index: 1, kind: input, shape index: {}, may-alias: {0,1}]
  %s2 = inlined_call_operand.vmem [shape: f32[1,128], index: 2, kind: input, shape index: {}]
  %s3 = inlined_call_operand.vmem [shape: f32[1,128], index: 3, kind: input, shape index: {}]
  %s4 = inlined_call_operand.vmem [shape: bf16[2,8,8,4], index: 4, kind: input, shape index: {}]
  %s5 = inlined_call_operand.vmem [shape: bf16[4,128], index: 5, kind: input, shape index: {}]
  %s6 = inlined_call_operand.vmem [shape: f32[1,128], index: 6, kind: input, shape index: {}]
  %s7 = inlined_call_operand.vmem [shape: f32[1,128], index: 7, kind: input, shape index: {}]
  %s8 = inlined_call_operand.vmem [shape: f32[2,8,8,128], index: 8, kind: output, shape index: {}]
  %s9 = sld [smem:[#allocation0]]
  $region65: #{block_forward.7} parent=0
    _
  %s11 = ssub.s32 1, %s9
  %s12 = scalar_select 0, %s11, %s9
  loop: start=0, step=1, limit=6
  $region2: #{block_forward.7} parent=0 // loop_pre_header
    _
  $region3: #{block_forward.7} parent=0 // loop_header
    %s14 = sphi 0, %s18
    %p15 = scmp.ge.s32.totalorder %s14, 6
    %s21 = sphi 0, %s33
    %s22 = sphi 0, %s29
    %s23 = sphi 0, %s21
    %s24 = sphi 0, %s22
    %s25 = sphi 0, %s23
    %s26 = sphi 0, %s24
    %s38 = sphi 0, %s40
    %s41 = sphi 0, %s38
    %s42 = sphi 0, %s41
    %s58 = sphi 0, %s42
    %s74 = sphi 0, %s76
    %s77 = sphi 0, %s74
    %s78 = sphi 0, %s77
    %s94 = sphi 0, %s78
    %s98 = sphi 0, %s98
    %s100 = sphi 0, %s98
    %s101 = sphi 0, %s100
    %s115 = sphi 0, %s101
    %s119 = sphi 0, %s119
    %s121 = sphi 0, %s119
    %s122 = sphi 0, %s121
    %s136 = sphi 0, %s122
    %s144 = sphi 0, %s146
    %s147 = sphi 0, %s144
    %s148 = sphi 0, %s147
    %s164 = sphi 0, %s148
    %s168 = sphi 0, %s168
    %s170 = sphi 0, %s168
    %s171 = sphi 0, %s170
    %s185 = sphi 0, %s171
    %s189 = sphi 0, %s189
    %s191 = sphi 0, %s189
    %s192 = sphi 0, %s191
    %s206 = sphi 0, %s192
    %s210 = sphi 0, %s210
    %s212 = sphi 0, %s210
    %s213 = sphi 0, %s212
    %s227 = sphi 0, %s213
    %s235 = sphi 0, %s237
    %s238 = sphi 0, %s235
    %s239 = sphi 0, %s238
    %s255 = sphi 0, %s239
  $region4: #{block_forward.7} parent=0 // loop_header_branch
    %17 = sbr.rel (%p15) target = $region8
  $region5: #{block_forward.7} parent=0 // loop_body
    %s19 = ssub.s32 %s14, 1
    %s20 = ssub.s32 %s14, 2
    %s27 = sadd.s32 1, %s22
    %p28 = scmp.ge.s32.totalorder %s27, 2
    %s29 = scalar_select %p28, 0, %s27
    %s30 = sadd.s32 1, %s21
    %s31 = scalar_select %p28, %s30, %s21
    %p32 = scmp.ge.s32.totalorder %s31, 2
    %s33 = scalar_select %p32, 0, %s31
    %s34 = ssub.s32 %s21, %s33
    %s35 = ssub.s32 %s22, %s29
    %s36 = sor.u32 %s34, %s35
    %p37 = scmp.eq.s32.totalorder %s36, 0
    %s39 = sadd.s32 %s38, 1
    %s40 = scalar_select %p37, %s38, %s39
    %p43 = pneg %p37
    %p44 = scmp.eq.s32.totalorder %s14, 3
    %p45 = por %p43, %p44
    %p46 = scmp.ne.s32.totalorder %s38, %s41
    %p47 = scmp.eq.s32.totalorder %s14, 0
    %p48 = por %p46, %p47
    %p49 = scmp.ne.s32.totalorder %s38, %s41
    %p50 = scmp.eq.s32.totalorder %s19, 3
    %p51 = por %p49, %p50
    %p52 = scmp.ne.s32.totalorder %s41, %s42
    %p53 = scmp.eq.s32.totalorder %s19, 0
    %p54 = por %p52, %p53
    %p55 = scmp.ne.s32.totalorder %s41, %s42
    %p56 = scmp.eq.s32.totalorder %s20, 3
    %p57 = por %p55, %p56
    %p59 = scmp.ne.s32.totalorder %s42, %s58
    %p60 = scmp.eq.s32.totalorder %s20, 0
    %p61 = por %p59, %p60
    %s62 = smul.u32 %s22, 8
    %s63 = ssub.s32 %s62, 1
    %p64 = scmp.gt.s32.totalorder %s63, 0
    %s65 = scalar_select %p64, %s63, 0
    %s66 = smul.u32 %s29, 8
    %s67 = ssub.s32 %s66, 1
    %p68 = scmp.gt.s32.totalorder %s67, 0
    %s69 = scalar_select %p68, %s67, 0
    %s70 = ssub.s32 %s21, %s33
    %s71 = ssub.s32 %s65, %s69
    %s72 = sor.u32 %s70, %s71
    %p73 = scmp.eq.s32.totalorder %s72, 0
    %s75 = sadd.s32 %s74, 1
    %s76 = scalar_select %p73, %s74, %s75
    %p79 = pneg %p73
    %p80 = scmp.eq.s32.totalorder %s14, 3
    %p81 = por %p79, %p80
    %p82 = scmp.ne.s32.totalorder %s74, %s77
    %p83 = scmp.eq.s32.totalorder %s14, 0
    %p84 = por %p82, %p83
    %p85 = scmp.ne.s32.totalorder %s74, %s77
    %p86 = scmp.eq.s32.totalorder %s19, 3
    %p87 = por %p85, %p86
    %p88 = scmp.ne.s32.totalorder %s77, %s78
    %p89 = scmp.eq.s32.totalorder %s19, 0
    %p90 = por %p88, %p89
    %p91 = scmp.ne.s32.totalorder %s77, %s78
    %p92 = scmp.eq.s32.totalorder %s20, 3
    %p93 = por %p91, %p92
    %p95 = scmp.ne.s32.totalorder %s78, %s94
    %p96 = scmp.eq.s32.totalorder %s20, 0
    %p97 = por %p95, %p96
    %s99 = sadd.s32 %s98, 1
    %p102 = scmp.eq.s32.totalorder %s14, 3
    %p103 = scmp.ne.s32.totalorder %s98, %s100
    %p104 = scmp.eq.s32.totalorder %s14, 0
    %p105 = por %p103, %p104
    %p106 = scmp.ne.s32.totalorder %s98, %s100
    %p107 = scmp.eq.s32.totalorder %s19, 3
    %p108 = por %p106, %p107
    %p109 = scmp.ne.s32.totalorder %s100, %s101
    %p110 = scmp.eq.s32.totalorder %s19, 0
    %p111 = por %p109, %p110
    %p112 = scmp.ne.s32.totalorder %s100, %s101
    %p113 = scmp.eq.s32.totalorder %s20, 3
    %p114 = por %p112, %p113
    %p116 = scmp.ne.s32.totalorder %s101, %s115
    %p117 = scmp.eq.s32.totalorder %s20, 0
    %p118 = por %p116, %p117
    %s120 = sadd.s32 %s119, 1
    %p123 = scmp.eq.s32.totalorder %s14, 3
    %p124 = scmp.ne.s32.totalorder %s119, %s121
    %p125 = scmp.eq.s32.totalorder %s14, 0
    %p126 = por %p124, %p125
    %p127 = scmp.ne.s32.totalorder %s119, %s121
    %p128 = scmp.eq.s32.totalorder %s19, 3
    %p129 = por %p127, %p128
    %p130 = scmp.ne.s32.totalorder %s121, %s122
    %p131 = scmp.eq.s32.totalorder %s19, 0
    %p132 = por %p130, %p131
    %p133 = scmp.ne.s32.totalorder %s121, %s122
    %p134 = scmp.eq.s32.totalorder %s20, 3
    %p135 = por %p133, %p134
    %p137 = scmp.ne.s32.totalorder %s122, %s136
    %p138 = scmp.eq.s32.totalorder %s20, 0
    %p139 = por %p137, %p138
    %s140 = ssub.s32 %s21, %s33
    %s141 = ssub.s32 %s22, %s29
    %s142 = sor.u32 %s140, %s141
    %p143 = scmp.eq.s32.totalorder %s142, 0
    %s145 = sadd.s32 %s144, 1
    %s146 = scalar_select %p143, %s144, %s145
    %p149 = pneg %p143
    %p150 = scmp.eq.s32.totalorder %s14, 3
    %p151 = por %p149, %p150
    %p152 = scmp.ne.s32.totalorder %s144, %s147
    %p153 = scmp.eq.s32.totalorder %s14, 0
    %p154 = por %p152, %p153
    %p155 = scmp.ne.s32.totalorder %s144, %s147
    %p156 = scmp.eq.s32.totalorder %s19, 3
    %p157 = por %p155, %p156
    %p158 = scmp.ne.s32.totalorder %s147, %s148
    %p159 = scmp.eq.s32.totalorder %s19, 0
    %p160 = por %p158, %p159
    %p161 = scmp.ne.s32.totalorder %s147, %s148
    %p162 = scmp.eq.s32.totalorder %s20, 3
    %p163 = por %p161, %p162
    %p165 = scmp.ne.s32.totalorder %s148, %s164
    %p166 = scmp.eq.s32.totalorder %s20, 0
    %p167 = por %p165, %p166
    %s169 = sadd.s32 %s168, 1
    %p172 = scmp.eq.s32.totalorder %s14, 3
    %p173 = scmp.ne.s32.totalorder %s168, %s170
    %p174 = scmp.eq.s32.totalorder %s14, 0
    %p175 = por %p173, %p174
    %p176 = scmp.ne.s32.totalorder %s168, %s170
    %p177 = scmp.eq.s32.totalorder %s19, 3
    %p178 = por %p176, %p177
    %p179 = scmp.ne.s32.totalorder %s170, %s171
    %p180 = scmp.eq.s32.totalorder %s19, 0
    %p181 = por %p179, %p180
    %p182 = scmp.ne.s32.totalorder %s170, %s171
    %p183 = scmp.eq.s32.totalorder %s20, 3
    %p184 = por %p182, %p183
    %p186 = scmp.ne.s32.totalorder %s171, %s185
    %p187 = scmp.eq.s32.totalorder %s20, 0
    %p188 = por %p186, %p187
    %s190 = sadd.s32 %s189, 1
    %p193 = scmp.eq.s32.totalorder %s14, 3
    %p194 = scmp.ne.s32.totalorder %s189, %s191
    %p195 = scmp.eq.s32.totalorder %s14, 0
    %p196 = por %p194, %p195
    %p197 = scmp.ne.s32.totalorder %s189, %s191
    %p198 = scmp.eq.s32.totalorder %s19, 3
    %p199 = por %p197, %p198
    %p200 = scmp.ne.s32.totalorder %s191, %s192
    %p201 = scmp.eq.s32.totalorder %s19, 0
    %p202 = por %p200, %p201
    %p203 = scmp.ne.s32.totalorder %s191, %s192
    %p204 = scmp.eq.s32.totalorder %s20, 3
    %p205 = por %p203, %p204
    %p207 = scmp.ne.s32.totalorder %s192, %s206
    %p208 = scmp.eq.s32.totalorder %s20, 0
    %p209 = por %p207, %p208
    %s211 = sadd.s32 %s210, 1
    %p214 = scmp.eq.s32.totalorder %s14, 3
    %p215 = scmp.ne.s32.totalorder %s210, %s212
    %p216 = scmp.eq.s32.totalorder %s14, 0
    %p217 = por %p215, %p216
    %p218 = scmp.ne.s32.totalorder %s210, %s212
    %p219 = scmp.eq.s32.totalorder %s19, 3
    %p220 = por %p218, %p219
    %p221 = scmp.ne.s32.totalorder %s212, %s213
    %p222 = scmp.eq.s32.totalorder %s19, 0
    %p223 = por %p221, %p222
    %p224 = scmp.ne.s32.totalorder %s212, %s213
    %p225 = scmp.eq.s32.totalorder %s20, 3
    %p226 = por %p224, %p225
    %p228 = scmp.ne.s32.totalorder %s213, %s227
    %p229 = scmp.eq.s32.totalorder %s20, 0
    %p230 = por %p228, %p229
    %s231 = ssub.s32 %s21, %s33
    %s232 = ssub.s32 %s22, %s29
    %s233 = sor.u32 %s231, %s232
    %p234 = scmp.eq.s32.totalorder %s233, 0
    %s236 = sadd.s32 %s235, 1
    %s237 = scalar_select %p234, %s235, %s236
    %p240 = pneg %p234
    %p241 = scmp.eq.s32.totalorder %s14, 3
    %p242 = por %p240, %p241
    %p243 = scmp.ne.s32.totalorder %s235, %s238
    %p244 = scmp.eq.s32.totalorder %s14, 0
    %p245 = por %p243, %p244
    %p246 = scmp.ne.s32.totalorder %s235, %s238
    %p247 = scmp.eq.s32.totalorder %s19, 3
    %p248 = por %p246, %p247
    %p249 = scmp.ne.s32.totalorder %s238, %s239
    %p250 = scmp.eq.s32.totalorder %s19, 0
    %p251 = por %p249, %p250
    %p252 = scmp.ne.s32.totalorder %s238, %s239
    %p253 = scmp.eq.s32.totalorder %s20, 3
    %p254 = por %p252, %p253
    %p256 = scmp.ne.s32.totalorder %s239, %s255
    %p257 = scmp.eq.s32.totalorder %s20, 0
    %p258 = por %p256, %p257
    %p259 = scmp.le.s32.totalorder 1, %s14
    %p260 = scmp.lt.s32.totalorder %s14, 5
    %p261 = pnand %p259, %p260
    %p262 = pneg %p261
    // Predicated region
    $region9: #{block_forward.7} parent=5 // pred_check
      _
    $region10: #{block_forward.7} parent=5 // pred_check_branch
      %264 = sbr.rel (%p261) target = $region12
    $region11: #{block_forward.7} parent=5 // pred_region
      %s265 = ssub.s32 %s14, 1
      // Predicated region
      $region13: #{block_forward.7} parent=11 // pred_check
        %p266 = pneg %p111
      $region14: #{block_forward.7} parent=11 // pred_check_branch
        %268 = sbr.rel (%p266) target = $region16
      $region15: #{block_forward.7} parent=11 // pred_region
        _
      $region16: #{block_forward.7} parent=11 // pred_fallthru
        _
      // Predicated region
      $region17: #{block_forward.7} parent=11 // pred_check
        %p269 = pneg %p132
      $region18: #{block_forward.7} parent=11 // pred_check_branch
        %271 = sbr.rel (%p269) target = $region20
      $region19: #{block_forward.7} parent=11 // pred_region
        _
      $region20: #{block_forward.7} parent=11 // pred_fallthru
        _
      // Predicated region
      $region21: #{block_forward.7} parent=11 // pred_check
        %p272 = pneg %p181
      $region22: #{block_forward.7} parent=11 // pred_check_branch
        %274 = sbr.rel (%p272) target = $region24
      $region23: #{block_forward.7} parent=11 // pred_region
        _
      $region24: #{block_forward.7} parent=11 // pred_fallthru
        _
      // Predicated region
      $region25: #{block_forward.7} parent=11 // pred_check
        %p275 = pneg %p202
      $region26: #{block_forward.7} parent=11 // pred_check_branch
        %277 = sbr.rel (%p275) target = $region28
      $region27: #{block_forward.7} parent=11 // pred_region
        _
      $region28: #{block_forward.7} parent=11 // pred_fallthru
        _
      // Predicated region
      $region29: #{block_forward.7} parent=11 // pred_check
        %p278 = pneg %p223
      $region30: #{block_forward.7} parent=11 // pred_check_branch
        %280 = sbr.rel (%p278) target = $region32
      $region31: #{block_forward.7} parent=11 // pred_region
        _
      $region32: #{block_forward.7} parent=11 // pred_fallthru
        _
    $region12: #{block_forward.7} parent=5 // pred_fallthru
      _
    %p281 = scmp.lt.s32.totalorder %s14, 4
    // Predicated region
    $region33: #{block_forward.7} parent=5 // pred_check
      %p282 = pneg %p281
    $region34: #{block_forward.7} parent=5 // pred_check_branch
      %284 = sbr.rel (%p282) target = $region36
    $region35: #{block_forward.7} parent=5 // pred_region
      // Predicated region
      $region37: #{block_forward.7} parent=35 // pred_check
        %p285 = pneg %p48
      $region38: #{block_forward.7} parent=35 // pred_check_branch
        %287 = sbr.rel (%p285) target = $region40
      $region39: #{block_forward.7} parent=35 // pred_region
        %s288 = smul.u32 8, %s22
        %p289 = scmp.lt.s32.totalorder %s21, 1
        %s290 = scalar_select %p289, %s21, 1
        %p291 = scmp.lt.s32.totalorder %s288, 15
        %s292 = scalar_select %p291, %s288, 15
        %s293 = smul.addr %s292, 2
        %s294 = smul.addr %s290, 32
        %s295 = sadd.s32 %s293, %s294
        %s296 = smul.addr %s295, 4
        %s297 = scalar_lea.vmem %s0, %s296
        %s298 = smul.u32 8, %s22
      $region40: #{block_forward.7} parent=35 // pred_fallthru
        _
      // Predicated region
      $region41: #{block_forward.7} parent=35 // pred_check
        %p299 = pneg %p84
      $region42: #{block_forward.7} parent=35 // pred_check_branch
        %301 = sbr.rel (%p299) target = $region44
      $region43: #{block_forward.7} parent=35 // pred_region
        %s302 = smul.u32 %s22, 8
        %s303 = ssub.s32 %s302, 1
        %p304 = scmp.gt.s32.totalorder %s303, 0
        %s305 = scalar_select %p304, %s303, 0
        %p306 = scmp.lt.s32.totalorder %s21, 1
        %s307 = scalar_select %p306, %s21, 1
        %p308 = scmp.lt.s32.totalorder %s305, 15
        %s309 = scalar_select %p308, %s305, 15
        %s310 = smul.addr %s309, 2
        %s311 = smul.addr %s307, 32
        %s312 = sadd.s32 %s310, %s311
        %s313 = smul.addr %s312, 4
        %s314 = scalar_lea.vmem %s1, %s313
        %s315 = smul.u32 %s22, 8
        %s316 = ssub.s32 %s315, 1
        %p317 = scmp.gt.s32.totalorder %s316, 0
        %s318 = scalar_select %p317, %s316, 0
      $region44: #{block_forward.7} parent=35 // pred_fallthru
        _
      // Predicated region
      $region45: #{block_forward.7} parent=35 // pred_check
        %p319 = pneg %p154
      $region46: #{block_forward.7} parent=35 // pred_check_branch
        %321 = sbr.rel (%p319) target = $region48
      $region47: #{block_forward.7} parent=35 // pred_region
        %s322 = smul.u32 4, %s22
        %p323 = scmp.lt.s32.totalorder %s21, 1
        %s324 = scalar_select %p323, %s21, 1
        %p325 = scmp.lt.s32.totalorder %s322, 7
        %s326 = scalar_select %p325, %s322, 7
        %s327 = smul.addr %s324, 8
        %s328 = sadd.s32 %s326, %s327
        %s329 = smul.addr %s328, 4
        %s330 = scalar_lea.vmem %s4, %s329
        %s331 = smul.u32 4, %s22
      $region48: #{block_forward.7} parent=35 // pred_fallthru
        _
    $region36: #{block_forward.7} parent=5 // pred_fallthru
      _
    %p332 = scmp.le.s32.totalorder 1, %s14
    %p333 = scmp.lt.s32.totalorder %s14, 5
    %p334 = pnand %p332, %p333
    %p335 = pneg %p334
    // Predicated region
    $region49: #{block_forward.7} parent=5 // pred_check
      _
    $region50: #{block_forward.7} parent=5 // pred_check_branch
      %337 = sbr.rel (%p334) target = $region52
    $region51: #{block_forward.7} parent=5 // pred_region
      %s338 = ssub.s32 %s14, 1
      %s339 = smul.u32 8, %s24
      %p340 = scmp.lt.s32.totalorder %s23, 1
      %s341 = scalar_select %p340, %s23, 1
      %p342 = scmp.lt.s32.totalorder %s339, 15
      %s343 = scalar_select %p342, %s339, 15
      %s344 = smul.addr %s343, 2
      %s345 = smul.addr %s341, 32
      %s346 = sadd.s32 %s344, %s345
      %s347 = smul.addr %s346, 4
      %s348 = scalar_lea.vmem %s0, %s347
      %p349 = pneg %p54
      %p350 = pneg %p51
      %s351 = smul.u32 %s24, 8
      %s352 = ssub.s32 %s351, 1
      %p353 = scmp.gt.s32.totalorder %s352, 0
      %s354 = scalar_select %p353, %s352, 0
      %p355 = scmp.lt.s32.totalorder %s23, 1
      %s356 = scalar_select %p355, %s23, 1
      %p357 = scmp.lt.s32.totalorder %s354, 15
      %s358 = scalar_select %p357, %s354, 15
      %s359 = smul.addr %s358, 2
      %s360 = smul.addr %s356, 32
      %s361 = sadd.s32 %s359, %s360
      %s362 = smul.addr %s361, 4
      %s363 = scalar_lea.vmem %s1, %s362
      %p364 = pneg %p90
      %p365 = pneg %p87
      %p366 = pneg %p111
      %p367 = pneg %p108
      %p368 = pneg %p132
      %p369 = pneg %p129
      %s370 = smul.u32 4, %s24
      %p371 = scmp.lt.s32.totalorder %s23, 1
      %s372 = scalar_select %p371, %s23, 1
      %p373 = scmp.lt.s32.totalorder %s370, 7
      %s374 = scalar_select %p373, %s370, 7
      %s375 = smul.addr %s372, 8
      %s376 = sadd.s32 %s374, %s375
      %s377 = smul.addr %s376, 4
      %s378 = scalar_lea.vmem %s4, %s377
      %p379 = pneg %p160
      %p380 = pneg %p157
      %p381 = pneg %p181
      %p382 = pneg %p178
      %p383 = pneg %p202
      %p384 = pneg %p199
      %p385 = pneg %p223
      %p386 = pneg %p220
      %p387 = pneg %p251
      %p388 = pneg %p248
      %s389 = smul.u32 4, %s24
      %p390 = scmp.lt.s32.totalorder %s23, 1
      %s391 = scalar_select %p390, %s23, 1
      %p392 = scmp.lt.s32.totalorder %s389, 7
      %s393 = scalar_select %p392, %s389, 7
      %s394 = smul.addr %s391, 8
      %s395 = sadd.s32 %s393, %s394
      %s396 = smul.addr %s395, 8
      %s397 = scalar_lea.vmem %s8, %s396
      %s398 = smul.u32 8, %s24
      %p399 = scmp.lt.s32.totalorder %s23, 1
      %s400 = scalar_select %p399, %s23, 1
      %p401 = scmp.lt.s32.totalorder %s398, 15
      %s402 = scalar_select %p401, %s398, 15
      %s403 = smul.addr %s402, 2
      %s404 = smul.addr %s400, 32
      %s405 = sadd.s32 %s403, %s404
      %s406 = smul.addr %s405, 4
      %s407 = scalar_lea.vmem %s0, %s406
      %s408 = smul.u32 8, %s24
      %s409 = smul.u32 %s24, 8
      %s410 = ssub.s32 %s409, 1
      %p411 = scmp.gt.s32.totalorder %s410, 0
      %s412 = scalar_select %p411, %s410, 0
      %p413 = scmp.lt.s32.totalorder %s23, 1
      %s414 = scalar_select %p413, %s23, 1
      %p415 = scmp.lt.s32.totalorder %s412, 15
      %s416 = scalar_select %p415, %s412, 15
      %s417 = smul.addr %s416, 2
      %s418 = smul.addr %s414, 32
      %s419 = sadd.s32 %s417, %s418
      %s420 = smul.addr %s419, 4
      %s421 = scalar_lea.vmem %s1, %s420
      %s422 = smul.u32 %s24, 8
      %s423 = ssub.s32 %s422, 1
      %p424 = scmp.gt.s32.totalorder %s423, 0
      %s425 = scalar_select %p424, %s423, 0
      %s426 = smul.u32 4, %s24
      %p427 = scmp.lt.s32.totalorder %s23, 1
      %s428 = scalar_select %p427, %s23, 1
      %p429 = scmp.lt.s32.totalorder %s426, 7
      %s430 = scalar_select %p429, %s426, 7
      %s431 = smul.addr %s428, 8
      %s432 = sadd.s32 %s430, %s431
      %s433 = smul.addr %s432, 4
      %s434 = scalar_lea.vmem %s4, %s433
      %s435 = smul.u32 4, %s24
      %s436 = smul.u32 4, %s24
      %p437 = scmp.lt.s32.totalorder %s23, 1
      %s438 = scalar_select %p437, %s23, 1
      %p439 = scmp.lt.s32.totalorder %s436, 7
      %s440 = scalar_select %p439, %s436, 7
      %s441 = smul.addr %s438, 8
      %s442 = sadd.s32 %s440, %s441
      %s443 = smul.addr %s442, 8
      %s444 = scalar_lea.vmem %s8, %s443
      %s445 = smul.u32 4, %s24
      %v447 = vld [vmem:[%s2] sm:$0x1]
      %v448 = vld [vmem:[%s3] sm:$0x1]
      %v449 = vld [vmem:[%s407] sm:$0xf]
      %v450 = vld [vmem:[%s407 + $0x4] sm:$0xf]
      %v451 = vld [vmem:[%s407 + $0x8] sm:$0xf]
      %v452 = vld [vmem:[%s407 + $0xc] sm:$0xf]
      %v453 = vld [vmem:[%s407 + $0x10] sm:$0xf]
      %v454 = vld [vmem:[%s407 + $0x14] sm:$0xf]
      %v455 = vld [vmem:[%s407 + $0x18] sm:$0xf]
      %v456 = vld [vmem:[%s407 + $0x1c] sm:$0xf]
      %v457 = vld [vmem:[%s407 + $0x20] sm:$0xf]
      %v458 = vld [vmem:[%s407 + $0x24] sm:$0xf]
      %v459 = vld [vmem:[%s407 + $0x28] sm:$0xf]
      %v460 = vld [vmem:[%s407 + $0x2c] sm:$0xf]
      %v461 = vld [vmem:[%s407 + $0x30] sm:$0xf]
      %v462 = vld [vmem:[%s407 + $0x34] sm:$0xf]
      %v463 = vld [vmem:[%s407 + $0x38] sm:$0xf]
      %v464 = vld [vmem:[%s407 + $0x3c] sm:$0xf]
      %v465 = vunpack.c.l.bf16 %v449
      %v466 = vunpack.c.l.bf16 %v450
      %v467 = vunpack.c.l.bf16 %v451
      %v468 = vunpack.c.l.bf16 %v452
      %v469 = vunpack.c.l.bf16 %v453
      %v470 = vunpack.c.l.bf16 %v454
      %v471 = vunpack.c.l.bf16 %v455
      %v472 = vunpack.c.l.bf16 %v456
      %v473 = vunpack.c.l.bf16 %v457
      %v474 = vunpack.c.l.bf16 %v458
      %v475 = vunpack.c.l.bf16 %v459
      %v476 = vunpack.c.l.bf16 %v460
      %v477 = vunpack.c.l.bf16 %v461
      %v478 = vunpack.c.l.bf16 %v462
      %v479 = vunpack.c.l.bf16 %v463
      %v480 = vunpack.c.l.bf16 %v464
      %v482 = vlaneseq
      %v483 = vshrl.u32 %v482, 7
      %v484 = vsub.s32 0, %v483
      %v485 = vrot.slane %v447, %v484
      %v487 = vmul.f32 %v465, %v485
      %v488 = vmul.f32 %v466, %v485
      %v489 = vmul.f32 %v467, %v485
      %v490 = vmul.f32 %v468, %v485
      %v491 = vmul.f32 %v469, %v485
      %v492 = vmul.f32 %v470, %v485
      %v493 = vmul.f32 %v471, %v485
      %v494 = vmul.f32 %v472, %v485
      %v495 = vmul.f32 %v473, %v485
      %v496 = vmul.f32 %v474, %v485
      %v497 = vmul.f32 %v475, %v485
      %v498 = vmul.f32 %v476, %v485
      %v499 = vmul.f32 %v477, %v485
      %v500 = vmul.f32 %v478, %v485
      %v501 = vmul.f32 %v479, %v485
      %v502 = vmul.f32 %v480, %v485
      %v504 = vlaneseq
      %v505 = vshrl.u32 %v504, 7
      %v506 = vsub.s32 0, %v505
      %v507 = vrot.slane %v448, %v506
      %v509 = vadd.f32 %v487, %v507
      %v510 = vadd.f32 %v488, %v507
      %v511 = vadd.f32 %v489, %v507
      %v512 = vadd.f32 %v490, %v507
      %v513 = vadd.f32 %v491, %v507
      %v514 = vadd.f32 %v492, %v507
      %v515 = vadd.f32 %v493, %v507
      %v516 = vadd.f32 %v494, %v507
      %v517 = vadd.f32 %v495, %v507
      %v518 = vadd.f32 %v496, %v507
      %v519 = vadd.f32 %v497, %v507
      %v520 = vadd.f32 %v498, %v507
      %v521 = vadd.f32 %v499, %v507
      %v522 = vadd.f32 %v500, %v507
      %v523 = vadd.f32 %v501, %v507
      %v524 = vadd.f32 %v502, %v507
      %v525 = vld [vmem:[%s421] sm:$0xf]
      %v526 = vld [vmem:[%s421 + $0x4] sm:$0xf]
      %v527 = vunpack.c.l.bf16 %v525
      %v528 = vunpack.c.l.bf16 %v526
      %v529 = vmul.f32 %v527, %v485
      %v530 = vmul.f32 %v528, %v485
      %v531 = vadd.f32 %v529, %v507
      %v532 = vadd.f32 %v530, %v507
      %p533 = scmp.eq.s32.totalorder %s24, 0
      %s534 = scalar_select %p533, 1, 0
      %v535 = vstv %s534
      %vm536 = vcmp.eq.s32.totalorder %v535, 1
      %v537 = vsel %vm536, -inf, %v531
      %v538 = vsel %vm536, -inf, %v532
      %v539 = vmax.f32 %v509, %v511
      %v540 = vmax.f32 %v510, %v512
      %v541 = vmax.f32 %v513, %v515
      %v542 = vmax.f32 %v514, %v516
      %v543 = vmax.f32 %v517, %v519
      %v544 = vmax.f32 %v518, %v520
      %v545 = vmax.f32 %v521, %v523
      %v546 = vmax.f32 %v522, %v524
      %v547 = vmax.f32 %v539, %v537
      %v548 = vmax.f32 %v540, %v538
      %v549 = vmax.f32 %v541, %v511
      %v550 = vmax.f32 %v542, %v512
      %v551 = vmax.f32 %v543, %v515
      %v552 = vmax.f32 %v544, %v516
      %v553 = vmax.f32 %v545, %v519
      %v554 = vmax.f32 %v546, %v520
      %555 = vst [vmem:[#allocation2] sm:$0xff] %v547
      %556 = vst [vmem:[#allocation2 + $0x8] sm:$0xff] %v548
      %557 = vst [vmem:[#allocation2 + $0x10] sm:$0xff] %v549
      %558 = vst [vmem:[#allocation2 + $0x18] sm:$0xff] %v550
      %559 = vst [vmem:[#allocation2 + $0x20] sm:$0xff] %v551
      %560 = vst [vmem:[#allocation2 + $0x28] sm:$0xff] %v552
      %561 = vst [vmem:[#allocation2 + $0x30] sm:$0xff] %v553
      %562 = vst [vmem:[#allocation2 + $0x38] sm:$0xff] %v554
      %v563 = vld [vmem:[#allocation2] ss:$2 sm:$0xff]
      %s564 = scalar_lea.vmem [#allocation2], 16
      %v565 = vld [vmem:[%s564] ss:$2 sm:$0xff]
      %s566 = scalar_lea.vmem [#allocation2], 32
      %v567 = vld [vmem:[%s566] ss:$2 sm:$0xff]
      %s568 = scalar_lea.vmem [#allocation2], 48
      %v569 = vld [vmem:[%s568] ss:$2 sm:$0xff]
      %s570 = scalar_lea.vmem [#allocation2], 1
      %v571 = vld [vmem:[%s570] ss:$2 sm:$0xff]
      %s572 = scalar_lea.vmem [#allocation2], 17
      %v573 = vld [vmem:[%s572] ss:$2 sm:$0xff]
      %s574 = scalar_lea.vmem [#allocation2], 33
      %v575 = vld [vmem:[%s574] ss:$2 sm:$0xff]
      %s576 = scalar_lea.vmem [#allocation2], 49
      %v577 = vld [vmem:[%s576] ss:$2 sm:$0xff]
      %v582 = vrot.slane %v571, 7
      %v583 = vrot.slane %v573, 7
      %v584 = vrot.slane %v575, 7
      %v585 = vrot.slane %v577, 7
      %vm590 = vcmask 1040384
      %v591 = vsel %vm590, -inf, %v582
      %v592 = vsel %vm590, -inf, %v583
      %v593 = vsel %vm590, -inf, %v584
      %v594 = vsel %vm590, -inf, %v585
      %v595 = vmax.f32 %v563, %v571
      %v596 = vmax.f32 %v565, %v573
      %v597 = vmax.f32 %v567, %v575
      %v598 = vmax.f32 %v569, %v577
      %v599 = vmax.f32 %v595, %v591
      %v600 = vmax.f32 %v596, %v592
      %v601 = vmax.f32 %v597, %v593
      %v602 = vmax.f32 %v598, %v594
      %v603 = vld [vmem:[%s434] sm:$0xf]
      %v604 = vld [vmem:[%s434 + $0x4] sm:$0xf]
      %v605 = vld [vmem:[%s434 + $0x8] sm:$0xf]
      %v606 = vld [vmem:[%s434 + $0xc] sm:$0xf]
      %v607 = vld [vmem:[%s5] sm:$0x3]
      %v612 = vunpack.c.l.b16 %v603
      %v613 = vunpack.c.l.b16 %v604
      %v614 = vunpack.c.l.b16 %v605
      %v615 = vunpack.c.l.b16 %v606
      %v616 = vpack.c.b16 %v613, %v612
      %v617 = vpack.c.b16 %v615, %v614
      %vm618 = vcmask 31744
      %v620 = vsel %vm618, %v616, 0
      %v623 = vsel %vm618, %v617, 0
      %vm625 = vcmask 1041408
      %v627 = vsel %vm625, %v607, 0
      %629 = vmatprep.subr.bf16.mxu0 0
      %630 = vmatpush1.bf16.msra.mxu0 %v627
      %631 = vmatprep.subr.bf16.mxu0 0
      %632 = vmatpush1.bf16.msra.mxu0 0
      %633 = vmatprep.subr.bf16.mxu0 0
      %634 = vmatpush1.bf16.msra.mxu0 0
      %635 = vmatprep.subr.bf16.mxu0 0
      %636 = vmatpush1.bf16.msra.mxu0 0
      %637 = vmatprep.subr.bf16.mxu0 0
      %638 = vmatpush1.bf16.msra.mxu0 0
      %639 = vmatprep.subr.bf16.mxu0 0
      %640 = vmatpush1.bf16.msra.mxu0 0
      %641 = vmatprep.subr.bf16.mxu0 0
      %642 = vmatpush1.bf16.msra.mxu0 0
      %643 = vmatprep.subr.bf16.mxu0 0
      %644 = vmatpush1.bf16.msra.mxu0 0
      %645 = vmatprep.subr.bf16.mxu0 0
      %646 = vmatpush1.bf16.msra.mxu0 0
      %647 = vmatprep.subr.bf16.mxu0 0
      %648 = vmatpush1.bf16.msra.mxu0 0
      %649 = vmatprep.subr.bf16.mxu0 0
      %650 = vmatpush1.bf16.msra.mxu0 0
      %651 = vmatprep.subr.bf16.mxu0 0
      %652 = vmatpush1.bf16.msra.mxu0 0
      %653 = vmatprep.subr.bf16.mxu0 0
      %654 = vmatpush1.bf16.msra.mxu0 0
      %655 = vmatprep.subr.bf16.mxu0 0
      %656 = vmatpush1.bf16.msra.mxu0 0
      %657 = vmatprep.subr.bf16.mxu0 0
      %658 = vmatpush1.bf16.msra.mxu0 0
      %659 = vmatprep.subr.bf16.mxu0 0
      %660 = vmatpush1.bf16.msra.mxu0 0
      %661 = vmatprep.mubr.bf16.mxu0 0
      %662 = vmatmul.mubr.bf16.gmra.mrb[0].mxu0 %v620
      %v663 = vpop.f32.mrb[0].mxu0
      %v664 = vadd.f32 0.0, %v663
      %v665 = vpop.f32.mrb[0].mxu0
      %v666 = vpop.f32.mrb[0].mxu0
      %v667 = vadd.f32 0.0, %v666
      %v668 = vpop.f32.mrb[0].mxu0
      %669 = vmatprep.mubr.bf16.mxu0 0
      %670 = vmatmul.mubr.bf16.gmra.mrb[0].mxu0 %v623
      %v671 = vpop.f32.mrb[0].mxu0
      %v672 = vadd.f32 0.0, %v671
      %v673 = vpop.f32.mrb[0].mxu0
      %v674 = vpop.f32.mrb[0].mxu0
      %v675 = vadd.f32 0.0, %v674
      %v676 = vpop.f32.mrb[0].mxu0
      %677 = vdwg.mxu0
      %v678 = vld [vmem:[%s6] sm:$0x1]
      %v680 = vlaneseq
      %v681 = vshrl.u32 %v680, 7
      %v682 = vsub.s32 0, %v681
      %v683 = vrot.slane %v678, %v682
      %v685 = vmul.f32 %v664, %v683
      %v686 = vmul.f32 %v667, %v683
      %v687 = vmul.f32 %v672, %v683
      %v688 = vmul.f32 %v675, %v683
      %v689 = vld [vmem:[%s7] sm:$0x1]
      %v691 = vlaneseq
      %v692 = vshrl.u32 %v691, 7
      %v693 = vsub.s32 0, %v692
      %v694 = vrot.slane %v689, %v693
      %v696 = vadd.f32 %v685, %v694
      %v697 = vadd.f32 %v686, %v694
      %v698 = vadd.f32 %v687, %v694
      %v699 = vadd.f32 %v688, %v694
      %v700 = vadd.f32 %v599, %v696
      %v701 = vadd.f32 %v600, %v697
      %v702 = vadd.f32 %v601, %v698
      %v703 = vadd.f32 %v602, %v699
      %704 = vst [vmem:[%s444] sm:$0xff] %v700
      %705 = vst [vmem:[%s444 + $0x8] sm:$0xff] %v701
      %706 = vst [vmem:[%s444 + $0x10] sm:$0xff] %v702
      %707 = vst [vmem:[%s444 + $0x18] sm:$0xff] %v703
      %s708 = smul.u32 4, %s24
      %p709 = scmp.lt.s32.totalorder %s23, 1
      %s710 = scalar_select %p709, %s23, 1
      %p711 = scmp.lt.s32.totalorder %s708, 7
      %s712 = scalar_select %p711, %s708, 7
      %s713 = smul.addr %s710, 8
      %s714 = sadd.s32 %s712, %s713
      %s715 = smul.addr %s714, 8
      %s716 = scalar_lea.vmem %s8, %s715
      // Predicated region
      $region53: #{block_forward.7} parent=51 // pred_check
        %p717 = pneg %p248
      $region54: #{block_forward.7} parent=51 // pred_check_branch
        %719 = sbr.rel (%p717) target = $region56
      $region55: #{block_forward.7} parent=51 // pred_region
        %s720 = smul.u32 4, %s24
      $region56: #{block_forward.7} parent=51 // pred_fallthru
        _
    $region52: #{block_forward.7} parent=5 // pred_fallthru
      _
    %p721 = scmp.le.s32.totalorder 2, %s14
    // Predicated region
    $region57: #{block_forward.7} parent=5 // pred_check
      %p722 = pneg %p721
    $region58: #{block_forward.7} parent=5 // pred_check_branch
      %724 = sbr.rel (%p722) target = $region60
    $region59: #{block_forward.7} parent=5 // pred_region
      %s725 = ssub.s32 %s14, 2
      // Predicated region
      $region61: #{block_forward.7} parent=59 // pred_check
        %p726 = pneg %p254
      $region62: #{block_forward.7} parent=59 // pred_check_branch
        %728 = sbr.rel (%p726) target = $region64
      $region63: #{block_forward.7} parent=59 // pred_region
        %s729 = smul.u32 4, %s26
        %p730 = scmp.lt.s32.totalorder %s25, 1
        %s731 = scalar_select %p730, %s25, 1
        %p732 = scmp.lt.s32.totalorder %s729, 7
        %s733 = scalar_select %p732, %s729, 7
        %s734 = smul.addr %s731, 8
        %s735 = sadd.s32 %s733, %s734
        %s736 = smul.addr %s735, 8
        %s737 = scalar_lea.vmem %s8, %s736
      $region64: #{block_forward.7} parent=59 // pred_fallthru
        _
    $region60: #{block_forward.7} parent=5 // pred_fallthru
      _
  $region6: #{block_forward.7} parent=0 // loop_footer
    %s18 = sadd.s32 1, %s14
  $region7: #{block_forward.7} parent=0 // loop_footer_branch
    %13 = sbr.rel target = $region3
  $region8: #{block_forward.7} parent=0 // loop_exit
    _

// kernel: block_forward.4
$region0: #{block_forward.4}
  #allocation0 [shape = 'u32[]', space=smem, size = 0x4, offset = 0x4, fixed_abs, tag = 'smem constant byte address 0x4 - core index']
  #allocation1 [shape = 'u32[144,128]{1,0:T(1,128)}', space=vmem, size = 0x12000, scoped, tag = 'internal scratch']
  %s0 = inlined_call_operand.vmem [shape: bf16[512,4], index: 0, kind: input, shape index: {}]
  %s1 = inlined_call_operand.vmem [shape: bf16[4,128], index: 1, kind: input, shape index: {}]
  %s2 = inlined_call_operand.vmem [shape: f32[1,128], index: 2, kind: input, shape index: {}]
  %s3 = inlined_call_operand.vmem [shape: f32[1,2,128], index: 3, kind: output, shape index: {}]
  %s4 = sld [smem:[#allocation0]]
  $region22: #{block_forward.4} parent=0
    _
  %s6 = ssub.s32 1, %s4
  %s7 = scalar_select 0, %s6, %s4
  // Predicated region
  $region2: #{block_forward.4} parent=0 // pred_check
    _
  $region3: #{block_forward.4} parent=0 // pred_check_branch
    %9 = sbr.rel (0) target = $region5
  $region4: #{block_forward.4} parent=0 // pred_region
    _
  $region5: #{block_forward.4} parent=0 // pred_fallthru
    _
  // Predicated region
  $region6: #{block_forward.4} parent=0 // pred_check
    _
  $region7: #{block_forward.4} parent=0 // pred_check_branch
    %11 = sbr.rel (0) target = $region9
  $region8: #{block_forward.4} parent=0 // pred_region
    _
  $region9: #{block_forward.4} parent=0 // pred_fallthru
    _
  // Predicated region
  $region10: #{block_forward.4} parent=0 // pred_check
    _
  $region11: #{block_forward.4} parent=0 // pred_check_branch
    %13 = sbr.rel (0) target = $region13
  $region12: #{block_forward.4} parent=0 // pred_region
    _
  $region13: #{block_forward.4} parent=0 // pred_fallthru
    _
  %v15 = vld [vmem:[%s0] sm:$0xf]
  %v16 = vld [vmem:[%s0 + $0x4] sm:$0xf]
  %v17 = vld [vmem:[%s0 + $0x8] sm:$0xf]
  %v18 = vld [vmem:[%s0 + $0xc] sm:$0xf]
  %v19 = vld [vmem:[%s0 + $0x10] sm:$0xf]
  %v20 = vld [vmem:[%s0 + $0x14] sm:$0xf]
  %v21 = vld [vmem:[%s0 + $0x18] sm:$0xf]
  %v22 = vld [vmem:[%s0 + $0x1c] sm:$0xf]
  %v23 = vld [vmem:[%s0 + $0x20] sm:$0xf]
  %v24 = vld [vmem:[%s0 + $0x24] sm:$0xf]
  %v25 = vld [vmem:[%s0 + $0x28] sm:$0xf]
  %v26 = vld [vmem:[%s0 + $0x2c] sm:$0xf]
  %v27 = vld [vmem:[%s0 + $0x30] sm:$0xf]
  %v28 = vld [vmem:[%s0 + $0x34] sm:$0xf]
  %v29 = vld [vmem:[%s0 + $0x38] sm:$0xf]
  %v30 = vld [vmem:[%s0 + $0x3c] sm:$0xf]
  %v31 = vld [vmem:[%s0 + $0x40] sm:$0xf]
  %v32 = vld [vmem:[%s0 + $0x44] sm:$0xf]
  %v33 = vld [vmem:[%s0 + $0x48] sm:$0xf]
  %v34 = vld [vmem:[%s0 + $0x4c] sm:$0xf]
  %v35 = vld [vmem:[%s0 + $0x50] sm:$0xf]
  %v36 = vld [vmem:[%s0 + $0x54] sm:$0xf]
  %v37 = vld [vmem:[%s0 + $0x58] sm:$0xf]
  %v38 = vld [vmem:[%s0 + $0x5c] sm:$0xf]
  %v39 = vld [vmem:[%s0 + $0x60] sm:$0xf]
  %v40 = vld [vmem:[%s0 + $0x64] sm:$0xf]
  %v41 = vld [vmem:[%s0 + $0x68] sm:$0xf]
  %v42 = vld [vmem:[%s0 + $0x6c] sm:$0xf]
  %v43 = vld [vmem:[%s0 + $0x70] sm:$0xf]
  %v44 = vld [vmem:[%s0 + $0x74] sm:$0xf]
  %v45 = vld [vmem:[%s0 + $0x78] sm:$0xf]
  %v46 = vld [vmem:[%s0 + $0x7c] sm:$0xf]
  %v47 = vld [vmem:[%s0 + $0x80] sm:$0xf]
  %v48 = vld [vmem:[%s0 + $0x84] sm:$0xf]
  %v49 = vld [vmem:[%s0 + $0x88] sm:$0xf]
  %v50 = vld [vmem:[%s0 + $0x8c] sm:$0xf]
  %v51 = vld [vmem:[%s0 + $0x90] sm:$0xf]
  %v52 = vld [vmem:[%s0 + $0x94] sm:$0xf]
  %v53 = vld [vmem:[%s0 + $0x98] sm:$0xf]
  %v54 = vld [vmem:[%s0 + $0x9c] sm:$0xf]
  %v55 = vld [vmem:[%s0 + $0xa0] sm:$0xf]
  %v56 = vld [vmem:[%s0 + $0xa4] sm:$0xf]
  %v57 = vld [vmem:[%s0 + $0xa8] sm:$0xf]
  %v58 = vld [vmem:[%s0 + $0xac] sm:$0xf]
  %v59 = vld [vmem:[%s0 + $0xb0] sm:$0xf]
  %v60 = vld [vmem:[%s0 + $0xb4] sm:$0xf]
  %v61 = vld [vmem:[%s0 + $0xb8] sm:$0xf]
  %v62 = vld [vmem:[%s0 + $0xbc] sm:$0xf]
  %v63 = vld [vmem:[%s0 + $0xc0] sm:$0xf]
  %v64 = vld [vmem:[%s0 + $0xc4] sm:$0xf]
  %v65 = vld [vmem:[%s0 + $0xc8] sm:$0xf]
  %v66 = vld [vmem:[%s0 + $0xcc] sm:$0xf]
  %v67 = vld [vmem:[%s0 + $0xd0] sm:$0xf]
  %v68 = vld [vmem:[%s0 + $0xd4] sm:$0xf]
  %v69 = vld [vmem:[%s0 + $0xd8] sm:$0xf]
  %v70 = vld [vmem:[%s0 + $0xdc] sm:$0xf]
  %v71 = vld [vmem:[%s0 + $0xe0] sm:$0xf]
  %v72 = vld [vmem:[%s0 + $0xe4] sm:$0xf]
  %v73 = vld [vmem:[%s0 + $0xe8] sm:$0xf]
  %v74 = vld [vmem:[%s0 + $0xec] sm:$0xf]
  %v75 = vld [vmem:[%s0 + $0xf0] sm:$0xf]
  %v76 = vld [vmem:[%s0 + $0xf4] sm:$0xf]
  %v77 = vld [vmem:[%s0 + $0xf8] sm:$0xf]
  %v78 = vld [vmem:[%s0 + $0xfc] sm:$0xf]
  %v79 = vld [vmem:[%s1] sm:$0x3]
  %v80 = vld [vmem:[%s2] sm:$0x1]
  %v82 = vlaneseq
  %v83 = vshrl.u32 %v82, 7
  %v84 = vsub.s32 0, %v83
  %v85 = vrot.slane %v80, %v84
  %v151 = vunpack.c.l.b16 %v15
  %v152 = vunpack.c.l.b16 %v16
  %v153 = vunpack.c.l.b16 %v17
  %v154 = vunpack.c.l.b16 %v18
  %v155 = vunpack.c.l.b16 %v19
  %v156 = vunpack.c.l.b16 %v20
  %v157 = vunpack.c.l.b16 %v21
  %v158 = vunpack.c.l.b16 %v22
  %v159 = vunpack.c.l.b16 %v23
  %v160 = vunpack.c.l.b16 %v24
  %v161 = vunpack.c.l.b16 %v25
  %v162 = vunpack.c.l.b16 %v26
  %v163 = vunpack.c.l.b16 %v27
  %v164 = vunpack.c.l.b16 %v28
  %v165 = vunpack.c.l.b16 %v29
  %v166 = vunpack.c.l.b16 %v30
  %v167 = vunpack.c.l.b16 %v31
  %v168 = vunpack.c.l.b16 %v32
  %v169 = vunpack.c.l.b16 %v33
  %v170 = vunpack.c.l.b16 %v34
  %v171 = vunpack.c.l.b16 %v35
  %v172 = vunpack.c.l.b16 %v36
  %v173 = vunpack.c.l.b16 %v37
  %v174 = vunpack.c.l.b16 %v38
  %v175 = vunpack.c.l.b16 %v39
  %v176 = vunpack.c.l.b16 %v40
  %v177 = vunpack.c.l.b16 %v41
  %v178 = vunpack.c.l.b16 %v42
  %v179 = vunpack.c.l.b16 %v43
  %v180 = vunpack.c.l.b16 %v44
  %v181 = vunpack.c.l.b16 %v45
  %v182 = vunpack.c.l.b16 %v46
  %v183 = vunpack.c.l.b16 %v47
  %v184 = vunpack.c.l.b16 %v48
  %v185 = vunpack.c.l.b16 %v49
  %v186 = vunpack.c.l.b16 %v50
  %v187 = vunpack.c.l.b16 %v51
  %v188 = vunpack.c.l.b16 %v52
  %v189 = vunpack.c.l.b16 %v53
  %v190 = vunpack.c.l.b16 %v54
  %v191 = vunpack.c.l.b16 %v55
  %v192 = vunpack.c.l.b16 %v56
  %v193 = vunpack.c.l.b16 %v57
  %v194 = vunpack.c.l.b16 %v58
  %v195 = vunpack.c.l.b16 %v59
  %v196 = vunpack.c.l.b16 %v60
  %v197 = vunpack.c.l.b16 %v61
  %v198 = vunpack.c.l.b16 %v62
  %v199 = vunpack.c.l.b16 %v63
  %v200 = vunpack.c.l.b16 %v64
  %v201 = vunpack.c.l.b16 %v65
  %v202 = vunpack.c.l.b16 %v66
  %v203 = vunpack.c.l.b16 %v67
  %v204 = vunpack.c.l.b16 %v68
  %v205 = vunpack.c.l.b16 %v69
  %v206 = vunpack.c.l.b16 %v70
  %v207 = vunpack.c.l.b16 %v71
  %v208 = vunpack.c.l.b16 %v72
  %v209 = vunpack.c.l.b16 %v73
  %v210 = vunpack.c.l.b16 %v74
  %v211 = vunpack.c.l.b16 %v75
  %v212 = vunpack.c.l.b16 %v76
  %v213 = vunpack.c.l.b16 %v77
  %v214 = vunpack.c.l.b16 %v78
  %v215 = vpack.c.b16 %v152, %v151
  %v216 = vpack.c.b16 %v154, %v153
  %v217 = vpack.c.b16 %v156, %v155
  %v218 = vpack.c.b16 %v158, %v157
  %v219 = vpack.c.b16 %v160, %v159
  %v220 = vpack.c.b16 %v162, %v161
  %v221 = vpack.c.b16 %v164, %v163
  %v222 = vpack.c.b16 %v166, %v165
  %v223 = vpack.c.b16 %v168, %v167
  %v224 = vpack.c.b16 %v170, %v169
  %v225 = vpack.c.b16 %v172, %v171
  %v226 = vpack.c.b16 %v174, %v173
  %v227 = vpack.c.b16 %v176, %v175
  %v228 = vpack.c.b16 %v178, %v177
  %v229 = vpack.c.b16 %v180, %v179
  %v230 = vpack.c.b16 %v182, %v181
  %v231 = vpack.c.b16 %v184, %v183
  %v232 = vpack.c.b16 %v186, %v185
  %v233 = vpack.c.b16 %v188, %v187
  %v234 = vpack.c.b16 %v190, %v189
  %v235 = vpack.c.b16 %v192, %v191
  %v236 = vpack.c.b16 %v194, %v193
  %v237 = vpack.c.b16 %v196, %v195
  %v238 = vpack.c.b16 %v198, %v197
  %v239 = vpack.c.b16 %v200, %v199
  %v240 = vpack.c.b16 %v202, %v201
  %v241 = vpack.c.b16 %v204, %v203
  %v242 = vpack.c.b16 %v206, %v205
  %v243 = vpack.c.b16 %v208, %v207
  %v244 = vpack.c.b16 %v210, %v209
  %v245 = vpack.c.b16 %v212, %v211
  %v246 = vpack.c.b16 %v214, %v213
  %vm247 = vcmask 31744
  %v249 = vsel %vm247, %v215, 0
  %v252 = vsel %vm247, %v216, 0
  %v255 = vsel %vm247, %v217, 0
  %v258 = vsel %vm247, %v218, 0
  %v261 = vsel %vm247, %v219, 0
  %v264 = vsel %vm247, %v220, 0
  %v267 = vsel %vm247, %v221, 0
  %v270 = vsel %vm247, %v222, 0
  %v273 = vsel %vm247, %v223, 0
  %v276 = vsel %vm247, %v224, 0
  %v279 = vsel %vm247, %v225, 0
  %v282 = vsel %vm247, %v226, 0
  %v285 = vsel %vm247, %v227, 0
  %v288 = vsel %vm247, %v228, 0
  %v291 = vsel %vm247, %v229, 0
  %v294 = vsel %vm247, %v230, 0
  %v297 = vsel %vm247, %v231, 0
  %v300 = vsel %vm247, %v232, 0
  %v303 = vsel %vm247, %v233, 0
  %v306 = vsel %vm247, %v234, 0
  %v309 = vsel %vm247, %v235, 0
  %v312 = vsel %vm247, %v236, 0
  %v315 = vsel %vm247, %v237, 0
  %v318 = vsel %vm247, %v238, 0
  %v321 = vsel %vm247, %v239, 0
  %v324 = vsel %vm247, %v240, 0
  %v327 = vsel %vm247, %v241, 0
  %v330 = vsel %vm247, %v242, 0
  %v333 = vsel %vm247, %v243, 0
  %v336 = vsel %vm247, %v244, 0
  %v339 = vsel %vm247, %v245, 0
  %v342 = vsel %vm247, %v246, 0
  %vm344 = vcmask 1041408
  %v346 = vsel %vm344, %v79, 0
  %348 = vmatprep.subr.bf16.mxu0 0
  %349 = vmatpush1.bf16.msra.mxu0 %v346
  %350 = vmatprep.subr.bf16.mxu0 0
  %351 = vmatpush1.bf16.msra.mxu0 0
  %352 = vmatprep.subr.bf16.mxu0 0
  %353 = vmatpush1.bf16.msra.mxu0 0
  %354 = vmatprep.subr.bf16.mxu0 0
  %355 = vmatpush1.bf16.msra.mxu0 0
  %356 = vmatprep.subr.bf16.mxu0 0
  %357 = vmatpush1.bf16.msra.mxu0 0
  %358 = vmatprep.subr.bf16.mxu0 0
  %359 = vmatpush1.bf16.msra.mxu0 0
  %360 = vmatprep.subr.bf16.mxu0 0
  %361 = vmatpush1.bf16.msra.mxu0 0
  %362 = vmatprep.subr.bf16.mxu0 0
  %363 = vmatpush1.bf16.msra.mxu0 0
  %364 = vmatprep.subr.bf16.mxu0 0
  %365 = vmatpush1.bf16.msra.mxu0 0
  %366 = vmatprep.subr.bf16.mxu0 0
  %367 = vmatpush1.bf16.msra.mxu0 0
  %368 = vmatprep.subr.bf16.mxu0 0
  %369 = vmatpush1.bf16.msra.mxu0 0
  %370 = vmatprep.subr.bf16.mxu0 0
  %371 = vmatpush1.bf16.msra.mxu0 0
  %372 = vmatprep.subr.bf16.mxu0 0
  %373 = vmatpush1.bf16.msra.mxu0 0
  %374 = vmatprep.subr.bf16.mxu0 0
  %375 = vmatpush1.bf16.msra.mxu0 0
  %376 = vmatprep.subr.bf16.mxu0 0
  %377 = vmatpush1.bf16.msra.mxu0 0
  %378 = vmatprep.subr.bf16.mxu0 0
  %379 = vmatpush1.bf16.msra.mxu0 0
  %380 = vmatprep.mubr.bf16.mxu0 0
  %381 = vmatmul.mubr.bf16.gmra.mrb[0].mxu0 %v249
  %v382 = vpop.f32.mrb[0].mxu0
  %v383 = vadd.f32 %v85, %v382
  %v384 = vpop.f32.mrb[0].mxu0
  %v385 = vpop.f32.mrb[0].mxu0
  %v386 = vadd.f32 %v85, %v385
  %v387 = vpop.f32.mrb[0].mxu0
  %388 = vmatprep.mubr.bf16.mxu0 0
  %389 = vmatmul.mubr.bf16.gmra.mrb[0].mxu0 %v252
  %v390 = vpop.f32.mrb[0].mxu0
  %v391 = vadd.f32 %v85, %v390
  %v392 = vpop.f32.mrb[0].mxu0
  %v393 = vpop.f32.mrb[0].mxu0
  %v394 = vadd.f32 %v85, %v393
  %v395 = vpop.f32.mrb[0].mxu0
  %396 = vmatprep.mubr.bf16.mxu0 0
  %397 = vmatmul.mubr.bf16.gmra.mrb[0].mxu0 %v255
  %v398 = vpop.f32.mrb[0].mxu0
  %v399 = vadd.f32 %v85, %v398
  %v400 = vpop.f32.mrb[0].mxu0
  %v401 = vpop.f32.mrb[0].mxu0
  %v402 = vadd.f32 %v85, %v401
  %v403 = vpop.f32.mrb[0].mxu0
  %404 = vmatprep.mubr.bf16.mxu0 0
  %405 = vmatmul.mubr.bf16.gmra.mrb[0].mxu0 %v258
  %v406 = vpop.f32.mrb[0].mxu0
  %v407 = vadd.f32 %v85, %v406
  %v408 = vpop.f32.mrb[0].mxu0
  %v409 = vpop.f32.mrb[0].mxu0
  %v410 = vadd.f32 %v85, %v409
  %v411 = vpop.f32.mrb[0].mxu0
  %412 = vmatprep.mubr.bf16.mxu0 0
  %413 = vmatmul.mubr.bf16.gmra.mrb[0].mxu0 %v261
  %v414 = vpop.f32.mrb[0].mxu0
  %v415 = vadd.f32 %v85, %v414
  %v416 = vpop.f32.mrb[0].mxu0
  %v417 = vpop.f32.mrb[0].mxu0
  %v418 = vadd.f32 %v85, %v417
  %v419 = vpop.f32.mrb[0].mxu0
  %420 = vmatprep.mubr.bf16.mxu0 0
  %421 = vmatmul.mubr.bf16.gmra.mrb[0].mxu0 %v264
  %v422 = vpop.f32.mrb[0].mxu0
  %v423 = vadd.f32 %v85, %v422
  %v424 = vpop.f32.mrb[0].mxu0
  %v425 = vpop.f32.mrb[0].mxu0
  %v426 = vadd.f32 %v85, %v425
  %v427 = vpop.f32.mrb[0].mxu0
  %428 = vmatprep.mubr.bf16.mxu0 0
  %429 = vmatmul.mubr.bf16.gmra.mrb[0].mxu0 %v267
  %v430 = vpop.f32.mrb[0].mxu0
  %v431 = vadd.f32 %v85, %v430
  %v432 = vpop.f32.mrb[0].mxu0
  %v433 = vpop.f32.mrb[0].mxu0
  %v434 = vadd.f32 %v85, %v433
  %v435 = vpop.f32.mrb[0].mxu0
  %436 = vmatprep.mubr.bf16.mxu0 0
  %437 = vmatmul.mubr.bf16.gmra.mrb[0].mxu0 %v270
  %v438 = vpop.f32.mrb[0].mxu0
  %v439 = vadd.f32 %v85, %v438
  %v440 = vpop.f32.mrb[0].mxu0
  %v441 = vpop.f32.mrb[0].mxu0
  %v442 = vadd.f32 %v85, %v441
  %v443 = vpop.f32.mrb[0].mxu0
  %444 = vmatprep.mubr.bf16.mxu0 0
  %445 = vmatmul.mubr.bf16.gmra.mrb[0].mxu0 %v273
  %v446 = vpop.f32.mrb[0].mxu0
  %v447 = vadd.f32 %v85, %v446
  %v448 = vpop.f32.mrb[0].mxu0
  %v449 = vpop.f32.mrb[0].mxu0
  %v450 = vadd.f32 %v85, %v449
  %v451 = vpop.f32.mrb[0].mxu0
  %452 = vmatprep.mubr.bf16.mxu0 0
  %453 = vmatmul.mubr.bf16.gmra.mrb[0].mxu0 %v276
  %v454 = vpop.f32.mrb[0].mxu0
  %v455 = vadd.f32 %v85, %v454
  %v456 = vpop.f32.mrb[0].mxu0
  %v457 = vpop.f32.mrb[0].mxu0
  %v458 = vadd.f32 %v85, %v457
  %v459 = vpop.f32.mrb[0].mxu0
  %460 = vmatprep.mubr.bf16.mxu0 0
  %461 = vmatmul.mubr.bf16.gmra.mrb[0].mxu0 %v279
  %v462 = vpop.f32.mrb[0].mxu0
  %v463 = vadd.f32 %v85, %v462
  %v464 = vpop.f32.mrb[0].mxu0
  %v465 = vpop.f32.mrb[0].mxu0
  %v466 = vadd.f32 %v85, %v465
  %v467 = vpop.f32.mrb[0].mxu0
  %468 = vmatprep.mubr.bf16.mxu0 0
  %469 = vmatmul.mubr.bf16.gmra.mrb[0].mxu0 %v282
  %v470 = vpop.f32.mrb[0].mxu0
  %v471 = vadd.f32 %v85, %v470
  %v472 = vpop.f32.mrb[0].mxu0
  %v473 = vpop.f32.mrb[0].mxu0
  %v474 = vadd.f32 %v85, %v473
  %v475 = vpop.f32.mrb[0].mxu0
  %476 = vmatprep.mubr.bf16.mxu0 0
  %477 = vmatmul.mubr.bf16.gmra.mrb[0].mxu0 %v285
  %v478 = vpop.f32.mrb[0].mxu0
  %v479 = vadd.f32 %v85, %v478
  %v480 = vpop.f32.mrb[0].mxu0
  %v481 = vpop.f32.mrb[0].mxu0
  %v482 = vadd.f32 %v85, %v481
  %v483 = vpop.f32.mrb[0].mxu0
  %484 = vmatprep.mubr.bf16.mxu0 0
  %485 = vmatmul.mubr.bf16.gmra.mrb[0].mxu0 %v288
  %v486 = vpop.f32.mrb[0].mxu0
  %v487 = vadd.f32 %v85, %v486
  %v488 = vpop.f32.mrb[0].mxu0
  %v489 = vpop.f32.mrb[0].mxu0
  %v490 = vadd.f32 %v85, %v489
  %v491 = vpop.f32.mrb[0].mxu0
  %492 = vmatprep.mubr.bf16.mxu0 0
  %493 = vmatmul.mubr.bf16.gmra.mrb[0].mxu0 %v291
  %v494 = vpop.f32.mrb[0].mxu0
  %v495 = vadd.f32 %v85, %v494
  %v496 = vpop.f32.mrb[0].mxu0
  %v497 = vpop.f32.mrb[0].mxu0
  %v498 = vadd.f32 %v85, %v497
  %v499 = vpop.f32.mrb[0].mxu0
  %500 = vmatprep.mubr.bf16.mxu0 0
  %501 = vmatmul.mubr.bf16.gmra.mrb[0].mxu0 %v294
  %v502 = vpop.f32.mrb[0].mxu0
  %v503 = vadd.f32 %v85, %v502
  %v504 = vpop.f32.mrb[0].mxu0
  %v505 = vpop.f32.mrb[0].mxu0
  %v506 = vadd.f32 %v85, %v505
  %v507 = vpop.f32.mrb[0].mxu0
  %508 = vmatprep.mubr.bf16.mxu0 0
  %509 = vmatmul.mubr.bf16.gmra.mrb[0].mxu0 %v297
  %v510 = vpop.f32.mrb[0].mxu0
  %v511 = vadd.f32 %v85, %v510
  %v512 = vpop.f32.mrb[0].mxu0
  %v513 = vpop.f32.mrb[0].mxu0
  %v514 = vadd.f32 %v85, %v513
  %v515 = vpop.f32.mrb[0].mxu0
  %516 = vmatprep.mubr.bf16.mxu0 0
  %517 = vmatmul.mubr.bf16.gmra.mrb[0].mxu0 %v300
  %v518 = vpop.f32.mrb[0].mxu0
  %v519 = vadd.f32 %v85, %v518
  %v520 = vpop.f32.mrb[0].mxu0
  %v521 = vpop.f32.mrb[0].mxu0
  %v522 = vadd.f32 %v85, %v521
  %v523 = vpop.f32.mrb[0].mxu0
  %524 = vmatprep.mubr.bf16.mxu0 0
  %525 = vmatmul.mubr.bf16.gmra.mrb[0].mxu0 %v303
  %v526 = vpop.f32.mrb[0].mxu0
  %v527 = vadd.f32 %v85, %v526
  %v528 = vpop.f32.mrb[0].mxu0
  %v529 = vpop.f32.mrb[0].mxu0
  %v530 = vadd.f32 %v85, %v529
  %v531 = vpop.f32.mrb[0].mxu0
  %532 = vmatprep.mubr.bf16.mxu0 0
  %533 = vmatmul.mubr.bf16.gmra.mrb[0].mxu0 %v306
  %v534 = vpop.f32.mrb[0].mxu0
  %v535 = vadd.f32 %v85, %v534
  %v536 = vpop.f32.mrb[0].mxu0
  %v537 = vpop.f32.mrb[0].mxu0
  %v538 = vadd.f32 %v85, %v537
  %v539 = vpop.f32.mrb[0].mxu0
  %540 = vmatprep.mubr.bf16.mxu0 0
  %541 = vmatmul.mubr.bf16.gmra.mrb[0].mxu0 %v309
  %v542 = vpop.f32.mrb[0].mxu0
  %v543 = vadd.f32 %v85, %v542
  %v544 = vpop.f32.mrb[0].mxu0
  %v545 = vpop.f32.mrb[0].mxu0
  %v546 = vadd.f32 %v85, %v545
  %v547 = vpop.f32.mrb[0].mxu0
  %548 = vmatprep.mubr.bf16.mxu0 0
  %549 = vmatmul.mubr.bf16.gmra.mrb[0].mxu0 %v312
  %v550 = vpop.f32.mrb[0].mxu0
  %v551 = vadd.f32 %v85, %v550
  %v552 = vpop.f32.mrb[0].mxu0
  %v553 = vpop.f32.mrb[0].mxu0
  %v554 = vadd.f32 %v85, %v553
  %v555 = vpop.f32.mrb[0].mxu0
  %556 = vmatprep.mubr.bf16.mxu0 0
  %557 = vmatmul.mubr.bf16.gmra.mrb[0].mxu0 %v315
  %v558 = vpop.f32.mrb[0].mxu0
  %v559 = vadd.f32 %v85, %v558
  %v560 = vpop.f32.mrb[0].mxu0
  %v561 = vpop.f32.mrb[0].mxu0
  %v562 = vadd.f32 %v85, %v561
  %v563 = vpop.f32.mrb[0].mxu0
  %564 = vmatprep.mubr.bf16.mxu0 0
  %565 = vmatmul.mubr.bf16.gmra.mrb[0].mxu0 %v318
  %v566 = vpop.f32.mrb[0].mxu0
  %v567 = vadd.f32 %v85, %v566
  %v568 = vpop.f32.mrb[0].mxu0
  %v569 = vpop.f32.mrb[0].mxu0
  %v570 = vadd.f32 %v85, %v569
  %v571 = vpop.f32.mrb[0].mxu0
  %572 = vmatprep.mubr.bf16.mxu0 0
  %573 = vmatmul.mubr.bf16.gmra.mrb[0].mxu0 %v321
  %v574 = vpop.f32.mrb[0].mxu0
  %v575 = vadd.f32 %v85, %v574
  %v576 = vpop.f32.mrb[0].mxu0
  %v577 = vpop.f32.mrb[0].mxu0
  %v578 = vadd.f32 %v85, %v577
  %v579 = vpop.f32.mrb[0].mxu0
  %580 = vmatprep.mubr.bf16.mxu0 0
  %581 = vmatmul.mubr.bf16.gmra.mrb[0].mxu0 %v324
  %v582 = vpop.f32.mrb[0].mxu0
  %v583 = vadd.f32 %v85, %v582
  %v584 = vpop.f32.mrb[0].mxu0
  %v585 = vpop.f32.mrb[0].mxu0
  %v586 = vadd.f32 %v85, %v585
  %v587 = vpop.f32.mrb[0].mxu0
  %588 = vmatprep.mubr.bf16.mxu0 0
  %589 = vmatmul.mubr.bf16.gmra.mrb[0].mxu0 %v327
  %v590 = vpop.f32.mrb[0].mxu0
  %v591 = vadd.f32 %v85, %v590
  %v592 = vpop.f32.mrb[0].mxu0
  %v593 = vpop.f32.mrb[0].mxu0
  %v594 = vadd.f32 %v85, %v593
  %v595 = vpop.f32.mrb[0].mxu0
  %596 = vmatprep.mubr.bf16.mxu0 0
  %597 = vmatmul.mubr.bf16.gmra.mrb[0].mxu0 %v330
  %v598 = vpop.f32.mrb[0].mxu0
  %v599 = vadd.f32 %v85, %v598
  %v600 = vpop.f32.mrb[0].mxu0
  %v601 = vpop.f32.mrb[0].mxu0
  %v602 = vadd.f32 %v85, %v601
  %v603 = vpop.f32.mrb[0].mxu0
  %604 = vmatprep.mubr.bf16.mxu0 0
  %605 = vmatmul.mubr.bf16.gmra.mrb[0].mxu0 %v333
  %v606 = vpop.f32.mrb[0].mxu0
  %v607 = vadd.f32 %v85, %v606
  %v608 = vpop.f32.mrb[0].mxu0
  %v609 = vpop.f32.mrb[0].mxu0
  %v610 = vadd.f32 %v85, %v609
  %v611 = vpop.f32.mrb[0].mxu0
  %612 = vmatprep.mubr.bf16.mxu0 0
  %613 = vmatmul.mubr.bf16.gmra.mrb[0].mxu0 %v336
  %v614 = vpop.f32.mrb[0].mxu0
  %v615 = vadd.f32 %v85, %v614
  %v616 = vpop.f32.mrb[0].mxu0
  %v617 = vpop.f32.mrb[0].mxu0
  %v618 = vadd.f32 %v85, %v617
  %v619 = vpop.f32.mrb[0].mxu0
  %620 = vmatprep.mubr.bf16.mxu0 0
  %621 = vmatmul.mubr.bf16.gmra.mrb[0].mxu0 %v339
  %v622 = vpop.f32.mrb[0].mxu0
  %v623 = vadd.f32 %v85, %v622
  %v624 = vpop.f32.mrb[0].mxu0
  %v625 = vpop.f32.mrb[0].mxu0
  %v626 = vadd.f32 %v85, %v625
  %v627 = vpop.f32.mrb[0].mxu0
  %628 = vmatprep.mubr.bf16.mxu0 0
  %629 = vmatmul.mubr.bf16.gmra.mrb[0].mxu0 %v342
  %v630 = vpop.f32.mrb[0].mxu0
  %v631 = vadd.f32 %v85, %v630
  %v632 = vpop.f32.mrb[0].mxu0
  %v633 = vpop.f32.mrb[0].mxu0
  %v634 = vadd.f32 %v85, %v633
  %v635 = vpop.f32.mrb[0].mxu0
  %636 = vdwg.mxu0
  %v637 = vadd.f32 %v383, %v386
  %v638 = vadd.f32 %v637, %v391
  %v639 = vadd.f32 %v638, %v394
  %v640 = vadd.f32 %v639, %v399
  %v641 = vadd.f32 %v640, %v402
  %v642 = vadd.f32 %v641, %v407
  %v643 = vadd.f32 %v642, %v410
  %v644 = vadd.f32 %v643, %v415
  %v645 = vadd.f32 %v644, %v418
  %v646 = vadd.f32 %v645, %v423
  %v647 = vadd.f32 %v646, %v426
  %v648 = vadd.f32 %v647, %v431
  %v649 = vadd.f32 %v648, %v434
  %v650 = vadd.f32 %v649, %v439
  %v651 = vadd.f32 %v650, %v442
  %v652 = vadd.f32 %v651, %v447
  %v653 = vadd.f32 %v652, %v450
  %v654 = vadd.f32 %v653, %v455
  %v655 = vadd.f32 %v654, %v458
  %v656 = vadd.f32 %v655, %v463
  %v657 = vadd.f32 %v656, %v466
  %v658 = vadd.f32 %v657, %v471
  %v659 = vadd.f32 %v658, %v474
  %v660 = vadd.f32 %v659, %v479
  %v661 = vadd.f32 %v660, %v482
  %v662 = vadd.f32 %v661, %v487
  %v663 = vadd.f32 %v662, %v490
  %v664 = vadd.f32 %v663, %v495
  %v665 = vadd.f32 %v664, %v498
  %v666 = vadd.f32 %v665, %v503
  %v667 = vadd.f32 %v666, %v506
  %v668 = vadd.f32 %v667, %v511
  %v669 = vadd.f32 %v668, %v514
  %v670 = vadd.f32 %v669, %v519
  %v671 = vadd.f32 %v670, %v522
  %v672 = vadd.f32 %v671, %v527
  %v673 = vadd.f32 %v672, %v530
  %v674 = vadd.f32 %v673, %v535
  %v675 = vadd.f32 %v674, %v538
  %v676 = vadd.f32 %v675, %v543
  %v677 = vadd.f32 %v676, %v546
  %v678 = vadd.f32 %v677, %v551
  %v679 = vadd.f32 %v678, %v554
  %v680 = vadd.f32 %v679, %v559
  %v681 = vadd.f32 %v680, %v562
  %v682 = vadd.f32 %v681, %v567
  %v683 = vadd.f32 %v682, %v570
  %v684 = vadd.f32 %v683, %v575
  %v685 = vadd.f32 %v684, %v578
  %v686 = vadd.f32 %v685, %v583
  %v687 = vadd.f32 %v686, %v586
  %v688 = vadd.f32 %v687, %v591
  %v689 = vadd.f32 %v688, %v594
  %v690 = vadd.f32 %v689, %v599
  %v691 = vadd.f32 %v690, %v602
  %v692 = vadd.f32 %v691, %v607
  %v693 = vadd.f32 %v692, %v610
  %v694 = vadd.f32 %v693, %v615
  %v695 = vadd.f32 %v694, %v618
  %v696 = vadd.f32 %v695, %v623
  %v697 = vadd.f32 %v696, %v626
  %v698 = vadd.f32 %v697, %v631
  %v699 = vadd.f32 %v698, %v634
  %v700 = vrot.slane %v699, 4
  %v701 = vadd.f32 %v699, %v700
  %v702 = vrot.slane %v701, 2
  %v703 = vadd.f32 %v701, %v702
  %v704 = vrot.slane %v703, 1
  %v705 = vadd.f32 %v703, %v704
  %v706 = vmul.f32 %v383, %v383
  %v707 = vmul.f32 %v386, %v386
  %v708 = vmul.f32 %v391, %v391
  %v709 = vmul.f32 %v394, %v394
  %v710 = vmul.f32 %v399, %v399
  %v711 = vmul.f32 %v402, %v402
  %v712 = vmul.f32 %v407, %v407
  %v713 = vmul.f32 %v410, %v410
  %v714 = vmul.f32 %v415, %v415
  %v715 = vmul.f32 %v418, %v418
  %v716 = vmul.f32 %v423, %v423
  %v717 = vmul.f32 %v426, %v426
  %v718 = vmul.f32 %v431, %v431
  %v719 = vmul.f32 %v434, %v434
  %v720 = vmul.f32 %v439, %v439
  %v721 = vmul.f32 %v442, %v442
  %v722 = vmul.f32 %v447, %v447
  %v723 = vmul.f32 %v450, %v450
  %v724 = vmul.f32 %v455, %v455
  %v725 = vmul.f32 %v458, %v458
  %v726 = vmul.f32 %v463, %v463
  %v727 = vmul.f32 %v466, %v466
  %v728 = vmul.f32 %v471, %v471
  %v729 = vmul.f32 %v474, %v474
  %v730 = vmul.f32 %v479, %v479
  %v731 = vmul.f32 %v482, %v482
  %v732 = vmul.f32 %v487, %v487
  %v733 = vmul.f32 %v490, %v490
  %v734 = vmul.f32 %v495, %v495
  %v735 = vmul.f32 %v498, %v498
  %v736 = vmul.f32 %v503, %v503
  %v737 = vmul.f32 %v506, %v506
  %v738 = vmul.f32 %v511, %v511
  %v739 = vmul.f32 %v514, %v514
  %v740 = vmul.f32 %v519, %v519
  %v741 = vmul.f32 %v522, %v522
  %v742 = vmul.f32 %v527, %v527
  %v743 = vmul.f32 %v530, %v530
  %v744 = vmul.f32 %v535, %v535
  %v745 = vmul.f32 %v538, %v538
  %v746 = vmul.f32 %v543, %v543
  %v747 = vmul.f32 %v546, %v546
  %v748 = vmul.f32 %v551, %v551
  %v749 = vmul.f32 %v554, %v554
  %v750 = vmul.f32 %v559, %v559
  %v751 = vmul.f32 %v562, %v562
  %v752 = vmul.f32 %v567, %v567
  %v753 = vmul.f32 %v570, %v570
  %v754 = vmul.f32 %v575, %v575
  %v755 = vmul.f32 %v578, %v578
  %v756 = vmul.f32 %v583, %v583
  %v757 = vmul.f32 %v586, %v586
  %v758 = vmul.f32 %v591, %v591
  %v759 = vmul.f32 %v594, %v594
  %v760 = vmul.f32 %v599, %v599
  %v761 = vmul.f32 %v602, %v602
  %v762 = vmul.f32 %v607, %v607
  %v763 = vmul.f32 %v610, %v610
  %v764 = vmul.f32 %v615, %v615
  %v765 = vmul.f32 %v618, %v618
  %v766 = vmul.f32 %v623, %v623
  %v767 = vmul.f32 %v626, %v626
  %v768 = vmul.f32 %v631, %v631
  %v769 = vmul.f32 %v634, %v634
  %v770 = vadd.f32 %v706, %v707
  %v771 = vadd.f32 %v770, %v708
  %v772 = vadd.f32 %v771, %v709
  %v773 = vadd.f32 %v772, %v710
  %v774 = vadd.f32 %v773, %v711
  %v775 = vadd.f32 %v774, %v712
  %v776 = vadd.f32 %v775, %v713
  %v777 = vadd.f32 %v776, %v714
  %v778 = vadd.f32 %v777, %v715
  %v779 = vadd.f32 %v778, %v716
  %v780 = vadd.f32 %v779, %v717
  %v781 = vadd.f32 %v780, %v718
  %v782 = vadd.f32 %v781, %v719
  %v783 = vadd.f32 %v782, %v720
  %v784 = vadd.f32 %v783, %v721
  %v785 = vadd.f32 %v784, %v722
  %v786 = vadd.f32 %v785, %v723
  %v787 = vadd.f32 %v786, %v724
  %v788 = vadd.f32 %v787, %v725
  %v789 = vadd.f32 %v788, %v726
  %v790 = vadd.f32 %v789, %v727
  %v791 = vadd.f32 %v790, %v728
  %v792 = vadd.f32 %v791, %v729
  %v793 = vadd.f32 %v792, %v730
  %v794 = vadd.f32 %v793, %v731
  %v795 = vadd.f32 %v794, %v732
  %v796 = vadd.f32 %v795, %v733
  %v797 = vadd.f32 %v796, %v734
  %v798 = vadd.f32 %v797, %v735
  %v799 = vadd.f32 %v798, %v736
  %v800 = vadd.f32 %v799, %v737
  %v801 = vadd.f32 %v800, %v738
  %v802 = vadd.f32 %v801, %v739
  %v803 = vadd.f32 %v802, %v740
  %v804 = vadd.f32 %v803, %v741
  %v805 = vadd.f32 %v804, %v742
  %v806 = vadd.f32 %v805, %v743
  %v807 = vadd.f32 %v806, %v744
  %v808 = vadd.f32 %v807, %v745
  %v809 = vadd.f32 %v808, %v746
  %v810 = vadd.f32 %v809, %v747
  %v811 = vadd.f32 %v810, %v748
  %v812 = vadd.f32 %v811, %v749
  %v813 = vadd.f32 %v812, %v750
  %v814 = vadd.f32 %v813, %v751
  %v815 = vadd.f32 %v814, %v752
  %v816 = vadd.f32 %v815, %v753
  %v817 = vadd.f32 %v816, %v754
  %v818 = vadd.f32 %v817, %v755
  %v819 = vadd.f32 %v818, %v756
  %v820 = vadd.f32 %v819, %v757
  %v821 = vadd.f32 %v820, %v758
  %v822 = vadd.f32 %v821, %v759
  %v823 = vadd.f32 %v822, %v760
  %v824 = vadd.f32 %v823, %v761
  %v825 = vadd.f32 %v824, %v762
  %v826 = vadd.f32 %v825, %v763
  %v827 = vadd.f32 %v826, %v764
  %v828 = vadd.f32 %v827, %v765
  %v829 = vadd.f32 %v828, %v766
  %v830 = vadd.f32 %v829, %v767
  %v831 = vadd.f32 %v830, %v768
  %v832 = vadd.f32 %v831, %v769
  %v833 = vrot.slane %v832, 4
  %v834 = vadd.f32 %v832, %v833
  %v835 = vrot.slane %v834, 2
  %v836 = vadd.f32 %v834, %v835
  %v837 = vrot.slane %v836, 1
  %v838 = vadd.f32 %v836, %v837
  %vm839 = vcmask 1040384
  %v840 = vsel %vm839, %v705, %v838
  %841 = vst [vmem:[%s3] sm:$0x3] %v840
  // Predicated region
  $region14: #{block_forward.4} parent=0 // pred_check
    _
  $region15: #{block_forward.4} parent=0 // pred_check_branch
    %843 = sbr.rel (0) target = $region17
  $region16: #{block_forward.4} parent=0 // pred_region
    _
  $region17: #{block_forward.4} parent=0 // pred_fallthru
    _
  // Predicated region
  $region18: #{block_forward.4} parent=0 // pred_check
    _
  $region19: #{block_forward.4} parent=0 // pred_check_branch
    %845 = sbr.rel (0) target = $region21
  $region20: #{block_forward.4} parent=0 // pred_region
    _
  $region21: #{block_forward.4} parent=0 // pred_fallthru
    _

// kernel: block_forward.6
$region0: #{block_forward.6}
  #allocation0 [shape = 'u32[]', space=smem, size = 0x4, offset = 0x4, fixed_abs, tag = 'smem constant byte address 0x4 - core index']
  #allocation1 [shape = 'u32[144,128]{1,0:T(1,128)}', space=vmem, size = 0x12000, scoped, tag = 'internal scratch']
  %s0 = inlined_call_operand.vmem [shape: bf16[512,4], index: 0, kind: input, shape index: {}]
  %s1 = inlined_call_operand.vmem [shape: bf16[4,128], index: 1, kind: input, shape index: {}]
  %s2 = inlined_call_operand.vmem [shape: f32[1,128], index: 2, kind: input, shape index: {}]
  %s3 = inlined_call_operand.vmem [shape: f32[1,128], index: 3, kind: input, shape index: {}]
  %s4 = inlined_call_operand.vmem [shape: f32[1,128], index: 4, kind: input, shape index: {}]
  %s5 = inlined_call_operand.vmem [shape: bf16[128,128], index: 5, kind: input, shape index: {}]
  %s6 = inlined_call_operand.vmem [shape: f32[1,128], index: 6, kind: input, shape index: {}]
  %s7 = inlined_call_operand.vmem [shape: bf16[512,128], index: 7, kind: output, shape index: {0}]
  %s8 = inlined_call_operand.vmem [shape: f32[1,2,128], index: 8, kind: output, shape index: {1}]
  %9 = xla_tuple %s7, %s8
  %s10 = sld [smem:[#allocation0]]
  $region46: #{block_forward.6} parent=0
    _
  %s12 = ssub.s32 1, %s10
  %s13 = scalar_select 0, %s12, %s10
  // Predicated region
  $region2: #{block_forward.6} parent=0 // pred_check
    _
  $region3: #{block_forward.6} parent=0 // pred_check_branch
    %15 = sbr.rel (0) target = $region5
  $region4: #{block_forward.6} parent=0 // pred_region
    _
  $region5: #{block_forward.6} parent=0 // pred_fallthru
    _
  // Predicated region
  $region6: #{block_forward.6} parent=0 // pred_check
    _
  $region7: #{block_forward.6} parent=0 // pred_check_branch
    %17 = sbr.rel (0) target = $region9
  $region8: #{block_forward.6} parent=0 // pred_region
    _
  $region9: #{block_forward.6} parent=0 // pred_fallthru
    _
  // Predicated region
  $region10: #{block_forward.6} parent=0 // pred_check
    _
  $region11: #{block_forward.6} parent=0 // pred_check_branch
    %19 = sbr.rel (0) target = $region13
  $region12: #{block_forward.6} parent=0 // pred_region
    _
  $region13: #{block_forward.6} parent=0 // pred_fallthru
    _
  // Predicated region
  $region14: #{block_forward.6} parent=0 // pred_check
    _
  $region15: #{block_forward.6} parent=0 // pred_check_branch
    %21 = sbr.rel (0) target = $region17
  $region16: #{block_forward.6} parent=0 // pred_region
    _
  $region17: #{block_forward.6} parent=0 // pred_fallthru
    _
  // Predicated region
  $region18: #{block_forward.6} parent=0 // pred_check
    _
  $region19: #{block_forward.6} parent=0 // pred_check_branch
    %23 = sbr.rel (0) target = $region21
  $region20: #{block_forward.6} parent=0 // pred_region
    _
  $region21: #{block_forward.6} parent=0 // pred_fallthru
    _
  // Predicated region
  $region22: #{block_forward.6} parent=0 // pred_check
    _
  $region23: #{block_forward.6} parent=0 // pred_check_branch
    %25 = sbr.rel (0) target = $region25
  $region24: #{block_forward.6} parent=0 // pred_region
    _
  $region25: #{block_forward.6} parent=0 // pred_fallthru
    _
  // Predicated region
  $region26: #{block_forward.6} parent=0 // pred_check
    _
  $region27: #{block_forward.6} parent=0 // pred_check_branch
    %27 = sbr.rel (0) target = $region29
  $region28: #{block_forward.6} parent=0 // pred_region
    _
  $region29: #{block_forward.6} parent=0 // pred_fallthru
    _
  %v29 = vld [vmem:[%s0] sm:$0xf]
  %v30 = vld [vmem:[%s0 + $0x4] sm:$0xf]
  %v31 = vld [vmem:[%s0 + $0x8] sm:$0xf]
  %v32 = vld [vmem:[%s0 + $0xc] sm:$0xf]
  %v33 = vld [vmem:[%s0 + $0x10] sm:$0xf]
  %v34 = vld [vmem:[%s0 + $0x14] sm:$0xf]
  %v35 = vld [vmem:[%s0 + $0x18] sm:$0xf]
  %v36 = vld [vmem:[%s0 + $0x1c] sm:$0xf]
  %v37 = vld [vmem:[%s0 + $0x20] sm:$0xf]
  %v38 = vld [vmem:[%s0 + $0x24] sm:$0xf]
  %v39 = vld [vmem:[%s0 + $0x28] sm:$0xf]
  %v40 = vld [vmem:[%s0 + $0x2c] sm:$0xf]
  %v41 = vld [vmem:[%s0 + $0x30] sm:$0xf]
  %v42 = vld [vmem:[%s0 + $0x34] sm:$0xf]
  %v43 = vld [vmem:[%s0 + $0x38] sm:$0xf]
  %v44 = vld [vmem:[%s0 + $0x3c] sm:$0xf]
  %v45 = vld [vmem:[%s0 + $0x40] sm:$0xf]
  %v46 = vld [vmem:[%s0 + $0x44] sm:$0xf]
  %v47 = vld [vmem:[%s0 + $0x48] sm:$0xf]
  %v48 = vld [vmem:[%s0 + $0x4c] sm:$0xf]
  %v49 = vld [vmem:[%s0 + $0x50] sm:$0xf]
  %v50 = vld [vmem:[%s0 + $0x54] sm:$0xf]
  %v51 = vld [vmem:[%s0 + $0x58] sm:$0xf]
  %v52 = vld [vmem:[%s0 + $0x5c] sm:$0xf]
  %v53 = vld [vmem:[%s0 + $0x60] sm:$0xf]
  %v54 = vld [vmem:[%s0 + $0x64] sm:$0xf]
  %v55 = vld [vmem:[%s0 + $0x68] sm:$0xf]
  %v56 = vld [vmem:[%s0 + $0x6c] sm:$0xf]
  %v57 = vld [vmem:[%s0 + $0x70] sm:$0xf]
  %v58 = vld [vmem:[%s0 + $0x74] sm:$0xf]
  %v59 = vld [vmem:[%s0 + $0x78] sm:$0xf]
  %v60 = vld [vmem:[%s0 + $0x7c] sm:$0xf]
  %v61 = vld [vmem:[%s0 + $0x80] sm:$0xf]
  %v62 = vld [vmem:[%s0 + $0x84] sm:$0xf]
  %v63 = vld [vmem:[%s0 + $0x88] sm:$0xf]
  %v64 = vld [vmem:[%s0 + $0x8c] sm:$0xf]
  %v65 = vld [vmem:[%s0 + $0x90] sm:$0xf]
  %v66 = vld [vmem:[%s0 + $0x94] sm:$0xf]
  %v67 = vld [vmem:[%s0 + $0x98] sm:$0xf]
  %v68 = vld [vmem:[%s0 + $0x9c] sm:$0xf]
  %v69 = vld [vmem:[%s0 + $0xa0] sm:$0xf]
  %v70 = vld [vmem:[%s0 + $0xa4] sm:$0xf]
  %v71 = vld [vmem:[%s0 + $0xa8] sm:$0xf]
  %v72 = vld [vmem:[%s0 + $0xac] sm:$0xf]
  %v73 = vld [vmem:[%s0 + $0xb0] sm:$0xf]
  %v74 = vld [vmem:[%s0 + $0xb4] sm:$0xf]
  %v75 = vld [vmem:[%s0 + $0xb8] sm:$0xf]
  %v76 = vld [vmem:[%s0 + $0xbc] sm:$0xf]
  %v77 = vld [vmem:[%s0 + $0xc0] sm:$0xf]
  %v78 = vld [vmem:[%s0 + $0xc4] sm:$0xf]
  %v79 = vld [vmem:[%s0 + $0xc8] sm:$0xf]
  %v80 = vld [vmem:[%s0 + $0xcc] sm:$0xf]
  %v81 = vld [vmem:[%s0 + $0xd0] sm:$0xf]
  %v82 = vld [vmem:[%s0 + $0xd4] sm:$0xf]
  %v83 = vld [vmem:[%s0 + $0xd8] sm:$0xf]
  %v84 = vld [vmem:[%s0 + $0xdc] sm:$0xf]
  %v85 = vld [vmem:[%s0 + $0xe0] sm:$0xf]
  %v86 = vld [vmem:[%s0 + $0xe4] sm:$0xf]
  %v87 = vld [vmem:[%s0 + $0xe8] sm:$0xf]
  %v88 = vld [vmem:[%s0 + $0xec] sm:$0xf]
  %v89 = vld [vmem:[%s0 + $0xf0] sm:$0xf]
  %v90 = vld [vmem:[%s0 + $0xf4] sm:$0xf]
  %v91 = vld [vmem:[%s0 + $0xf8] sm:$0xf]
  %v92 = vld [vmem:[%s0 + $0xfc] sm:$0xf]
  %v93 = vld [vmem:[%s1] sm:$0x3]
  %v94 = vld [vmem:[%s2] sm:$0x1]
  %v96 = vlaneseq
  %v97 = vshrl.u32 %v96, 7
  %v98 = vsub.s32 0, %v97
  %v99 = vrot.slane %v94, %v98
  %v165 = vunpack.c.l.b16 %v29
  %v166 = vunpack.c.l.b16 %v30
  %v167 = vunpack.c.l.b16 %v31
  %v168 = vunpack.c.l.b16 %v32
  %v169 = vunpack.c.l.b16 %v33
  %v170 = vunpack.c.l.b16 %v34
  %v171 = vunpack.c.l.b16 %v35
  %v172 = vunpack.c.l.b16 %v36
  %v173 = vunpack.c.l.b16 %v37
  %v174 = vunpack.c.l.b16 %v38
  %v175 = vunpack.c.l.b16 %v39
  %v176 = vunpack.c.l.b16 %v40
  %v177 = vunpack.c.l.b16 %v41
  %v178 = vunpack.c.l.b16 %v42
  %v179 = vunpack.c.l.b16 %v43
  %v180 = vunpack.c.l.b16 %v44
  %v181 = vunpack.c.l.b16 %v45
  %v182 = vunpack.c.l.b16 %v46
  %v183 = vunpack.c.l.b16 %v47
  %v184 = vunpack.c.l.b16 %v48
  %v185 = vunpack.c.l.b16 %v49
  %v186 = vunpack.c.l.b16 %v50
  %v187 = vunpack.c.l.b16 %v51
  %v188 = vunpack.c.l.b16 %v52
  %v189 = vunpack.c.l.b16 %v53
  %v190 = vunpack.c.l.b16 %v54
  %v191 = vunpack.c.l.b16 %v55
  %v192 = vunpack.c.l.b16 %v56
  %v193 = vunpack.c.l.b16 %v57
  %v194 = vunpack.c.l.b16 %v58
  %v195 = vunpack.c.l.b16 %v59
  %v196 = vunpack.c.l.b16 %v60
  %v197 = vunpack.c.l.b16 %v61
  %v198 = vunpack.c.l.b16 %v62
  %v199 = vunpack.c.l.b16 %v63
  %v200 = vunpack.c.l.b16 %v64
  %v201 = vunpack.c.l.b16 %v65
  %v202 = vunpack.c.l.b16 %v66
  %v203 = vunpack.c.l.b16 %v67
  %v204 = vunpack.c.l.b16 %v68
  %v205 = vunpack.c.l.b16 %v69
  %v206 = vunpack.c.l.b16 %v70
  %v207 = vunpack.c.l.b16 %v71
  %v208 = vunpack.c.l.b16 %v72
  %v209 = vunpack.c.l.b16 %v73
  %v210 = vunpack.c.l.b16 %v74
  %v211 = vunpack.c.l.b16 %v75
  %v212 = vunpack.c.l.b16 %v76
  %v213 = vunpack.c.l.b16 %v77
  %v214 = vunpack.c.l.b16 %v78
  %v215 = vunpack.c.l.b16 %v79
  %v216 = vunpack.c.l.b16 %v80
  %v217 = vunpack.c.l.b16 %v81
  %v218 = vunpack.c.l.b16 %v82
  %v219 = vunpack.c.l.b16 %v83
  %v220 = vunpack.c.l.b16 %v84
  %v221 = vunpack.c.l.b16 %v85
  %v222 = vunpack.c.l.b16 %v86
  %v223 = vunpack.c.l.b16 %v87
  %v224 = vunpack.c.l.b16 %v88
  %v225 = vunpack.c.l.b16 %v89
  %v226 = vunpack.c.l.b16 %v90
  %v227 = vunpack.c.l.b16 %v91
  %v228 = vunpack.c.l.b16 %v92
  %v229 = vpack.c.b16 %v166, %v165
  %v230 = vpack.c.b16 %v168, %v167
  %v231 = vpack.c.b16 %v170, %v169
  %v232 = vpack.c.b16 %v172, %v171
  %v233 = vpack.c.b16 %v174, %v173
  %v234 = vpack.c.b16 %v176, %v175
  %v235 = vpack.c.b16 %v178, %v177
  %v236 = vpack.c.b16 %v180, %v179
  %v237 = vpack.c.b16 %v182, %v181
  %v238 = vpack.c.b16 %v184, %v183
  %v239 = vpack.c.b16 %v186, %v185
  %v240 = vpack.c.b16 %v188, %v187
  %v241 = vpack.c.b16 %v190, %v189
  %v242 = vpack.c.b16 %v192, %v191
  %v243 = vpack.c.b16 %v194, %v193
  %v244 = vpack.c.b16 %v196, %v195
  %v245 = vpack.c.b16 %v198, %v197
  %v246 = vpack.c.b16 %v200, %v199
  %v247 = vpack.c.b16 %v202, %v201
  %v248 = vpack.c.b16 %v204, %v203
  %v249 = vpack.c.b16 %v206, %v205
  %v250 = vpack.c.b16 %v208, %v207
  %v251 = vpack.c.b16 %v210, %v209
  %v252 = vpack.c.b16 %v212, %v211
  %v253 = vpack.c.b16 %v214, %v213
  %v254 = vpack.c.b16 %v216, %v215
  %v255 = vpack.c.b16 %v218, %v217
  %v256 = vpack.c.b16 %v220, %v219
  %v257 = vpack.c.b16 %v222, %v221
  %v258 = vpack.c.b16 %v224, %v223
  %v259 = vpack.c.b16 %v226, %v225
  %v260 = vpack.c.b16 %v228, %v227
  %vm261 = vcmask 31744
  %v263 = vsel %vm261, %v229, 0
  %v266 = vsel %vm261, %v230, 0
  %v269 = vsel %vm261, %v231, 0
  %v272 = vsel %vm261, %v232, 0
  %v275 = vsel %vm261, %v233, 0
  %v278 = vsel %vm261, %v234, 0
  %v281 = vsel %vm261, %v235, 0
  %v284 = vsel %vm261, %v236, 0
  %v287 = vsel %vm261, %v237, 0
  %v290 = vsel %vm261, %v238, 0
  %v293 = vsel %vm261, %v239, 0
  %v296 = vsel %vm261, %v240, 0
  %v299 = vsel %vm261, %v241, 0
  %v302 = vsel %vm261, %v242, 0
  %v305 = vsel %vm261, %v243, 0
  %v308 = vsel %vm261, %v244, 0
  %v311 = vsel %vm261, %v245, 0
  %v314 = vsel %vm261, %v246, 0
  %v317 = vsel %vm261, %v247, 0
  %v320 = vsel %vm261, %v248, 0
  %v323 = vsel %vm261, %v249, 0
  %v326 = vsel %vm261, %v250, 0
  %v329 = vsel %vm261, %v251, 0
  %v332 = vsel %vm261, %v252, 0
  %v335 = vsel %vm261, %v253, 0
  %v338 = vsel %vm261, %v254, 0
  %v341 = vsel %vm261, %v255, 0
  %v344 = vsel %vm261, %v256, 0
  %v347 = vsel %vm261, %v257, 0
  %v350 = vsel %vm261, %v258, 0
  %v353 = vsel %vm261, %v259, 0
  %v356 = vsel %vm261, %v260, 0
  %vm358 = vcmask 1041408
  %v360 = vsel %vm358, %v93, 0
  %362 = vmatprep.subr.bf16.mxu0 0
  %363 = vmatpush1.bf16.msra.mxu0 %v360
  %364 = vmatprep.subr.bf16.mxu0 0
  %365 = vmatpush1.bf16.msra.mxu0 0
  %366 = vmatprep.subr.bf16.mxu0 0
  %367 = vmatpush1.bf16.msra.mxu0 0
  %368 = vmatprep.subr.bf16.mxu0 0
  %369 = vmatpush1.bf16.msra.mxu0 0
  %370 = vmatprep.subr.bf16.mxu0 0
  %371 = vmatpush1.bf16.msra.mxu0 0
  %372 = vmatprep.subr.bf16.mxu0 0
  %373 = vmatpush1.bf16.msra.mxu0 0
  %374 = vmatprep.subr.bf16.mxu0 0
  %375 = vmatpush1.bf16.msra.mxu0 0
  %376 = vmatprep.subr.bf16.mxu0 0
  %377 = vmatpush1.bf16.msra.mxu0 0
  %378 = vmatprep.subr.bf16.mxu0 0
  %379 = vmatpush1.bf16.msra.mxu0 0
  %380 = vmatprep.subr.bf16.mxu0 0
  %381 = vmatpush1.bf16.msra.mxu0 0
  %382 = vmatprep.subr.bf16.mxu0 0
  %383 = vmatpush1.bf16.msra.mxu0 0
  %384 = vmatprep.subr.bf16.mxu0 0
  %385 = vmatpush1.bf16.msra.mxu0 0
  %386 = vmatprep.subr.bf16.mxu0 0
  %387 = vmatpush1.bf16.msra.mxu0 0
  %388 = vmatprep.subr.bf16.mxu0 0
  %389 = vmatpush1.bf16.msra.mxu0 0
  %390 = vmatprep.subr.bf16.mxu0 0
  %391 = vmatpush1.bf16.msra.mxu0 0
  %392 = vmatprep.subr.bf16.mxu0 0
  %393 = vmatpush1.bf16.msra.mxu0 0
  %394 = vmatprep.mubr.bf16.mxu0 0
  %395 = vmatmul.mubr.bf16.gmra.mrb[0].mxu0 %v263
  %v396 = vpop.f32.mrb[0].mxu0
  %v397 = vadd.f32 %v99, %v396
  %v398 = vpop.f32.mrb[0].mxu0
  %v399 = vpop.f32.mrb[0].mxu0
  %v400 = vadd.f32 %v99, %v399
  %v401 = vpop.f32.mrb[0].mxu0
  %402 = vmatprep.mubr.bf16.mxu0 0
  %403 = vmatmul.mubr.bf16.gmra.mrb[0].mxu0 %v266
  %v404 = vpop.f32.mrb[0].mxu0
  %v405 = vadd.f32 %v99, %v404
  %v406 = vpop.f32.mrb[0].mxu0
  %v407 = vpop.f32.mrb[0].mxu0
  %v408 = vadd.f32 %v99, %v407
  %v409 = vpop.f32.mrb[0].mxu0
  %410 = vmatprep.mubr.bf16.mxu0 0
  %411 = vmatmul.mubr.bf16.gmra.mrb[0].mxu0 %v269
  %v412 = vpop.f32.mrb[0].mxu0
  %v413 = vadd.f32 %v99, %v412
  %v414 = vpop.f32.mrb[0].mxu0
  %v415 = vpop.f32.mrb[0].mxu0
  %v416 = vadd.f32 %v99, %v415
  %v417 = vpop.f32.mrb[0].mxu0
  %418 = vmatprep.mubr.bf16.mxu0 0
  %419 = vmatmul.mubr.bf16.gmra.mrb[0].mxu0 %v272
  %v420 = vpop.f32.mrb[0].mxu0
  %v421 = vadd.f32 %v99, %v420
  %v422 = vpop.f32.mrb[0].mxu0
  %v423 = vpop.f32.mrb[0].mxu0
  %v424 = vadd.f32 %v99, %v423
  %v425 = vpop.f32.mrb[0].mxu0
  %426 = vmatprep.mubr.bf16.mxu0 0
  %427 = vmatmul.mubr.bf16.gmra.mrb[0].mxu0 %v275
  %v428 = vpop.f32.mrb[0].mxu0
  %v429 = vadd.f32 %v99, %v428
  %v430 = vpop.f32.mrb[0].mxu0
  %v431 = vpop.f32.mrb[0].mxu0
  %v432 = vadd.f32 %v99, %v431
  %v433 = vpop.f32.mrb[0].mxu0
  %434 = vmatprep.mubr.bf16.mxu0 0
  %435 = vmatmul.mubr.bf16.gmra.mrb[0].mxu0 %v278
  %v436 = vpop.f32.mrb[0].mxu0
  %v437 = vadd.f32 %v99, %v436
  %v438 = vpop.f32.mrb[0].mxu0
  %v439 = vpop.f32.mrb[0].mxu0
  %v440 = vadd.f32 %v99, %v439
  %v441 = vpop.f32.mrb[0].mxu0
  %442 = vmatprep.mubr.bf16.mxu0 0
  %443 = vmatmul.mubr.bf16.gmra.mrb[0].mxu0 %v281
  %v444 = vpop.f32.mrb[0].mxu0
  %v445 = vadd.f32 %v99, %v444
  %v446 = vpop.f32.mrb[0].mxu0
  %v447 = vpop.f32.mrb[0].mxu0
  %v448 = vadd.f32 %v99, %v447
  %v449 = vpop.f32.mrb[0].mxu0
  %450 = vmatprep.mubr.bf16.mxu0 0
  %451 = vmatmul.mubr.bf16.gmra.mrb[0].mxu0 %v284
  %v452 = vpop.f32.mrb[0].mxu0
  %v453 = vadd.f32 %v99, %v452
  %v454 = vpop.f32.mrb[0].mxu0
  %v455 = vpop.f32.mrb[0].mxu0
  %v456 = vadd.f32 %v99, %v455
  %v457 = vpop.f32.mrb[0].mxu0
  %458 = vmatprep.mubr.bf16.mxu0 0
  %459 = vmatmul.mubr.bf16.gmra.mrb[0].mxu0 %v287
  %v460 = vpop.f32.mrb[0].mxu0
  %v461 = vadd.f32 %v99, %v460
  %v462 = vpop.f32.mrb[0].mxu0
  %v463 = vpop.f32.mrb[0].mxu0
  %v464 = vadd.f32 %v99, %v463
  %v465 = vpop.f32.mrb[0].mxu0
  %466 = vmatprep.mubr.bf16.mxu0 0
  %467 = vmatmul.mubr.bf16.gmra.mrb[0].mxu0 %v290
  %v468 = vpop.f32.mrb[0].mxu0
  %v469 = vadd.f32 %v99, %v468
  %v470 = vpop.f32.mrb[0].mxu0
  %v471 = vpop.f32.mrb[0].mxu0
  %v472 = vadd.f32 %v99, %v471
  %v473 = vpop.f32.mrb[0].mxu0
  %474 = vmatprep.mubr.bf16.mxu0 0
  %475 = vmatmul.mubr.bf16.gmra.mrb[0].mxu0 %v293
  %v476 = vpop.f32.mrb[0].mxu0
  %v477 = vadd.f32 %v99, %v476
  %v478 = vpop.f32.mrb[0].mxu0
  %v479 = vpop.f32.mrb[0].mxu0
  %v480 = vadd.f32 %v99, %v479
  %v481 = vpop.f32.mrb[0].mxu0
  %482 = vmatprep.mubr.bf16.mxu0 0
  %483 = vmatmul.mubr.bf16.gmra.mrb[0].mxu0 %v296
  %v484 = vpop.f32.mrb[0].mxu0
  %v485 = vadd.f32 %v99, %v484
  %v486 = vpop.f32.mrb[0].mxu0
  %v487 = vpop.f32.mrb[0].mxu0
  %v488 = vadd.f32 %v99, %v487
  %v489 = vpop.f32.mrb[0].mxu0
  %490 = vmatprep.mubr.bf16.mxu0 0
  %491 = vmatmul.mubr.bf16.gmra.mrb[0].mxu0 %v299
  %v492 = vpop.f32.mrb[0].mxu0
  %v493 = vadd.f32 %v99, %v492
  %v494 = vpop.f32.mrb[0].mxu0
  %v495 = vpop.f32.mrb[0].mxu0
  %v496 = vadd.f32 %v99, %v495
  %v497 = vpop.f32.mrb[0].mxu0
  %498 = vmatprep.mubr.bf16.mxu0 0
  %499 = vmatmul.mubr.bf16.gmra.mrb[0].mxu0 %v302
  %v500 = vpop.f32.mrb[0].mxu0
  %v501 = vadd.f32 %v99, %v500
  %v502 = vpop.f32.mrb[0].mxu0
  %v503 = vpop.f32.mrb[0].mxu0
  %v504 = vadd.f32 %v99, %v503
  %v505 = vpop.f32.mrb[0].mxu0
  %506 = vmatprep.mubr.bf16.mxu0 0
  %507 = vmatmul.mubr.bf16.gmra.mrb[0].mxu0 %v305
  %v508 = vpop.f32.mrb[0].mxu0
  %v509 = vadd.f32 %v99, %v508
  %v510 = vpop.f32.mrb[0].mxu0
  %v511 = vpop.f32.mrb[0].mxu0
  %v512 = vadd.f32 %v99, %v511
  %v513 = vpop.f32.mrb[0].mxu0
  %514 = vmatprep.mubr.bf16.mxu0 0
  %515 = vmatmul.mubr.bf16.gmra.mrb[0].mxu0 %v308
  %v516 = vpop.f32.mrb[0].mxu0
  %v517 = vadd.f32 %v99, %v516
  %v518 = vpop.f32.mrb[0].mxu0
  %v519 = vpop.f32.mrb[0].mxu0
  %v520 = vadd.f32 %v99, %v519
  %v521 = vpop.f32.mrb[0].mxu0
  %522 = vmatprep.mubr.bf16.mxu0 0
  %523 = vmatmul.mubr.bf16.gmra.mrb[0].mxu0 %v311
  %v524 = vpop.f32.mrb[0].mxu0
  %v525 = vadd.f32 %v99, %v524
  %v526 = vpop.f32.mrb[0].mxu0
  %v527 = vpop.f32.mrb[0].mxu0
  %v528 = vadd.f32 %v99, %v527
  %v529 = vpop.f32.mrb[0].mxu0
  %530 = vmatprep.mubr.bf16.mxu0 0
  %531 = vmatmul.mubr.bf16.gmra.mrb[0].mxu0 %v314
  %v532 = vpop.f32.mrb[0].mxu0
  %v533 = vadd.f32 %v99, %v532
  %v534 = vpop.f32.mrb[0].mxu0
  %v535 = vpop.f32.mrb[0].mxu0
  %v536 = vadd.f32 %v99, %v535
  %v537 = vpop.f32.mrb[0].mxu0
  %538 = vmatprep.mubr.bf16.mxu0 0
  %539 = vmatmul.mubr.bf16.gmra.mrb[0].mxu0 %v317
  %v540 = vpop.f32.mrb[0].mxu0
  %v541 = vadd.f32 %v99, %v540
  %v542 = vpop.f32.mrb[0].mxu0
  %v543 = vpop.f32.mrb[0].mxu0
  %v544 = vadd.f32 %v99, %v543
  %v545 = vpop.f32.mrb[0].mxu0
  %546 = vmatprep.mubr.bf16.mxu0 0
  %547 = vmatmul.mubr.bf16.gmra.mrb[0].mxu0 %v320
  %v548 = vpop.f32.mrb[0].mxu0
  %v549 = vadd.f32 %v99, %v548
  %v550 = vpop.f32.mrb[0].mxu0
  %v551 = vpop.f32.mrb[0].mxu0
  %v552 = vadd.f32 %v99, %v551
  %v553 = vpop.f32.mrb[0].mxu0
  %554 = vmatprep.mubr.bf16.mxu0 0
  %555 = vmatmul.mubr.bf16.gmra.mrb[0].mxu0 %v323
  %v556 = vpop.f32.mrb[0].mxu0
  %v557 = vadd.f32 %v99, %v556
  %v558 = vpop.f32.mrb[0].mxu0
  %v559 = vpop.f32.mrb[0].mxu0
  %v560 = vadd.f32 %v99, %v559
  %v561 = vpop.f32.mrb[0].mxu0
  %562 = vmatprep.mubr.bf16.mxu0 0
  %563 = vmatmul.mubr.bf16.gmra.mrb[0].mxu0 %v326
  %v564 = vpop.f32.mrb[0].mxu0
  %v565 = vadd.f32 %v99, %v564
  %v566 = vpop.f32.mrb[0].mxu0
  %v567 = vpop.f32.mrb[0].mxu0
  %v568 = vadd.f32 %v99, %v567
  %v569 = vpop.f32.mrb[0].mxu0
  %570 = vmatprep.mubr.bf16.mxu0 0
  %571 = vmatmul.mubr.bf16.gmra.mrb[0].mxu0 %v329
  %v572 = vpop.f32.mrb[0].mxu0
  %v573 = vadd.f32 %v99, %v572
  %v574 = vpop.f32.mrb[0].mxu0
  %v575 = vpop.f32.mrb[0].mxu0
  %v576 = vadd.f32 %v99, %v575
  %v577 = vpop.f32.mrb[0].mxu0
  %578 = vmatprep.mubr.bf16.mxu0 0
  %579 = vmatmul.mubr.bf16.gmra.mrb[0].mxu0 %v332
  %v580 = vpop.f32.mrb[0].mxu0
  %v581 = vadd.f32 %v99, %v580
  %v582 = vpop.f32.mrb[0].mxu0
  %v583 = vpop.f32.mrb[0].mxu0
  %v584 = vadd.f32 %v99, %v583
  %v585 = vpop.f32.mrb[0].mxu0
  %586 = vmatprep.mubr.bf16.mxu0 0
  %587 = vmatmul.mubr.bf16.gmra.mrb[0].mxu0 %v335
  %v588 = vpop.f32.mrb[0].mxu0
  %v589 = vadd.f32 %v99, %v588
  %v590 = vpop.f32.mrb[0].mxu0
  %v591 = vpop.f32.mrb[0].mxu0
  %v592 = vadd.f32 %v99, %v591
  %v593 = vpop.f32.mrb[0].mxu0
  %594 = vmatprep.mubr.bf16.mxu0 0
  %595 = vmatmul.mubr.bf16.gmra.mrb[0].mxu0 %v338
  %v596 = vpop.f32.mrb[0].mxu0
  %v597 = vadd.f32 %v99, %v596
  %v598 = vpop.f32.mrb[0].mxu0
  %v599 = vpop.f32.mrb[0].mxu0
  %v600 = vadd.f32 %v99, %v599
  %v601 = vpop.f32.mrb[0].mxu0
  %602 = vmatprep.mubr.bf16.mxu0 0
  %603 = vmatmul.mubr.bf16.gmra.mrb[0].mxu0 %v341
  %v604 = vpop.f32.mrb[0].mxu0
  %v605 = vadd.f32 %v99, %v604
  %v606 = vpop.f32.mrb[0].mxu0
  %v607 = vpop.f32.mrb[0].mxu0
  %v608 = vadd.f32 %v99, %v607
  %v609 = vpop.f32.mrb[0].mxu0
  %610 = vmatprep.mubr.bf16.mxu0 0
  %611 = vmatmul.mubr.bf16.gmra.mrb[0].mxu0 %v344
  %v612 = vpop.f32.mrb[0].mxu0
  %v613 = vadd.f32 %v99, %v612
  %v614 = vpop.f32.mrb[0].mxu0
  %v615 = vpop.f32.mrb[0].mxu0
  %v616 = vadd.f32 %v99, %v615
  %v617 = vpop.f32.mrb[0].mxu0
  %618 = vmatprep.mubr.bf16.mxu0 0
  %619 = vmatmul.mubr.bf16.gmra.mrb[0].mxu0 %v347
  %v620 = vpop.f32.mrb[0].mxu0
  %v621 = vadd.f32 %v99, %v620
  %v622 = vpop.f32.mrb[0].mxu0
  %v623 = vpop.f32.mrb[0].mxu0
  %v624 = vadd.f32 %v99, %v623
  %v625 = vpop.f32.mrb[0].mxu0
  %626 = vmatprep.mubr.bf16.mxu0 0
  %627 = vmatmul.mubr.bf16.gmra.mrb[0].mxu0 %v350
  %v628 = vpop.f32.mrb[0].mxu0
  %v629 = vadd.f32 %v99, %v628
  %v630 = vpop.f32.mrb[0].mxu0
  %v631 = vpop.f32.mrb[0].mxu0
  %v632 = vadd.f32 %v99, %v631
  %v633 = vpop.f32.mrb[0].mxu0
  %634 = vmatprep.mubr.bf16.mxu0 0
  %635 = vmatmul.mubr.bf16.gmra.mrb[0].mxu0 %v353
  %v636 = vpop.f32.mrb[0].mxu0
  %v637 = vadd.f32 %v99, %v636
  %v638 = vpop.f32.mrb[0].mxu0
  %v639 = vpop.f32.mrb[0].mxu0
  %v640 = vadd.f32 %v99, %v639
  %v641 = vpop.f32.mrb[0].mxu0
  %642 = vmatprep.mubr.bf16.mxu0 0
  %643 = vmatmul.mubr.bf16.gmra.mrb[0].mxu0 %v356
  %v644 = vpop.f32.mrb[0].mxu0
  %v645 = vadd.f32 %v99, %v644
  %v646 = vpop.f32.mrb[0].mxu0
  %v647 = vpop.f32.mrb[0].mxu0
  %v648 = vadd.f32 %v99, %v647
  %v649 = vpop.f32.mrb[0].mxu0
  %650 = vdwg.mxu0
  %v651 = vld [vmem:[%s3] sm:$0x1]
  %v653 = vlaneseq
  %v654 = vshrl.u32 %v653, 7
  %v655 = vsub.s32 0, %v654
  %v656 = vrot.slane %v651, %v655
  %v658 = vmul.f32 %v397, %v656
  %v659 = vmul.f32 %v400, %v656
  %v660 = vmul.f32 %v405, %v656
  %v661 = vmul.f32 %v408, %v656
  %v662 = vmul.f32 %v413, %v656
  %v663 = vmul.f32 %v416, %v656
  %v664 = vmul.f32 %v421, %v656
  %v665 = vmul.f32 %v424, %v656
  %v666 = vmul.f32 %v429, %v656
  %v667 = vmul.f32 %v432, %v656
  %v668 = vmul.f32 %v437, %v656
  %v669 = vmul.f32 %v440, %v656
  %v670 = vmul.f32 %v445, %v656
  %v671 = vmul.f32 %v448, %v656
  %v672 = vmul.f32 %v453, %v656
  %v673 = vmul.f32 %v456, %v656
  %v674 = vmul.f32 %v461, %v656
  %v675 = vmul.f32 %v464, %v656
  %v676 = vmul.f32 %v469, %v656
  %v677 = vmul.f32 %v472, %v656
  %v678 = vmul.f32 %v477, %v656
  %v679 = vmul.f32 %v480, %v656
  %v680 = vmul.f32 %v485, %v656
  %v681 = vmul.f32 %v488, %v656
  %v682 = vmul.f32 %v493, %v656
  %v683 = vmul.f32 %v496, %v656
  %v684 = vmul.f32 %v501, %v656
  %v685 = vmul.f32 %v504, %v656
  %v686 = vmul.f32 %v509, %v656
  %v687 = vmul.f32 %v512, %v656
  %v688 = vmul.f32 %v517, %v656
  %v689 = vmul.f32 %v520, %v656
  %v690 = vmul.f32 %v525, %v656
  %v691 = vmul.f32 %v528, %v656
  %v692 = vmul.f32 %v533, %v656
  %v693 = vmul.f32 %v536, %v656
  %v694 = vmul.f32 %v541, %v656
  %v695 = vmul.f32 %v544, %v656
  %v696 = vmul.f32 %v549, %v656
  %v697 = vmul.f32 %v552, %v656
  %v698 = vmul.f32 %v557, %v656
  %v699 = vmul.f32 %v560, %v656
  %v700 = vmul.f32 %v565, %v656
  %v701 = vmul.f32 %v568, %v656
  %v702 = vmul.f32 %v573, %v656
  %v703 = vmul.f32 %v576, %v656
  %v704 = vmul.f32 %v581, %v656
  %v705 = vmul.f32 %v584, %v656
  %v706 = vmul.f32 %v589, %v656
  %v707 = vmul.f32 %v592, %v656
  %v708 = vmul.f32 %v597, %v656
  %v709 = vmul.f32 %v600, %v656
  %v710 = vmul.f32 %v605, %v656
  %v711 = vmul.f32 %v608, %v656
  %v712 = vmul.f32 %v613, %v656
  %v713 = vmul.f32 %v616, %v656
  %v714 = vmul.f32 %v621, %v656
  %v715 = vmul.f32 %v624, %v656
  %v716 = vmul.f32 %v629, %v656
  %v717 = vmul.f32 %v632, %v656
  %v718 = vmul.f32 %v637, %v656
  %v719 = vmul.f32 %v640, %v656
  %v720 = vmul.f32 %v645, %v656
  %v721 = vmul.f32 %v648, %v656
  %v722 = vld [vmem:[%s4] sm:$0x1]
  %v724 = vlaneseq
  %v725 = vshrl.u32 %v724, 7
  %v726 = vsub.s32 0, %v725
  %v727 = vrot.slane %v722, %v726
  %v729 = vadd.f32 %v658, %v727
  %v730 = vadd.f32 %v659, %v727
  %v731 = vadd.f32 %v660, %v727
  %v732 = vadd.f32 %v661, %v727
  %v733 = vadd.f32 %v662, %v727
  %v734 = vadd.f32 %v663, %v727
  %v735 = vadd.f32 %v664, %v727
  %v736 = vadd.f32 %v665, %v727
  %v737 = vadd.f32 %v666, %v727
  %v738 = vadd.f32 %v667, %v727
  %v739 = vadd.f32 %v668, %v727
  %v740 = vadd.f32 %v669, %v727
  %v741 = vadd.f32 %v670, %v727
  %v742 = vadd.f32 %v671, %v727
  %v743 = vadd.f32 %v672, %v727
  %v744 = vadd.f32 %v673, %v727
  %v745 = vadd.f32 %v674, %v727
  %v746 = vadd.f32 %v675, %v727
  %v747 = vadd.f32 %v676, %v727
  %v748 = vadd.f32 %v677, %v727
  %v749 = vadd.f32 %v678, %v727
  %v750 = vadd.f32 %v679, %v727
  %v751 = vadd.f32 %v680, %v727
  %v752 = vadd.f32 %v681, %v727
  %v753 = vadd.f32 %v682, %v727
  %v754 = vadd.f32 %v683, %v727
  %v755 = vadd.f32 %v684, %v727
  %v756 = vadd.f32 %v685, %v727
  %v757 = vadd.f32 %v686, %v727
  %v758 = vadd.f32 %v687, %v727
  %v759 = vadd.f32 %v688, %v727
  %v760 = vadd.f32 %v689, %v727
  %v761 = vadd.f32 %v690, %v727
  %v762 = vadd.f32 %v691, %v727
  %v763 = vadd.f32 %v692, %v727
  %v764 = vadd.f32 %v693, %v727
  %v765 = vadd.f32 %v694, %v727
  %v766 = vadd.f32 %v695, %v727
  %v767 = vadd.f32 %v696, %v727
  %v768 = vadd.f32 %v697, %v727
  %v769 = vadd.f32 %v698, %v727
  %v770 = vadd.f32 %v699, %v727
  %v771 = vadd.f32 %v700, %v727
  %v772 = vadd.f32 %v701, %v727
  %v773 = vadd.f32 %v702, %v727
  %v774 = vadd.f32 %v703, %v727
  %v775 = vadd.f32 %v704, %v727
  %v776 = vadd.f32 %v705, %v727
  %v777 = vadd.f32 %v706, %v727
  %v778 = vadd.f32 %v707, %v727
  %v779 = vadd.f32 %v708, %v727
  %v780 = vadd.f32 %v709, %v727
  %v781 = vadd.f32 %v710, %v727
  %v782 = vadd.f32 %v711, %v727
  %v783 = vadd.f32 %v712, %v727
  %v784 = vadd.f32 %v713, %v727
  %v785 = vadd.f32 %v714, %v727
  %v786 = vadd.f32 %v715, %v727
  %v787 = vadd.f32 %v716, %v727
  %v788 = vadd.f32 %v717, %v727
  %v789 = vadd.f32 %v718, %v727
  %v790 = vadd.f32 %v719, %v727
  %v791 = vadd.f32 %v720, %v727
  %v792 = vadd.f32 %v721, %v727
  %v793 = vmax.f32 %v729, 0.0
  %v794 = vmax.f32 %v730, 0.0
  %v795 = vmax.f32 %v731, 0.0
  %v796 = vmax.f32 %v732, 0.0
  %v797 = vmax.f32 %v733, 0.0
  %v798 = vmax.f32 %v734, 0.0
  %v799 = vmax.f32 %v735, 0.0
  %v800 = vmax.f32 %v736, 0.0
  %v801 = vmax.f32 %v737, 0.0
  %v802 = vmax.f32 %v738, 0.0
  %v803 = vmax.f32 %v739, 0.0
  %v804 = vmax.f32 %v740, 0.0
  %v805 = vmax.f32 %v741, 0.0
  %v806 = vmax.f32 %v742, 0.0
  %v807 = vmax.f32 %v743, 0.0
  %v808 = vmax.f32 %v744, 0.0
  %v809 = vmax.f32 %v745, 0.0
  %v810 = vmax.f32 %v746, 0.0
  %v811 = vmax.f32 %v747, 0.0
  %v812 = vmax.f32 %v748, 0.0
  %v813 = vmax.f32 %v749, 0.0
  %v814 = vmax.f32 %v750, 0.0
  %v815 = vmax.f32 %v751, 0.0
  %v816 = vmax.f32 %v752, 0.0
  %v817 = vmax.f32 %v753, 0.0
  %v818 = vmax.f32 %v754, 0.0
  %v819 = vmax.f32 %v755, 0.0
  %v820 = vmax.f32 %v756, 0.0
  %v821 = vmax.f32 %v757, 0.0
  %v822 = vmax.f32 %v758, 0.0
  %v823 = vmax.f32 %v759, 0.0
  %v824 = vmax.f32 %v760, 0.0
  %v825 = vmax.f32 %v761, 0.0
  %v826 = vmax.f32 %v762, 0.0
  %v827 = vmax.f32 %v763, 0.0
  %v828 = vmax.f32 %v764, 0.0
  %v829 = vmax.f32 %v765, 0.0
  %v830 = vmax.f32 %v766, 0.0
  %v831 = vmax.f32 %v767, 0.0
  %v832 = vmax.f32 %v768, 0.0
  %v833 = vmax.f32 %v769, 0.0
  %v834 = vmax.f32 %v770, 0.0
  %v835 = vmax.f32 %v771, 0.0
  %v836 = vmax.f32 %v772, 0.0
  %v837 = vmax.f32 %v773, 0.0
  %v838 = vmax.f32 %v774, 0.0
  %v839 = vmax.f32 %v775, 0.0
  %v840 = vmax.f32 %v776, 0.0
  %v841 = vmax.f32 %v777, 0.0
  %v842 = vmax.f32 %v778, 0.0
  %v843 = vmax.f32 %v779, 0.0
  %v844 = vmax.f32 %v780, 0.0
  %v845 = vmax.f32 %v781, 0.0
  %v846 = vmax.f32 %v782, 0.0
  %v847 = vmax.f32 %v783, 0.0
  %v848 = vmax.f32 %v784, 0.0
  %v849 = vmax.f32 %v785, 0.0
  %v850 = vmax.f32 %v786, 0.0
  %v851 = vmax.f32 %v787, 0.0
  %v852 = vmax.f32 %v788, 0.0
  %v853 = vmax.f32 %v789, 0.0
  %v854 = vmax.f32 %v790, 0.0
  %v855 = vmax.f32 %v791, 0.0
  %v856 = vmax.f32 %v792, 0.0
  %v857 = vpack.c.bf16 %v794, %v793
  %v858 = vpack.c.bf16 %v796, %v795
  %v859 = vpack.c.bf16 %v798, %v797
  %v860 = vpack.c.bf16 %v800, %v799
  %v861 = vpack.c.bf16 %v802, %v801
  %v862 = vpack.c.bf16 %v804, %v803
  %v863 = vpack.c.bf16 %v806, %v805
  %v864 = vpack.c.bf16 %v808, %v807
  %v865 = vpack.c.bf16 %v810, %v809
  %v866 = vpack.c.bf16 %v812, %v811
  %v867 = vpack.c.bf16 %v814, %v813
  %v868 = vpack.c.bf16 %v816, %v815
  %v869 = vpack.c.bf16 %v818, %v817
  %v870 = vpack.c.bf16 %v820, %v819
  %v871 = vpack.c.bf16 %v822, %v821
  %v872 = vpack.c.bf16 %v824, %v823
  %v873 = vpack.c.bf16 %v826, %v825
  %v874 = vpack.c.bf16 %v828, %v827
  %v875 = vpack.c.bf16 %v830, %v829
  %v876 = vpack.c.bf16 %v832, %v831
  %v877 = vpack.c.bf16 %v834, %v833
  %v878 = vpack.c.bf16 %v836, %v835
  %v879 = vpack.c.bf16 %v838, %v837
  %v880 = vpack.c.bf16 %v840, %v839
  %v881 = vpack.c.bf16 %v842, %v841
  %v882 = vpack.c.bf16 %v844, %v843
  %v883 = vpack.c.bf16 %v846, %v845
  %v884 = vpack.c.bf16 %v848, %v847
  %v885 = vpack.c.bf16 %v850, %v849
  %v886 = vpack.c.bf16 %v852, %v851
  %v887 = vpack.c.bf16 %v854, %v853
  %v888 = vpack.c.bf16 %v856, %v855
  %v889 = vld [vmem:[%s5] sm:$0xf]
  %v890 = vld [vmem:[%s5 + $0x4] sm:$0xf]
  %v891 = vld [vmem:[%s5 + $0x8] sm:$0xf]
  %v892 = vld [vmem:[%s5 + $0xc] sm:$0xf]
  %v893 = vld [vmem:[%s5 + $0x10] sm:$0xf]
  %v894 = vld [vmem:[%s5 + $0x14] sm:$0xf]
  %v895 = vld [vmem:[%s5 + $0x18] sm:$0xf]
  %v896 = vld [vmem:[%s5 + $0x1c] sm:$0xf]
  %v897 = vld [vmem:[%s5 + $0x20] sm:$0xf]
  %v898 = vld [vmem:[%s5 + $0x24] sm:$0xf]
  %v899 = vld [vmem:[%s5 + $0x28] sm:$0xf]
  %v900 = vld [vmem:[%s5 + $0x2c] sm:$0xf]
  %v901 = vld [vmem:[%s5 + $0x30] sm:$0xf]
  %v902 = vld [vmem:[%s5 + $0x34] sm:$0xf]
  %v903 = vld [vmem:[%s5 + $0x38] sm:$0xf]
  %v904 = vld [vmem:[%s5 + $0x3c] sm:$0xf]
  %v905 = vld [vmem:[%s6] sm:$0x1]
  %v907 = vlaneseq
  %v908 = vshrl.u32 %v907, 7
  %v909 = vsub.s32 0, %v908
  %v910 = vrot.slane %v905, %v909
  %v928 = vunpack.c.l.b16 %v889
  %v929 = vunpack.c.l.b16 %v890
  %v930 = vunpack.c.l.b16 %v891
  %v931 = vunpack.c.l.b16 %v892
  %v932 = vunpack.c.l.b16 %v893
  %v933 = vunpack.c.l.b16 %v894
  %v934 = vunpack.c.l.b16 %v895
  %v935 = vunpack.c.l.b16 %v896
  %v936 = vunpack.c.l.b16 %v897
  %v937 = vunpack.c.l.b16 %v898
  %v938 = vunpack.c.l.b16 %v899
  %v939 = vunpack.c.l.b16 %v900
  %v940 = vunpack.c.l.b16 %v901
  %v941 = vunpack.c.l.b16 %v902
  %v942 = vunpack.c.l.b16 %v903
  %v943 = vunpack.c.l.b16 %v904
  %v944 = vpack.c.b16 %v929, %v928
  %v945 = vpack.c.b16 %v931, %v930
  %v946 = vpack.c.b16 %v933, %v932
  %v947 = vpack.c.b16 %v935, %v934
  %v948 = vpack.c.b16 %v937, %v936
  %v949 = vpack.c.b16 %v939, %v938
  %v950 = vpack.c.b16 %v941, %v940
  %v951 = vpack.c.b16 %v943, %v942
  %960 = vmatprep.subr.bf16.mxu0 0
  %961 = vmatpush1.bf16.msra.mxu0 %v944
  %962 = vmatprep.subr.bf16.mxu0 0
  %963 = vmatpush1.bf16.msra.mxu0 %v945
  %964 = vmatprep.subr.bf16.mxu0 0
  %965 = vmatpush1.bf16.msra.mxu0 %v946
  %966 = vmatprep.subr.bf16.mxu0 0
  %967 = vmatpush1.bf16.msra.mxu0 %v947
  %968 = vmatprep.subr.bf16.mxu0 0
  %969 = vmatpush1.bf16.msra.mxu0 %v948
  %970 = vmatprep.subr.bf16.mxu0 0
  %971 = vmatpush1.bf16.msra.mxu0 %v949
  %972 = vmatprep.subr.bf16.mxu0 0
  %973 = vmatpush1.bf16.msra.mxu0 %v950
  %974 = vmatprep.subr.bf16.mxu0 0
  %975 = vmatpush1.bf16.msra.mxu0 %v951
  %976 = vmatprep.subr.bf16.mxu0 0
  %977 = vmatpush1.bf16.msra.mxu0 0
  %978 = vmatprep.subr.bf16.mxu0 0
  %979 = vmatpush1.bf16.msra.mxu0 0
  %980 = vmatprep.subr.bf16.mxu0 0
  %981 = vmatpush1.bf16.msra.mxu0 0
  %982 = vmatprep.subr.bf16.mxu0 0
  %983 = vmatpush1.bf16.msra.mxu0 0
  %984 = vmatprep.subr.bf16.mxu0 0
  %985 = vmatpush1.bf16.msra.mxu0 0
  %986 = vmatprep.subr.bf16.mxu0 0
  %987 = vmatpush1.bf16.msra.mxu0 0
  %988 = vmatprep.subr.bf16.mxu0 0
  %989 = vmatpush1.bf16.msra.mxu0 0
  %990 = vmatprep.subr.bf16.mxu0 0
  %991 = vmatpush1.bf16.msra.mxu0 0
  %992 = vmatprep.mubr.bf16.mxu0 0
  %993 = vmatmul.mubr.bf16.gmra.mrb[0].mxu0 %v857
  %v994 = vpop.f32.mrb[0].mxu0
  %v995 = vadd.f32 %v910, %v994
  %v996 = vpop.f32.mrb[0].mxu0
  %v997 = vpop.f32.mrb[0].mxu0
  %v998 = vadd.f32 %v910, %v997
  %v999 = vpop.f32.mrb[0].mxu0
  %1000 = vmatprep.mubr.bf16.mxu0 0
  %1001 = vmatmul.mubr.bf16.gmra.mrb[0].mxu0 %v858
  %v1002 = vpop.f32.mrb[0].mxu0
  %v1003 = vadd.f32 %v910, %v1002
  %v1004 = vpop.f32.mrb[0].mxu0
  %v1005 = vpop.f32.mrb[0].mxu0
  %v1006 = vadd.f32 %v910, %v1005
  %v1007 = vpop.f32.mrb[0].mxu0
  %1008 = vmatprep.mubr.bf16.mxu0 0
  %1009 = vmatmul.mubr.bf16.gmra.mrb[0].mxu0 %v859
  %v1010 = vpop.f32.mrb[0].mxu0
  %v1011 = vadd.f32 %v910, %v1010
  %v1012 = vpop.f32.mrb[0].mxu0
  %v1013 = vpop.f32.mrb[0].mxu0
  %v1014 = vadd.f32 %v910, %v1013
  %v1015 = vpop.f32.mrb[0].mxu0
  %1016 = vmatprep.mubr.bf16.mxu0 0
  %1017 = vmatmul.mubr.bf16.gmra.mrb[0].mxu0 %v860
  %v1018 = vpop.f32.mrb[0].mxu0
  %v1019 = vadd.f32 %v910, %v1018
  %v1020 = vpop.f32.mrb[0].mxu0
  %v1021 = vpop.f32.mrb[0].mxu0
  %v1022 = vadd.f32 %v910, %v1021
  %v1023 = vpop.f32.mrb[0].mxu0
  %1024 = vmatprep.mubr.bf16.mxu0 0
  %1025 = vmatmul.mubr.bf16.gmra.mrb[0].mxu0 %v861
  %v1026 = vpop.f32.mrb[0].mxu0
  %v1027 = vadd.f32 %v910, %v1026
  %v1028 = vpop.f32.mrb[0].mxu0
  %v1029 = vpop.f32.mrb[0].mxu0
  %v1030 = vadd.f32 %v910, %v1029
  %v1031 = vpop.f32.mrb[0].mxu0
  %1032 = vmatprep.mubr.bf16.mxu0 0
  %1033 = vmatmul.mubr.bf16.gmra.mrb[0].mxu0 %v862
  %v1034 = vpop.f32.mrb[0].mxu0
  %v1035 = vadd.f32 %v910, %v1034
  %v1036 = vpop.f32.mrb[0].mxu0
  %v1037 = vpop.f32.mrb[0].mxu0
  %v1038 = vadd.f32 %v910, %v1037
  %v1039 = vpop.f32.mrb[0].mxu0
  %1040 = vmatprep.mubr.bf16.mxu0 0
  %1041 = vmatmul.mubr.bf16.gmra.mrb[0].mxu0 %v863
  %v1042 = vpop.f32.mrb[0].mxu0
  %v1043 = vadd.f32 %v910, %v1042
  %v1044 = vpop.f32.mrb[0].mxu0
  %v1045 = vpop.f32.mrb[0].mxu0
  %v1046 = vadd.f32 %v910, %v1045
  %v1047 = vpop.f32.mrb[0].mxu0
  %1048 = vmatprep.mubr.bf16.mxu0 0
  %1049 = vmatmul.mubr.bf16.gmra.mrb[0].mxu0 %v864
  %v1050 = vpop.f32.mrb[0].mxu0
  %v1051 = vadd.f32 %v910, %v1050
  %v1052 = vpop.f32.mrb[0].mxu0
  %v1053 = vpop.f32.mrb[0].mxu0
  %v1054 = vadd.f32 %v910, %v1053
  %v1055 = vpop.f32.mrb[0].mxu0
  %1056 = vmatprep.mubr.bf16.mxu0 0
  %1057 = vmatmul.mubr.bf16.gmra.mrb[0].mxu0 %v865
  %v1058 = vpop.f32.mrb[0].mxu0
  %v1059 = vadd.f32 %v910, %v1058
  %v1060 = vpop.f32.mrb[0].mxu0
  %v1061 = vpop.f32.mrb[0].mxu0
  %v1062 = vadd.f32 %v910, %v1061
  %v1063 = vpop.f32.mrb[0].mxu0
  %1064 = vmatprep.mubr.bf16.mxu0 0
  %1065 = vmatmul.mubr.bf16.gmra.mrb[0].mxu0 %v866
  %v1066 = vpop.f32.mrb[0].mxu0
  %v1067 = vadd.f32 %v910, %v1066
  %v1068 = vpop.f32.mrb[0].mxu0
  %v1069 = vpop.f32.mrb[0].mxu0
  %v1070 = vadd.f32 %v910, %v1069
  %v1071 = vpop.f32.mrb[0].mxu0
  %1072 = vmatprep.mubr.bf16.mxu0 0
  %1073 = vmatmul.mubr.bf16.gmra.mrb[0].mxu0 %v867
  %v1074 = vpop.f32.mrb[0].mxu0
  %v1075 = vadd.f32 %v910, %v1074
  %v1076 = vpop.f32.mrb[0].mxu0
  %v1077 = vpop.f32.mrb[0].mxu0
  %v1078 = vadd.f32 %v910, %v1077
  %v1079 = vpop.f32.mrb[0].mxu0
  %1080 = vmatprep.mubr.bf16.mxu0 0
  %1081 = vmatmul.mubr.bf16.gmra.mrb[0].mxu0 %v868
  %v1082 = vpop.f32.mrb[0].mxu0
  %v1083 = vadd.f32 %v910, %v1082
  %v1084 = vpop.f32.mrb[0].mxu0
  %v1085 = vpop.f32.mrb[0].mxu0
  %v1086 = vadd.f32 %v910, %v1085
  %v1087 = vpop.f32.mrb[0].mxu0
  %1088 = vmatprep.mubr.bf16.mxu0 0
  %1089 = vmatmul.mubr.bf16.gmra.mrb[0].mxu0 %v869
  %v1090 = vpop.f32.mrb[0].mxu0
  %v1091 = vadd.f32 %v910, %v1090
  %v1092 = vpop.f32.mrb[0].mxu0
  %v1093 = vpop.f32.mrb[0].mxu0
  %v1094 = vadd.f32 %v910, %v1093
  %v1095 = vpop.f32.mrb[0].mxu0
  %1096 = vmatprep.mubr.bf16.mxu0 0
  %1097 = vmatmul.mubr.bf16.gmra.mrb[0].mxu0 %v870
  %v1098 = vpop.f32.mrb[0].mxu0
  %v1099 = vadd.f32 %v910, %v1098
  %v1100 = vpop.f32.mrb[0].mxu0
  %v1101 = vpop.f32.mrb[0].mxu0
  %v1102 = vadd.f32 %v910, %v1101
  %v1103 = vpop.f32.mrb[0].mxu0
  %1104 = vmatprep.mubr.bf16.mxu0 0
  %1105 = vmatmul.mubr.bf16.gmra.mrb[0].mxu0 %v871
  %v1106 = vpop.f32.mrb[0].mxu0
  %v1107 = vadd.f32 %v910, %v1106
  %v1108 = vpop.f32.mrb[0].mxu0
  %v1109 = vpop.f32.mrb[0].mxu0
  %v1110 = vadd.f32 %v910, %v1109
  %v1111 = vpop.f32.mrb[0].mxu0
  %1112 = vmatprep.mubr.bf16.mxu0 0
  %1113 = vmatmul.mubr.bf16.gmra.mrb[0].mxu0 %v872
  %v1114 = vpop.f32.mrb[0].mxu0
  %v1115 = vadd.f32 %v910, %v1114
  %v1116 = vpop.f32.mrb[0].mxu0
  %v1117 = vpop.f32.mrb[0].mxu0
  %v1118 = vadd.f32 %v910, %v1117
  %v1119 = vpop.f32.mrb[0].mxu0
  %1120 = vmatprep.mubr.bf16.mxu0 0
  %1121 = vmatmul.mubr.bf16.gmra.mrb[0].mxu0 %v873
  %v1122 = vpop.f32.mrb[0].mxu0
  %v1123 = vadd.f32 %v910, %v1122
  %v1124 = vpop.f32.mrb[0].mxu0
  %v1125 = vpop.f32.mrb[0].mxu0
  %v1126 = vadd.f32 %v910, %v1125
  %v1127 = vpop.f32.mrb[0].mxu0
  %1128 = vmatprep.mubr.bf16.mxu0 0
  %1129 = vmatmul.mubr.bf16.gmra.mrb[0].mxu0 %v874
  %v1130 = vpop.f32.mrb[0].mxu0
  %v1131 = vadd.f32 %v910, %v1130
  %v1132 = vpop.f32.mrb[0].mxu0
  %v1133 = vpop.f32.mrb[0].mxu0
  %v1134 = vadd.f32 %v910, %v1133
  %v1135 = vpop.f32.mrb[0].mxu0
  %1136 = vmatprep.mubr.bf16.mxu0 0
  %1137 = vmatmul.mubr.bf16.gmra.mrb[0].mxu0 %v875
  %v1138 = vpop.f32.mrb[0].mxu0
  %v1139 = vadd.f32 %v910, %v1138
  %v1140 = vpop.f32.mrb[0].mxu0
  %v1141 = vpop.f32.mrb[0].mxu0
  %v1142 = vadd.f32 %v910, %v1141
  %v1143 = vpop.f32.mrb[0].mxu0
  %1144 = vmatprep.mubr.bf16.mxu0 0
  %1145 = vmatmul.mubr.bf16.gmra.mrb[0].mxu0 %v876
  %v1146 = vpop.f32.mrb[0].mxu0
  %v1147 = vadd.f32 %v910, %v1146
  %v1148 = vpop.f32.mrb[0].mxu0
  %v1149 = vpop.f32.mrb[0].mxu0
  %v1150 = vadd.f32 %v910, %v1149
  %v1151 = vpop.f32.mrb[0].mxu0
  %1152 = vmatprep.mubr.bf16.mxu0 0
  %1153 = vmatmul.mubr.bf16.gmra.mrb[0].mxu0 %v877
  %v1154 = vpop.f32.mrb[0].mxu0
  %v1155 = vadd.f32 %v910, %v1154
  %v1156 = vpop.f32.mrb[0].mxu0
  %v1157 = vpop.f32.mrb[0].mxu0
  %v1158 = vadd.f32 %v910, %v1157
  %v1159 = vpop.f32.mrb[0].mxu0
  %1160 = vmatprep.mubr.bf16.mxu0 0
  %1161 = vmatmul.mubr.bf16.gmra.mrb[0].mxu0 %v878
  %v1162 = vpop.f32.mrb[0].mxu0
  %v1163 = vadd.f32 %v910, %v1162
  %v1164 = vpop.f32.mrb[0].mxu0
  %v1165 = vpop.f32.mrb[0].mxu0
  %v1166 = vadd.f32 %v910, %v1165
  %v1167 = vpop.f32.mrb[0].mxu0
  %1168 = vmatprep.mubr.bf16.mxu0 0
  %1169 = vmatmul.mubr.bf16.gmra.mrb[0].mxu0 %v879
  %v1170 = vpop.f32.mrb[0].mxu0
  %v1171 = vadd.f32 %v910, %v1170
  %v1172 = vpop.f32.mrb[0].mxu0
  %v1173 = vpop.f32.mrb[0].mxu0
  %v1174 = vadd.f32 %v910, %v1173
  %v1175 = vpop.f32.mrb[0].mxu0
  %1176 = vmatprep.mubr.bf16.mxu0 0
  %1177 = vmatmul.mubr.bf16.gmra.mrb[0].mxu0 %v880
  %v1178 = vpop.f32.mrb[0].mxu0
  %v1179 = vadd.f32 %v910, %v1178
  %v1180 = vpop.f32.mrb[0].mxu0
  %v1181 = vpop.f32.mrb[0].mxu0
  %v1182 = vadd.f32 %v910, %v1181
  %v1183 = vpop.f32.mrb[0].mxu0
  %1184 = vmatprep.mubr.bf16.mxu0 0
  %1185 = vmatmul.mubr.bf16.gmra.mrb[0].mxu0 %v881
  %v1186 = vpop.f32.mrb[0].mxu0
  %v1187 = vadd.f32 %v910, %v1186
  %v1188 = vpop.f32.mrb[0].mxu0
  %v1189 = vpop.f32.mrb[0].mxu0
  %v1190 = vadd.f32 %v910, %v1189
  %v1191 = vpop.f32.mrb[0].mxu0
  %1192 = vmatprep.mubr.bf16.mxu0 0
  %1193 = vmatmul.mubr.bf16.gmra.mrb[0].mxu0 %v882
  %v1194 = vpop.f32.mrb[0].mxu0
  %v1195 = vadd.f32 %v910, %v1194
  %v1196 = vpop.f32.mrb[0].mxu0
  %v1197 = vpop.f32.mrb[0].mxu0
  %v1198 = vadd.f32 %v910, %v1197
  %v1199 = vpop.f32.mrb[0].mxu0
  %1200 = vmatprep.mubr.bf16.mxu0 0
  %1201 = vmatmul.mubr.bf16.gmra.mrb[0].mxu0 %v883
  %v1202 = vpop.f32.mrb[0].mxu0
  %v1203 = vadd.f32 %v910, %v1202
  %v1204 = vpop.f32.mrb[0].mxu0
  %v1205 = vpop.f32.mrb[0].mxu0
  %v1206 = vadd.f32 %v910, %v1205
  %v1207 = vpop.f32.mrb[0].mxu0
  %1208 = vmatprep.mubr.bf16.mxu0 0
  %1209 = vmatmul.mubr.bf16.gmra.mrb[0].mxu0 %v884
  %v1210 = vpop.f32.mrb[0].mxu0
  %v1211 = vadd.f32 %v910, %v1210
  %v1212 = vpop.f32.mrb[0].mxu0
  %v1213 = vpop.f32.mrb[0].mxu0
  %v1214 = vadd.f32 %v910, %v1213
  %v1215 = vpop.f32.mrb[0].mxu0
  %1216 = vmatprep.mubr.bf16.mxu0 0
  %1217 = vmatmul.mubr.bf16.gmra.mrb[0].mxu0 %v885
  %v1218 = vpop.f32.mrb[0].mxu0
  %v1219 = vadd.f32 %v910, %v1218
  %v1220 = vpop.f32.mrb[0].mxu0
  %v1221 = vpop.f32.mrb[0].mxu0
  %v1222 = vadd.f32 %v910, %v1221
  %v1223 = vpop.f32.mrb[0].mxu0
  %1224 = vmatprep.mubr.bf16.mxu0 0
  %1225 = vmatmul.mubr.bf16.gmra.mrb[0].mxu0 %v886
  %v1226 = vpop.f32.mrb[0].mxu0
  %v1227 = vadd.f32 %v910, %v1226
  %v1228 = vpop.f32.mrb[0].mxu0
  %v1229 = vpop.f32.mrb[0].mxu0
  %v1230 = vadd.f32 %v910, %v1229
  %v1231 = vpop.f32.mrb[0].mxu0
  %1232 = vmatprep.mubr.bf16.mxu0 0
  %1233 = vmatmul.mubr.bf16.gmra.mrb[0].mxu0 %v887
  %v1234 = vpop.f32.mrb[0].mxu0
  %v1235 = vadd.f32 %v910, %v1234
  %v1236 = vpop.f32.mrb[0].mxu0
  %v1237 = vpop.f32.mrb[0].mxu0
  %v1238 = vadd.f32 %v910, %v1237
  %v1239 = vpop.f32.mrb[0].mxu0
  %1240 = vmatprep.mubr.bf16.mxu0 0
  %1241 = vmatmul.mubr.bf16.gmra.mrb[0].mxu0 %v888
  %v1242 = vpop.f32.mrb[0].mxu0
  %v1243 = vadd.f32 %v910, %v1242
  %v1244 = vpop.f32.mrb[0].mxu0
  %v1245 = vpop.f32.mrb[0].mxu0
  %v1246 = vadd.f32 %v910, %v1245
  %v1247 = vpop.f32.mrb[0].mxu0
  %1248 = vdwg.mxu0
  %v1249 = vpack.c.bf16 %v998, %v995
  %v1250 = vpack.c.bf16 %v1006, %v1003
  %v1251 = vpack.c.bf16 %v1014, %v1011
  %v1252 = vpack.c.bf16 %v1022, %v1019
  %v1253 = vpack.c.bf16 %v1030, %v1027
  %v1254 = vpack.c.bf16 %v1038, %v1035
  %v1255 = vpack.c.bf16 %v1046, %v1043
  %v1256 = vpack.c.bf16 %v1054, %v1051
  %v1257 = vpack.c.bf16 %v1062, %v1059
  %v1258 = vpack.c.bf16 %v1070, %v1067
  %v1259 = vpack.c.bf16 %v1078, %v1075
  %v1260 = vpack.c.bf16 %v1086, %v1083
  %v1261 = vpack.c.bf16 %v1094, %v1091
  %v1262 = vpack.c.bf16 %v1102, %v1099
  %v1263 = vpack.c.bf16 %v1110, %v1107
  %v1264 = vpack.c.bf16 %v1118, %v1115
  %v1265 = vpack.c.bf16 %v1126, %v1123
  %v1266 = vpack.c.bf16 %v1134, %v1131
  %v1267 = vpack.c.bf16 %v1142, %v1139
  %v1268 = vpack.c.bf16 %v1150, %v1147
  %v1269 = vpack.c.bf16 %v1158, %v1155
  %v1270 = vpack.c.bf16 %v1166, %v1163
  %v1271 = vpack.c.bf16 %v1174, %v1171
  %v1272 = vpack.c.bf16 %v1182, %v1179
  %v1273 = vpack.c.bf16 %v1190, %v1187
  %v1274 = vpack.c.bf16 %v1198, %v1195
  %v1275 = vpack.c.bf16 %v1206, %v1203
  %v1276 = vpack.c.bf16 %v1214, %v1211
  %v1277 = vpack.c.bf16 %v1222, %v1219
  %v1278 = vpack.c.bf16 %v1230, %v1227
  %v1279 = vpack.c.bf16 %v1238, %v1235
  %v1280 = vpack.c.bf16 %v1246, %v1243
  %v1313 = vunpack.c.l.b16 %v1249
  %v1314 = vunpack.c.h.b16 %v1249
  %v1315 = vunpack.c.l.b16 %v1250
  %v1316 = vunpack.c.h.b16 %v1250
  %v1317 = vunpack.c.l.b16 %v1251
  %v1318 = vunpack.c.h.b16 %v1251
  %v1319 = vunpack.c.l.b16 %v1252
  %v1320 = vunpack.c.h.b16 %v1252
  %v1321 = vunpack.c.l.b16 %v1253
  %v1322 = vunpack.c.h.b16 %v1253
  %v1323 = vunpack.c.l.b16 %v1254
  %v1324 = vunpack.c.h.b16 %v1254
  %v1325 = vunpack.c.l.b16 %v1255
  %v1326 = vunpack.c.h.b16 %v1255
  %v1327 = vunpack.c.l.b16 %v1256
  %v1328 = vunpack.c.h.b16 %v1256
  %v1329 = vunpack.c.l.b16 %v1257
  %v1330 = vunpack.c.h.b16 %v1257
  %v1331 = vunpack.c.l.b16 %v1258
  %v1332 = vunpack.c.h.b16 %v1258
  %v1333 = vunpack.c.l.b16 %v1259
  %v1334 = vunpack.c.h.b16 %v1259
  %v1335 = vunpack.c.l.b16 %v1260
  %v1336 = vunpack.c.h.b16 %v1260
  %v1337 = vunpack.c.l.b16 %v1261
  %v1338 = vunpack.c.h.b16 %v1261
  %v1339 = vunpack.c.l.b16 %v1262
  %v1340 = vunpack.c.h.b16 %v1262
  %v1341 = vunpack.c.l.b16 %v1263
  %v1342 = vunpack.c.h.b16 %v1263
  %v1343 = vunpack.c.l.b16 %v1264
  %v1344 = vunpack.c.h.b16 %v1264
  %v1345 = vunpack.c.l.b16 %v1265
  %v1346 = vunpack.c.h.b16 %v1265
  %v1347 = vunpack.c.l.b16 %v1266
  %v1348 = vunpack.c.h.b16 %v1266
  %v1349 = vunpack.c.l.b16 %v1267
  %v1350 = vunpack.c.h.b16 %v1267
  %v1351 = vunpack.c.l.b16 %v1268
  %v1352 = vunpack.c.h.b16 %v1268
  %v1353 = vunpack.c.l.b16 %v1269
  %v1354 = vunpack.c.h.b16 %v1269
  %v1355 = vunpack.c.l.b16 %v1270
  %v1356 = vunpack.c.h.b16 %v1270
  %v1357 = vunpack.c.l.b16 %v1271
  %v1358 = vunpack.c.h.b16 %v1271
  %v1359 = vunpack.c.l.b16 %v1272
  %v1360 = vunpack.c.h.b16 %v1272
  %v1361 = vunpack.c.l.b16 %v1273
  %v1362 = vunpack.c.h.b16 %v1273
  %v1363 = vunpack.c.l.b16 %v1274
  %v1364 = vunpack.c.h.b16 %v1274
  %v1365 = vunpack.c.l.b16 %v1275
  %v1366 = vunpack.c.h.b16 %v1275
  %v1367 = vunpack.c.l.b16 %v1276
  %v1368 = vunpack.c.h.b16 %v1276
  %v1369 = vunpack.c.l.b16 %v1277
  %v1370 = vunpack.c.h.b16 %v1277
  %v1371 = vunpack.c.l.b16 %v1278
  %v1372 = vunpack.c.h.b16 %v1278
  %v1373 = vunpack.c.l.b16 %v1279
  %v1374 = vunpack.c.h.b16 %v1279
  %v1375 = vunpack.c.l.b16 %v1280
  %v1376 = vunpack.c.h.b16 %v1280
  %v1377 = vpack.c.b16 %v1313, %v1313
  %v1378 = vpack.c.b16 %v1314, %v1314
  %v1379 = vpack.c.b16 %v1315, %v1315
  %v1380 = vpack.c.b16 %v1316, %v1316
  %v1381 = vpack.c.b16 %v1317, %v1317
  %v1382 = vpack.c.b16 %v1318, %v1318
  %v1383 = vpack.c.b16 %v1319, %v1319
  %v1384 = vpack.c.b16 %v1320, %v1320
  %v1385 = vpack.c.b16 %v1321, %v1321
  %v1386 = vpack.c.b16 %v1322, %v1322
  %v1387 = vpack.c.b16 %v1323, %v1323
  %v1388 = vpack.c.b16 %v1324, %v1324
  %v1389 = vpack.c.b16 %v1325, %v1325
  %v1390 = vpack.c.b16 %v1326, %v1326
  %v1391 = vpack.c.b16 %v1327, %v1327
  %v1392 = vpack.c.b16 %v1328, %v1328
  %v1393 = vpack.c.b16 %v1329, %v1329
  %v1394 = vpack.c.b16 %v1330, %v1330
  %v1395 = vpack.c.b16 %v1331, %v1331
  %v1396 = vpack.c.b16 %v1332, %v1332
  %v1397 = vpack.c.b16 %v1333, %v1333
  %v1398 = vpack.c.b16 %v1334, %v1334
  %v1399 = vpack.c.b16 %v1335, %v1335
  %v1400 = vpack.c.b16 %v1336, %v1336
  %v1401 = vpack.c.b16 %v1337, %v1337
  %v1402 = vpack.c.b16 %v1338, %v1338
  %v1403 = vpack.c.b16 %v1339, %v1339
  %v1404 = vpack.c.b16 %v1340, %v1340
  %v1405 = vpack.c.b16 %v1341, %v1341
  %v1406 = vpack.c.b16 %v1342, %v1342
  %v1407 = vpack.c.b16 %v1343, %v1343
  %v1408 = vpack.c.b16 %v1344, %v1344
  %v1409 = vpack.c.b16 %v1345, %v1345
  %v1410 = vpack.c.b16 %v1346, %v1346
  %v1411 = vpack.c.b16 %v1347, %v1347
  %v1412 = vpack.c.b16 %v1348, %v1348
  %v1413 = vpack.c.b16 %v1349, %v1349
  %v1414 = vpack.c.b16 %v1350, %v1350
  %v1415 = vpack.c.b16 %v1351, %v1351
  %v1416 = vpack.c.b16 %v1352, %v1352
  %v1417 = vpack.c.b16 %v1353, %v1353
  %v1418 = vpack.c.b16 %v1354, %v1354
  %v1419 = vpack.c.b16 %v1355, %v1355
  %v1420 = vpack.c.b16 %v1356, %v1356
  %v1421 = vpack.c.b16 %v1357, %v1357
  %v1422 = vpack.c.b16 %v1358, %v1358
  %v1423 = vpack.c.b16 %v1359, %v1359
  %v1424 = vpack.c.b16 %v1360, %v1360
  %v1425 = vpack.c.b16 %v1361, %v1361
  %v1426 = vpack.c.b16 %v1362, %v1362
  %v1427 = vpack.c.b16 %v1363, %v1363
  %v1428 = vpack.c.b16 %v1364, %v1364
  %v1429 = vpack.c.b16 %v1365, %v1365
  %v1430 = vpack.c.b16 %v1366, %v1366
  %v1431 = vpack.c.b16 %v1367, %v1367
  %v1432 = vpack.c.b16 %v1368, %v1368
  %v1433 = vpack.c.b16 %v1369, %v1369
  %v1434 = vpack.c.b16 %v1370, %v1370
  %v1435 = vpack.c.b16 %v1371, %v1371
  %v1436 = vpack.c.b16 %v1372, %v1372
  %v1437 = vpack.c.b16 %v1373, %v1373
  %v1438 = vpack.c.b16 %v1374, %v1374
  %v1439 = vpack.c.b16 %v1375, %v1375
  %v1440 = vpack.c.b16 %v1376, %v1376
  %1505 = vst [vmem:[%s7] sm:$0xf] %v1377
  %1506 = vst [vmem:[%s7 + $0x4] sm:$0xf] %v1378
  %1507 = vst [vmem:[%s7 + $0x8] sm:$0xf] %v1379
  %1508 = vst [vmem:[%s7 + $0xc] sm:$0xf] %v1380
  %1509 = vst [vmem:[%s7 + $0x10] sm:$0xf] %v1381
  %1510 = vst [vmem:[%s7 + $0x14] sm:$0xf] %v1382
  %1511 = vst [vmem:[%s7 + $0x18] sm:$0xf] %v1383
  %1512 = vst [vmem:[%s7 + $0x1c] sm:$0xf] %v1384
  %1513 = vst [vmem:[%s7 + $0x20] sm:$0xf] %v1385
  %1514 = vst [vmem:[%s7 + $0x24] sm:$0xf] %v1386
  %1515 = vst [vmem:[%s7 + $0x28] sm:$0xf] %v1387
  %1516 = vst [vmem:[%s7 + $0x2c] sm:$0xf] %v1388
  %1517 = vst [vmem:[%s7 + $0x30] sm:$0xf] %v1389
  %1518 = vst [vmem:[%s7 + $0x34] sm:$0xf] %v1390
  %1519 = vst [vmem:[%s7 + $0x38] sm:$0xf] %v1391
  %1520 = vst [vmem:[%s7 + $0x3c] sm:$0xf] %v1392
  %1521 = vst [vmem:[%s7 + $0x40] sm:$0xf] %v1393
  %1522 = vst [vmem:[%s7 + $0x44] sm:$0xf] %v1394
  %1523 = vst [vmem:[%s7 + $0x48] sm:$0xf] %v1395
  %1524 = vst [vmem:[%s7 + $0x4c] sm:$0xf] %v1396
  %1525 = vst [vmem:[%s7 + $0x50] sm:$0xf] %v1397
  %1526 = vst [vmem:[%s7 + $0x54] sm:$0xf] %v1398
  %1527 = vst [vmem:[%s7 + $0x58] sm:$0xf] %v1399
  %1528 = vst [vmem:[%s7 + $0x5c] sm:$0xf] %v1400
  %1529 = vst [vmem:[%s7 + $0x60] sm:$0xf] %v1401
  %1530 = vst [vmem:[%s7 + $0x64] sm:$0xf] %v1402
  %1531 = vst [vmem:[%s7 + $0x68] sm:$0xf] %v1403
  %1532 = vst [vmem:[%s7 + $0x6c] sm:$0xf] %v1404
  %1533 = vst [vmem:[%s7 + $0x70] sm:$0xf] %v1405
  %1534 = vst [vmem:[%s7 + $0x74] sm:$0xf] %v1406
  %1535 = vst [vmem:[%s7 + $0x78] sm:$0xf] %v1407
  %1536 = vst [vmem:[%s7 + $0x7c] sm:$0xf] %v1408
  %1537 = vst [vmem:[%s7 + $0x80] sm:$0xf] %v1409
  %1538 = vst [vmem:[%s7 + $0x84] sm:$0xf] %v1410
  %1539 = vst [vmem:[%s7 + $0x88] sm:$0xf] %v1411
  %1540 = vst [vmem:[%s7 + $0x8c] sm:$0xf] %v1412
  %1541 = vst [vmem:[%s7 + $0x90] sm:$0xf] %v1413
  %1542 = vst [vmem:[%s7 + $0x94] sm:$0xf] %v1414
  %1543 = vst [vmem:[%s7 + $0x98] sm:$0xf] %v1415
  %1544 = vst [vmem:[%s7 + $0x9c] sm:$0xf] %v1416
  %1545 = vst [vmem:[%s7 + $0xa0] sm:$0xf] %v1417
  %1546 = vst [vmem:[%s7 + $0xa4] sm:$0xf] %v1418
  %1547 = vst [vmem:[%s7 + $0xa8] sm:$0xf] %v1419
  %1548 = vst [vmem:[%s7 + $0xac] sm:$0xf] %v1420
  %1549 = vst [vmem:[%s7 + $0xb0] sm:$0xf] %v1421
  %1550 = vst [vmem:[%s7 + $0xb4] sm:$0xf] %v1422
  %1551 = vst [vmem:[%s7 + $0xb8] sm:$0xf] %v1423
  %1552 = vst [vmem:[%s7 + $0xbc] sm:$0xf] %v1424
  %1553 = vst [vmem:[%s7 + $0xc0] sm:$0xf] %v1425
  %1554 = vst [vmem:[%s7 + $0xc4] sm:$0xf] %v1426
  %1555 = vst [vmem:[%s7 + $0xc8] sm:$0xf] %v1427
  %1556 = vst [vmem:[%s7 + $0xcc] sm:$0xf] %v1428
  %1557 = vst [vmem:[%s7 + $0xd0] sm:$0xf] %v1429
  %1558 = vst [vmem:[%s7 + $0xd4] sm:$0xf] %v1430
  %1559 = vst [vmem:[%s7 + $0xd8] sm:$0xf] %v1431
  %1560 = vst [vmem:[%s7 + $0xdc] sm:$0xf] %v1432
  %1561 = vst [vmem:[%s7 + $0xe0] sm:$0xf] %v1433
  %1562 = vst [vmem:[%s7 + $0xe4] sm:$0xf] %v1434
  %1563 = vst [vmem:[%s7 + $0xe8] sm:$0xf] %v1435
  %1564 = vst [vmem:[%s7 + $0xec] sm:$0xf] %v1436
  %1565 = vst [vmem:[%s7 + $0xf0] sm:$0xf] %v1437
  %1566 = vst [vmem:[%s7 + $0xf4] sm:$0xf] %v1438
  %1567 = vst [vmem:[%s7 + $0xf8] sm:$0xf] %v1439
  %1568 = vst [vmem:[%s7 + $0xfc] sm:$0xf] %v1440
  %v1569 = vadd.f32 %v995, %v998
  %v1570 = vadd.f32 %v1569, %v1003
  %v1571 = vadd.f32 %v1570, %v1006
  %v1572 = vadd.f32 %v1571, %v1011
  %v1573 = vadd.f32 %v1572, %v1014
  %v1574 = vadd.f32 %v1573, %v1019
  %v1575 = vadd.f32 %v1574, %v1022
  %v1576 = vadd.f32 %v1575, %v1027
  %v1577 = vadd.f32 %v1576, %v1030
  %v1578 = vadd.f32 %v1577, %v1035
  %v1579 = vadd.f32 %v1578, %v1038
  %v1580 = vadd.f32 %v1579, %v1043
  %v1581 = vadd.f32 %v1580, %v1046
  %v1582 = vadd.f32 %v1581, %v1051
  %v1583 = vadd.f32 %v1582, %v1054
  %v1584 = vadd.f32 %v1583, %v1059
  %v1585 = vadd.f32 %v1584, %v1062
  %v1586 = vadd.f32 %v1585, %v1067
  %v1587 = vadd.f32 %v1586, %v1070
  %v1588 = vadd.f32 %v1587, %v1075
  %v1589 = vadd.f32 %v1588, %v1078
  %v1590 = vadd.f32 %v1589, %v1083
  %v1591 = vadd.f32 %v1590, %v1086
  %v1592 = vadd.f32 %v1591, %v1091
  %v1593 = vadd.f32 %v1592, %v1094
  %v1594 = vadd.f32 %v1593, %v1099
  %v1595 = vadd.f32 %v1594, %v1102
  %v1596 = vadd.f32 %v1595, %v1107
  %v1597 = vadd.f32 %v1596, %v1110
  %v1598 = vadd.f32 %v1597, %v1115
  %v1599 = vadd.f32 %v1598, %v1118
  %v1600 = vadd.f32 %v1599, %v1123
  %v1601 = vadd.f32 %v1600, %v1126
  %v1602 = vadd.f32 %v1601, %v1131
  %v1603 = vadd.f32 %v1602, %v1134
  %v1604 = vadd.f32 %v1603, %v1139
  %v1605 = vadd.f32 %v1604, %v1142
  %v1606 = vadd.f32 %v1605, %v1147
  %v1607 = vadd.f32 %v1606, %v1150
  %v1608 = vadd.f32 %v1607, %v1155
  %v1609 = vadd.f32 %v1608, %v1158
  %v1610 = vadd.f32 %v1609, %v1163
  %v1611 = vadd.f32 %v1610, %v1166
  %v1612 = vadd.f32 %v1611, %v1171
  %v1613 = vadd.f32 %v1612, %v1174
  %v1614 = vadd.f32 %v1613, %v1179
  %v1615 = vadd.f32 %v1614, %v1182
  %v1616 = vadd.f32 %v1615, %v1187
  %v1617 = vadd.f32 %v1616, %v1190
  %v1618 = vadd.f32 %v1617, %v1195
  %v1619 = vadd.f32 %v1618, %v1198
  %v1620 = vadd.f32 %v1619, %v1203
  %v1621 = vadd.f32 %v1620, %v1206
  %v1622 = vadd.f32 %v1621, %v1211
  %v1623 = vadd.f32 %v1622, %v1214
  %v1624 = vadd.f32 %v1623, %v1219
  %v1625 = vadd.f32 %v1624, %v1222
  %v1626 = vadd.f32 %v1625, %v1227
  %v1627 = vadd.f32 %v1626, %v1230
  %v1628 = vadd.f32 %v1627, %v1235
  %v1629 = vadd.f32 %v1628, %v1238
  %v1630 = vadd.f32 %v1629, %v1243
  %v1631 = vadd.f32 %v1630, %v1246
  %v1632 = vrot.slane %v1631, 4
  %v1633 = vadd.f32 %v1631, %v1632
  %v1634 = vrot.slane %v1633, 2
  %v1635 = vadd.f32 %v1633, %v1634
  %v1636 = vrot.slane %v1635, 1
  %v1637 = vadd.f32 %v1635, %v1636
  %v1638 = vmul.f32 %v995, %v995
  %v1639 = vmul.f32 %v998, %v998
  %v1640 = vmul.f32 %v1003, %v1003
  %v1641 = vmul.f32 %v1006, %v1006
  %v1642 = vmul.f32 %v1011, %v1011
  %v1643 = vmul.f32 %v1014, %v1014
  %v1644 = vmul.f32 %v1019, %v1019
  %v1645 = vmul.f32 %v1022, %v1022
  %v1646 = vmul.f32 %v1027, %v1027
  %v1647 = vmul.f32 %v1030, %v1030
  %v1648 = vmul.f32 %v1035, %v1035
  %v1649 = vmul.f32 %v1038, %v1038
  %v1650 = vmul.f32 %v1043, %v1043
  %v1651 = vmul.f32 %v1046, %v1046
  %v1652 = vmul.f32 %v1051, %v1051
  %v1653 = vmul.f32 %v1054, %v1054
  %v1654 = vmul.f32 %v1059, %v1059
  %v1655 = vmul.f32 %v1062, %v1062
  %v1656 = vmul.f32 %v1067, %v1067
  %v1657 = vmul.f32 %v1070, %v1070
  %v1658 = vmul.f32 %v1075, %v1075
  %v1659 = vmul.f32 %v1078, %v1078
  %v1660 = vmul.f32 %v1083, %v1083
  %v1661 = vmul.f32 %v1086, %v1086
  %v1662 = vmul.f32 %v1091, %v1091
  %v1663 = vmul.f32 %v1094, %v1094
  %v1664 = vmul.f32 %v1099, %v1099
  %v1665 = vmul.f32 %v1102, %v1102
  %v1666 = vmul.f32 %v1107, %v1107
  %v1667 = vmul.f32 %v1110, %v1110
  %v1668 = vmul.f32 %v1115, %v1115
  %v1669 = vmul.f32 %v1118, %v1118
  %v1670 = vmul.f32 %v1123, %v1123
  %v1671 = vmul.f32 %v1126, %v1126
  %v1672 = vmul.f32 %v1131, %v1131
  %v1673 = vmul.f32 %v1134, %v1134
  %v1674 = vmul.f32 %v1139, %v1139
  %v1675 = vmul.f32 %v1142, %v1142
  %v1676 = vmul.f32 %v1147, %v1147
  %v1677 = vmul.f32 %v1150, %v1150
  %v1678 = vmul.f32 %v1155, %v1155
  %v1679 = vmul.f32 %v1158, %v1158
  %v1680 = vmul.f32 %v1163, %v1163
  %v1681 = vmul.f32 %v1166, %v1166
  %v1682 = vmul.f32 %v1171, %v1171
  %v1683 = vmul.f32 %v1174, %v1174
  %v1684 = vmul.f32 %v1179, %v1179
  %v1685 = vmul.f32 %v1182, %v1182
  %v1686 = vmul.f32 %v1187, %v1187
  %v1687 = vmul.f32 %v1190, %v1190
  %v1688 = vmul.f32 %v1195, %v1195
  %v1689 = vmul.f32 %v1198, %v1198
  %v1690 = vmul.f32 %v1203, %v1203
  %v1691 = vmul.f32 %v1206, %v1206
  %v1692 = vmul.f32 %v1211, %v1211
  %v1693 = vmul.f32 %v1214, %v1214
  %v1694 = vmul.f32 %v1219, %v1219
  %v1695 = vmul.f32 %v1222, %v1222
  %v1696 = vmul.f32 %v1227, %v1227
  %v1697 = vmul.f32 %v1230, %v1230
  %v1698 = vmul.f32 %v1235, %v1235
  %v1699 = vmul.f32 %v1238, %v1238
  %v1700 = vmul.f32 %v1243, %v1243
  %v1701 = vmul.f32 %v1246, %v1246
  %v1702 = vadd.f32 %v1638, %v1639
  %v1703 = vadd.f32 %v1702, %v1640
  %v1704 = vadd.f32 %v1703, %v1641
  %v1705 = vadd.f32 %v1704, %v1642
  %v1706 = vadd.f32 %v1705, %v1643
  %v1707 = vadd.f32 %v1706, %v1644
  %v1708 = vadd.f32 %v1707, %v1645
  %v1709 = vadd.f32 %v1708, %v1646
  %v1710 = vadd.f32 %v1709, %v1647
  %v1711 = vadd.f32 %v1710, %v1648
  %v1712 = vadd.f32 %v1711, %v1649
  %v1713 = vadd.f32 %v1712, %v1650
  %v1714 = vadd.f32 %v1713, %v1651
  %v1715 = vadd.f32 %v1714, %v1652
  %v1716 = vadd.f32 %v1715, %v1653
  %v1717 = vadd.f32 %v1716, %v1654
  %v1718 = vadd.f32 %v1717, %v1655
  %v1719 = vadd.f32 %v1718, %v1656
  %v1720 = vadd.f32 %v1719, %v1657
  %v1721 = vadd.f32 %v1720, %v1658
  %v1722 = vadd.f32 %v1721, %v1659
  %v1723 = vadd.f32 %v1722, %v1660
  %v1724 = vadd.f32 %v1723, %v1661
  %v1725 = vadd.f32 %v1724, %v1662
  %v1726 = vadd.f32 %v1725, %v1663
  %v1727 = vadd.f32 %v1726, %v1664
  %v1728 = vadd.f32 %v1727, %v1665
  %v1729 = vadd.f32 %v1728, %v1666
  %v1730 = vadd.f32 %v1729, %v1667
  %v1731 = vadd.f32 %v1730, %v1668
  %v1732 = vadd.f32 %v1731, %v1669
  %v1733 = vadd.f32 %v1732, %v1670
  %v1734 = vadd.f32 %v1733, %v1671
  %v1735 = vadd.f32 %v1734, %v1672
  %v1736 = vadd.f32 %v1735, %v1673
  %v1737 = vadd.f32 %v1736, %v1674
  %v1738 = vadd.f32 %v1737, %v1675
  %v1739 = vadd.f32 %v1738, %v1676
  %v1740 = vadd.f32 %v1739, %v1677
  %v1741 = vadd.f32 %v1740, %v1678
  %v1742 = vadd.f32 %v1741, %v1679
  %v1743 = vadd.f32 %v1742, %v1680
  %v1744 = vadd.f32 %v1743, %v1681
  %v1745 = vadd.f32 %v1744, %v1682
  %v1746 = vadd.f32 %v1745, %v1683
  %v1747 = vadd.f32 %v1746, %v1684
  %v1748 = vadd.f32 %v1747, %v1685
  %v1749 = vadd.f32 %v1748, %v1686
  %v1750 = vadd.f32 %v1749, %v1687
  %v1751 = vadd.f32 %v1750, %v1688
  %v1752 = vadd.f32 %v1751, %v1689
  %v1753 = vadd.f32 %v1752, %v1690
  %v1754 = vadd.f32 %v1753, %v1691
  %v1755 = vadd.f32 %v1754, %v1692
  %v1756 = vadd.f32 %v1755, %v1693
  %v1757 = vadd.f32 %v1756, %v1694
  %v1758 = vadd.f32 %v1757, %v1695
  %v1759 = vadd.f32 %v1758, %v1696
  %v1760 = vadd.f32 %v1759, %v1697
  %v1761 = vadd.f32 %v1760, %v1698
  %v1762 = vadd.f32 %v1761, %v1699
  %v1763 = vadd.f32 %v1762, %v1700
  %v1764 = vadd.f32 %v1763, %v1701
  %v1765 = vrot.slane %v1764, 4
  %v1766 = vadd.f32 %v1764, %v1765
  %v1767 = vrot.slane %v1766, 2
  %v1768 = vadd.f32 %v1766, %v1767
  %v1769 = vrot.slane %v1768, 1
  %v1770 = vadd.f32 %v1768, %v1769
  %vm1771 = vcmask 1040384
  %v1772 = vsel %vm1771, %v1637, %v1770
  %1773 = vst [vmem:[%s8] sm:$0x3] %v1772
  // Predicated region
  $region30: #{block_forward.6} parent=0 // pred_check
    _
  $region31: #{block_forward.6} parent=0 // pred_check_branch
    %1775 = sbr.rel (0) target = $region33
  $region32: #{block_forward.6} parent=0 // pred_region
    _
  $region33: #{block_forward.6} parent=0 // pred_fallthru
    _
  // Predicated region
  $region34: #{block_forward.6} parent=0 // pred_check
    _
  $region35: #{block_forward.6} parent=0 // pred_check_branch
    %1777 = sbr.rel (0) target = $region37
  $region36: #{block_forward.6} parent=0 // pred_region
    _
  $region37: #{block_forward.6} parent=0 // pred_fallthru
    _
  // Predicated region
  $region38: #{block_forward.6} parent=0 // pred_check
    _
  $region39: #{block_forward.6} parent=0 // pred_check_branch
    %1779 = sbr.rel (0) target = $region41
  $region40: #{block_forward.6} parent=0 // pred_region
    _
  $region41: #{block_forward.6} parent=0 // pred_fallthru
    _
  // Predicated region
  $region42: #{block_forward.6} parent=0 // pred_check
    _
  $region43: #{block_forward.6} parent=0 // pred_check_branch
    %1781 = sbr.rel (0) target = $region45
  $region44: #{block_forward.6} parent=0 // pred_region
    _
  $region45: #{block_forward.6} parent=0 // pred_fallthru
    _

</llo_original>
